<compile_context>
chip_gen: v7x
topology: tpu7x:2x2x1
jax: 0.10.0
libtpu: 0.0.40
codegen_flags: <defaults>
</compile_context>

<pallas_src>
import jax
import jax.numpy as jnp
from jax import lax
from jax.experimental import pallas as pl
from jax.experimental.pallas import tpu as pltpu

MATMUL_DTYPE = jnp.bfloat16   # MXU inputs; accumulation is always f32


# ---------------- single fused Pallas kernel ----------------

def _fused_forward_kernel(idx_ref,                    # ((L+2)*B, 1) int32, -1 = pad row
                          emb_ref,                    # (Vp, D)     bf16 (zero-padded rows)
                          w1a_ref, w1b_ref, w1c_ref,  # (D, C1)     bf16  (taps l-1, l, l+1)
                          b1_ref,                     # (1, C1)     f32
                          w2a_ref, w2b_ref, w2c_ref,  # (C1, C2)    bf16
                          b2_ref,                     # (1, C2)     f32
                          wd1_ref,                    # (Lo, C2, H1) bf16 (BN folded in)
                          bd1_ref,                    # (1, H1)     f32  (BN folded in)
                          wd2_ref,                    # (H1, NOUT)  bf16
                          bd2_ref,                    # (1, NOUT)   f32
                          o_ref):                     # (B, NOUT)   f32
    f32 = jnp.float32
    LP = idx_ref.shape[0]
    Vp, _ = emb_ref.shape
    B = o_ref.shape[0]
    L = LP // B - 2
    Lo = L // 3
    C1 = b1_ref.shape[-1]
    LB = L * B
    LoB = Lo * B

    # ---- Embedding lookup as a one-hot MXU matmul (gather fused in-kernel) ----
    # Rows are position-major (row = padded_pos * B + b); pad rows have idx=-1,
    # which produces an all-zero one-hot row -> exact zero 'same'-conv padding.
    ids = idx_ref[...]                                              # (LP, 1) int32
    iota = lax.broadcasted_iota(jnp.int32, (LP, Vp), 1)
    onehot = jnp.where(iota == ids, 1.0, 0.0).astype(MATMUL_DTYPE)  # (LP, Vp) bf16
    xp = jnp.dot(onehot, emb_ref[...], preferred_element_type=f32)  # (LP, D) f32

    # ---- Conv1 (k=3, 'same') + ReLU: 3 position-stacked matmuls, M = L*B ----
    xa = xp[0:LB].astype(MATMUL_DTYPE)           # x[l-1]
    xb = xp[B:LB + B].astype(MATMUL_DTYPE)       # x[l]
    xc = xp[2 * B:LB + 2 * B].astype(MATMUL_DTYPE)   # x[l+1]
    c1 = jnp.dot(xa, w1a_ref[...], preferred_element_type=f32)
    c1 = c1 + jnp.dot(xb, w1b_ref[...], preferred_element_type=f32)
    c1 = c1 + jnp.dot(xc, w1c_ref[...], preferred_element_type=f32)
    c1 = jnp.maximum(c1 + b1_ref[...], 0.0)      # (L*B, C1) f32

    # ---- MaxPool1D(3,3,'same'): elementwise max over 3 window row-blocks ----
    # Also fuse in the zero padding row-blocks needed for conv2's 'same' conv.
    zero_blk = jnp.zeros((B, C1), f32)
    blocks = [zero_blk]
    for lo in range(Lo):
        r = 3 * lo * B
        p = jnp.maximum(c1[r:r + B], c1[r + B:r + 2 * B])
        p = jnp.maximum(p, c1[r + 2 * B:r + 3 * B])
        blocks.append(p)
    blocks.append(zero_blk)
    pp = jnp.concatenate(blocks, axis=0)         # ((Lo+2)*B, C1) f32, 8-row aligned

    # ---- Conv2 (k=3, 'same') + ReLU: 3 position-stacked matmuls, M = Lo*B ----
    pa = pp[0:LoB].astype(MATMUL_DTYPE)
    pb = pp[B:LoB + B].astype(MATMUL_DTYPE)
    pc = pp[2 * B:LoB + 2 * B].astype(MATMUL_DTYPE)
    c2 = jnp.dot(pa, w2a_ref[...], preferred_element_type=f32)
    c2 = c2 + jnp.dot(pb, w2b_ref[...], preferred_element_type=f32)
    c2 = c2 + jnp.dot(pc, w2c_ref[...], preferred_element_type=f32)
    c2 = jnp.maximum(c2 + b2_ref[...], 0.0)      # (Lo*B, C2) f32

    # ---- Flatten + BatchNorm (folded into wd1/bd1) + Dense1 + ReLU ----
    # Flatten index = lo*C2 + c; never materialized:
    #   h1 = relu( sum_lo c2[lo-block] @ wd1_folded[lo] + bd1_folded )
    h1 = None
    for lo in range(Lo):
        blk = c2[lo * B:(lo + 1) * B].astype(MATMUL_DTYPE)
        part = jnp.dot(blk, wd1_ref[lo], preferred_element_type=f32)
        h1 = part if h1 is None else h1 + part
    h1 = jnp.maximum(h1 + bd1_ref[...], 0.0)     # (B, H1) f32

    # ---- Dense2 + softmax (f32 epilogue; divide on the EUP + Newton step) ----
    logits = jnp.dot(h1.astype(MATMUL_DTYPE), wd2_ref[...],
                     preferred_element_type=f32) + bd2_ref[...]
    m = jnp.max(logits, axis=-1, keepdims=True)
    e = jnp.exp(logits - m)
    denom = jnp.sum(e, axis=-1, keepdims=True)
    r = pl.reciprocal(denom, approx=True)
    r = r * (2.0 - denom * r)                    # one Newton step -> ~f32 accurate
    o_ref[...] = e * r


# ---------------- wrapper ----------------

def model1_forward(params, idx):
    B, L = idx.shape
    assert L % 3 == 0, "MaxPool1D(3,3,'same') fast path assumes L % 3 == 0"
    NOUT = params["bd2"].shape[-1]

    # Tiny int32 prep kept in XLA glue: transpose to position-major (L, B), add
    # one row of -1 sentinels on each side (zero one-hot rows == zero conv pad),
    # flatten to an ((L+2)*B, 1) column.  The heavy f32 gather/transpose/cast
    # chain of the previous version is gone; the gather runs on the MXU.
    neg = jnp.full((1, B), -1, jnp.int32)
    idx_col = jnp.concatenate([neg, idx.astype(jnp.int32).T, neg],
                              axis=0).reshape(-1, 1)

    vmem = pl.BlockSpec(memory_space=pltpu.MemorySpace.VMEM)
    return pl.pallas_call(
        _fused_forward_kernel,
        out_shape=jax.ShapeDtypeStruct((B, NOUT), jnp.float32),
        in_specs=[vmem] * 14,
        out_specs=vmem,
    )(idx_col, params["emb"],
      params["w1a"], params["w1b"], params["w1c"], params["b1"],
      params["w2a"], params["w2b"], params["w2c"], params["b2"],
      params["wd1"], params["bd1"], params["wd2"], params["bd2"])


# ---------------- parameter construction ----------------

def build_params(key, V, D, C1, C2, Lo, H1, NOUT):
    F = Lo * C2
    ks = jax.random.split(key, 12)
    bf = MATMUL_DTYPE
    p = {}

    # Embedding table, padded to a lane-friendly multiple of 128 rows (zero rows
    # are never selected since token ids < V and pad rows use idx = -1).
    Vp = ((V + 127) // 128) * 128
    emb = 0.05 * jax.random.normal(ks[0], (V, D), jnp.float32)
    p["emb"] = jnp.pad(emb, ((0, Vp - V), (0, 0))).astype(bf)

    # Conv1 weights, tap order [l-1, l, l+1]
    w1 = jax.random.normal(ks[1], (3, D, C1), jnp.float32) / jnp.sqrt(3.0 * D)
    p["w1a"], p["w1b"], p["w1c"] = (w1[0].astype(bf), w1[1].astype(bf), w1[2].astype(bf))
    p["b1"] = 0.01 * jax.random.normal(ks[2], (1, C1), jnp.float32)

    # Conv2 weights, tap order [l-1, l, l+1]
    w2 = jax.random.normal(ks[3], (3, C1, C2), jnp.float32) / jnp.sqrt(3.0 * C1)
    p["w2a"], p["w2b"], p["w2c"] = (w2[0].astype(bf), w2[1].astype(bf), w2[2].astype(bf))
    p["b2"] = 0.01 * jax.random.normal(ks[4], (1, C2), jnp.float32)

    # BatchNorm1d (inference) on the F flattened features, folded into Dense1:
    #   bn(x) @ Wd1 + bd1 == x @ (scale[:,None]*Wd1) + (bd1 + shift @ Wd1)
    gamma = 1.0 + 0.1 * jax.random.normal(ks[5], (F,), jnp.float32)
    beta = 0.1 * jax.random.normal(ks[6], (F,), jnp.float32)
    r_mean = 0.05 * jax.random.normal(ks[7], (F,), jnp.float32)
    r_var = jnp.ones((F,), jnp.float32)
    eps = 1e-5
    scale = gamma / jnp.sqrt(r_var + eps)
    shift = beta - r_mean * scale

    wd1 = jax.random.normal(ks[8], (F, H1), jnp.float32) / jnp.sqrt(float(F))
    bd1 = 0.01 * jax.random.normal(ks[9], (1, H1), jnp.float32)
    wd1_folded = scale[:, None] * wd1                       # (F, H1) f32
    bd1_folded = bd1 + (shift @ wd1)[None, :]               # (1, H1) f32
    # flatten index = lo*C2 + c  ->  (Lo, C2, H1) for per-lo in-kernel indexing
    p["wd1"] = wd1_folded.reshape(Lo, C2, H1).astype(bf)
    p["bd1"] = bd1_folded

    # Dense2 (H1 -> NOUT)
    p["wd2"] = (jax.random.normal(ks[10], (H1, NOUT), jnp.float32)
                / jnp.sqrt(float(H1))).astype(bf)
    p["bd2"] = 0.01 * jax.random.normal(ks[11], (1, NOUT), jnp.float32)
    return p


if __name__ == "__main__":
    # Small shapes consistent with the module (vocab 2000, embed 32, conv filters
    # 256/32, dense 256, 10 classes); sequence length shrunk 50 -> 12 so it is
    # divisible by the pool stride 3.
    B, L, V, D = 8, 12, 2000, 32
    C1, C2 = 256, 32
    Lo = L // 3
    H1, NOUT = 256, 10

    key = jax.random.PRNGKey(0)
    k_idx, k_par = jax.random.split(key)
    params = build_params(k_par, V, D, C1, C2, Lo, H1, NOUT)
    idx = jax.random.randint(k_idx, (B, L), 0, V, dtype=jnp.int32)

    fwd = jax.jit(model1_forward)
    out = jax.block_until_ready(fwd(params, idx))

    assert out.shape == (B, NOUT)
    # softmax rows sum to 1 (Newton-refined reciprocal keeps ~f32 accuracy)
    assert bool(jnp.allclose(jnp.sum(out, axis=-1), 1.0, atol=1e-4))
    print("KERNEL_OK")
</pallas_src>

<mosaic_0001>
module attributes {stable_mosaic.version = 11 : i64} {
  func.func @_fused_forward_kernel(%arg0: memref<112x1xi32, #tpu.memory_space<vmem>>, %arg1: memref<2048x32xbf16, #tpu.memory_space<vmem>>, %arg2: memref<32x256xbf16, #tpu.memory_space<vmem>>, %arg3: memref<32x256xbf16, #tpu.memory_space<vmem>>, %arg4: memref<32x256xbf16, #tpu.memory_space<vmem>>, %arg5: memref<1x256xf32, #tpu.memory_space<vmem>>, %arg6: memref<256x32xbf16, #tpu.memory_space<vmem>>, %arg7: memref<256x32xbf16, #tpu.memory_space<vmem>>, %arg8: memref<256x32xbf16, #tpu.memory_space<vmem>>, %arg9: memref<1x32xf32, #tpu.memory_space<vmem>>, %arg10: memref<4x32x256xbf16, #tpu.memory_space<vmem>>, %arg11: memref<1x256xf32, #tpu.memory_space<vmem>>, %arg12: memref<256x10xbf16, #tpu.memory_space<vmem>>, %arg13: memref<1x10xf32, #tpu.memory_space<vmem>>, %arg14: memref<8x10xf32, #tpu.memory_space<vmem>>) attributes {dimension_semantics = [], scalar_prefetch = 0 : i64, scratch_operands = 0 : i64, tpu.core_type = #tpu.core_type<tc>} {
    %c0 = arith.constant 0 : index
    %c0_0 = arith.constant 0 : index
    %0 = vector.load %arg0[%c0, %c0_0] : memref<112x1xi32, #tpu.memory_space<vmem>>, vector<112x1xi32>
    %1 = tpu.iota {dimensions = array<i32: 1>} : vector<112x2048xi32>
    %2 = vector.broadcast %0 : vector<112x1xi32> to vector<112x2048xi32>
    %3 = arith.cmpi eq, %1, %2 : vector<112x2048xi32>
    %cst = arith.constant 1.000000e+00 : f32
    %cst_1 = arith.constant 0.000000e+00 : f32
    %4 = vector.broadcast %cst : f32 to vector<112x2048xf32>
    %5 = vector.broadcast %cst_1 : f32 to vector<112x2048xf32>
    %6 = arith.select %3, %4, %5 : vector<112x2048xi1>, vector<112x2048xf32>
    %7 = arith.truncf %6 : vector<112x2048xf32> to vector<112x2048xbf16>
    %c0_2 = arith.constant 0 : index
    %c0_3 = arith.constant 0 : index
    %8 = vector.load %arg1[%c0_2, %c0_3] : memref<2048x32xbf16, #tpu.memory_space<vmem>>, vector<2048x32xbf16>
    %cst_4 = arith.constant dense<0.000000e+00> : vector<112x32xf32>
    %9 = tpu.matmul %7, %8, %cst_4 {dimension_numbers = #tpu.dot_dimension_numbers<[1], [0], [0], [1], [0, 0, 1, 1], [], []>} : vector<112x2048xbf16>, vector<2048x32xbf16>, vector<112x32xf32> -> vector<112x32xf32>
    %10 = vector.extract_strided_slice %9 {offsets = [0, 0], sizes = [96, 32], strides = [1, 1]} : vector<112x32xf32> to vector<96x32xf32>
    %11 = arith.truncf %10 : vector<96x32xf32> to vector<96x32xbf16>
    %12 = vector.extract_strided_slice %9 {offsets = [8, 0], sizes = [96, 32], strides = [1, 1]} : vector<112x32xf32> to vector<96x32xf32>
    %13 = arith.truncf %12 : vector<96x32xf32> to vector<96x32xbf16>
    %14 = vector.extract_strided_slice %9 {offsets = [16, 0], sizes = [96, 32], strides = [1, 1]} : vector<112x32xf32> to vector<96x32xf32>
    %15 = arith.truncf %14 : vector<96x32xf32> to vector<96x32xbf16>
    %c0_5 = arith.constant 0 : index
    %c0_6 = arith.constant 0 : index
    %16 = vector.load %arg2[%c0_5, %c0_6] : memref<32x256xbf16, #tpu.memory_space<vmem>>, vector<32x256xbf16>
    %cst_7 = arith.constant dense<0.000000e+00> : vector<96x256xf32>
    %17 = tpu.matmul %11, %16, %cst_7 {dimension_numbers = #tpu.dot_dimension_numbers<[1], [0], [0], [1], [0, 0, 1, 1], [], []>} : vector<96x32xbf16>, vector<32x256xbf16>, vector<96x256xf32> -> vector<96x256xf32>
    %c0_8 = arith.constant 0 : index
    %c0_9 = arith.constant 0 : index
    %18 = vector.load %arg3[%c0_8, %c0_9] : memref<32x256xbf16, #tpu.memory_space<vmem>>, vector<32x256xbf16>
    %cst_10 = arith.constant dense<0.000000e+00> : vector<96x256xf32>
    %19 = tpu.matmul %13, %18, %cst_10 {dimension_numbers = #tpu.dot_dimension_numbers<[1], [0], [0], [1], [0, 0, 1, 1], [], []>} : vector<96x32xbf16>, vector<32x256xbf16>, vector<96x256xf32> -> vector<96x256xf32>
    %20 = arith.addf %17, %19 : vector<96x256xf32>
    %c0_11 = arith.constant 0 : index
    %c0_12 = arith.constant 0 : index
    %21 = vector.load %arg4[%c0_11, %c0_12] : memref<32x256xbf16, #tpu.memory_space<vmem>>, vector<32x256xbf16>
    %cst_13 = arith.constant dense<0.000000e+00> : vector<96x256xf32>
    %22 = tpu.matmul %15, %21, %cst_13 {dimension_numbers = #tpu.dot_dimension_numbers<[1], [0], [0], [1], [0, 0, 1, 1], [], []>} : vector<96x32xbf16>, vector<32x256xbf16>, vector<96x256xf32> -> vector<96x256xf32>
    %23 = arith.addf %20, %22 : vector<96x256xf32>
    %c0_14 = arith.constant 0 : index
    %c0_15 = arith.constant 0 : index
    %24 = vector.load %arg5[%c0_14, %c0_15] : memref<1x256xf32, #tpu.memory_space<vmem>>, vector<1x256xf32>
    %25 = vector.broadcast %24 : vector<1x256xf32> to vector<96x256xf32>
    %26 = arith.addf %23, %25 : vector<96x256xf32>
    %cst_16 = arith.constant 0.000000e+00 : f32
    %27 = vector.broadcast %cst_16 : f32 to vector<96x256xf32>
    %28 = arith.maximumf %26, %27 : vector<96x256xf32>
    %cst_17 = arith.constant 0.000000e+00 : f32
    %29 = vector.broadcast %cst_17 : f32 to vector<8x256xf32>
    %30 = vector.extract_strided_slice %28 {offsets = [0, 0], sizes = [8, 256], strides = [1, 1]} : vector<96x256xf32> to vector<8x256xf32>
    %31 = vector.extract_strided_slice %28 {offsets = [8, 0], sizes = [8, 256], strides = [1, 1]} : vector<96x256xf32> to vector<8x256xf32>
    %32 = arith.maximumf %30, %31 : vector<8x256xf32>
    %33 = vector.extract_strided_slice %28 {offsets = [16, 0], sizes = [8, 256], strides = [1, 1]} : vector<96x256xf32> to vector<8x256xf32>
    %34 = arith.maximumf %32, %33 : vector<8x256xf32>
    %35 = vector.extract_strided_slice %28 {offsets = [24, 0], sizes = [8, 256], strides = [1, 1]} : vector<96x256xf32> to vector<8x256xf32>
    %36 = vector.extract_strided_slice %28 {offsets = [32, 0], sizes = [8, 256], strides = [1, 1]} : vector<96x256xf32> to vector<8x256xf32>
    %37 = arith.maximumf %35, %36 : vector<8x256xf32>
    %38 = vector.extract_strided_slice %28 {offsets = [40, 0], sizes = [8, 256], strides = [1, 1]} : vector<96x256xf32> to vector<8x256xf32>
    %39 = arith.maximumf %37, %38 : vector<8x256xf32>
    %40 = vector.extract_strided_slice %28 {offsets = [48, 0], sizes = [8, 256], strides = [1, 1]} : vector<96x256xf32> to vector<8x256xf32>
    %41 = vector.extract_strided_slice %28 {offsets = [56, 0], sizes = [8, 256], strides = [1, 1]} : vector<96x256xf32> to vector<8x256xf32>
    %42 = arith.maximumf %40, %41 : vector<8x256xf32>
    %43 = vector.extract_strided_slice %28 {offsets = [64, 0], sizes = [8, 256], strides = [1, 1]} : vector<96x256xf32> to vector<8x256xf32>
    %44 = arith.maximumf %42, %43 : vector<8x256xf32>
    %45 = vector.extract_strided_slice %28 {offsets = [72, 0], sizes = [8, 256], strides = [1, 1]} : vector<96x256xf32> to vector<8x256xf32>
    %46 = vector.extract_strided_slice %28 {offsets = [80, 0], sizes = [8, 256], strides = [1, 1]} : vector<96x256xf32> to vector<8x256xf32>
    %47 = arith.maximumf %45, %46 : vector<8x256xf32>
    %48 = vector.extract_strided_slice %28 {offsets = [88, 0], sizes = [8, 256], strides = [1, 1]} : vector<96x256xf32> to vector<8x256xf32>
    %49 = arith.maximumf %47, %48 : vector<8x256xf32>
    %50 = tpu.concatenate %29, %34, %39, %44, %49, %29 in 0 : vector<8x256xf32>, vector<8x256xf32>, vector<8x256xf32>, vector<8x256xf32>, vector<8x256xf32>, vector<8x256xf32> -> vector<48x256xf32>
    %51 = vector.extract_strided_slice %50 {offsets = [0, 0], sizes = [32, 256], strides = [1, 1]} : vector<48x256xf32> to vector<32x256xf32>
    %52 = arith.truncf %51 : vector<32x256xf32> to vector<32x256xbf16>
    %53 = vector.extract_strided_slice %50 {offsets = [8, 0], sizes = [32, 256], strides = [1, 1]} : vector<48x256xf32> to vector<32x256xf32>
    %54 = arith.truncf %53 : vector<32x256xf32> to vector<32x256xbf16>
    %55 = vector.extract_strided_slice %50 {offsets = [16, 0], sizes = [32, 256], strides = [1, 1]} : vector<48x256xf32> to vector<32x256xf32>
    %56 = arith.truncf %55 : vector<32x256xf32> to vector<32x256xbf16>
    %c0_18 = arith.constant 0 : index
    %c0_19 = arith.constant 0 : index
    %57 = vector.load %arg6[%c0_18, %c0_19] : memref<256x32xbf16, #tpu.memory_space<vmem>>, vector<256x32xbf16>
    %cst_20 = arith.constant dense<0.000000e+00> : vector<32x32xf32>
    %58 = tpu.matmul %52, %57, %cst_20 {dimension_numbers = #tpu.dot_dimension_numbers<[1], [0], [0], [1], [0, 0, 1, 1], [], []>} : vector<32x256xbf16>, vector<256x32xbf16>, vector<32x32xf32> -> vector<32x32xf32>
    %c0_21 = arith.constant 0 : index
    %c0_22 = arith.constant 0 : index
    %59 = vector.load %arg7[%c0_21, %c0_22] : memref<256x32xbf16, #tpu.memory_space<vmem>>, vector<256x32xbf16>
    %cst_23 = arith.constant dense<0.000000e+00> : vector<32x32xf32>
    %60 = tpu.matmul %54, %59, %cst_23 {dimension_numbers = #tpu.dot_dimension_numbers<[1], [0], [0], [1], [0, 0, 1, 1], [], []>} : vector<32x256xbf16>, vector<256x32xbf16>, vector<32x32xf32> -> vector<32x32xf32>
    %61 = arith.addf %58, %60 : vector<32x32xf32>
    %c0_24 = arith.constant 0 : index
    %c0_25 = arith.constant 0 : index
    %62 = vector.load %arg8[%c0_24, %c0_25] : memref<256x32xbf16, #tpu.memory_space<vmem>>, vector<256x32xbf16>
    %cst_26 = arith.constant dense<0.000000e+00> : vector<32x32xf32>
    %63 = tpu.matmul %56, %62, %cst_26 {dimension_numbers = #tpu.dot_dimension_numbers<[1], [0], [0], [1], [0, 0, 1, 1], [], []>} : vector<32x256xbf16>, vector<256x32xbf16>, vector<32x32xf32> -> vector<32x32xf32>
    %64 = arith.addf %61, %63 : vector<32x32xf32>
    %c0_27 = arith.constant 0 : index
    %c0_28 = arith.constant 0 : index
    %65 = vector.load %arg9[%c0_27, %c0_28] : memref<1x32xf32, #tpu.memory_space<vmem>>, vector<1x32xf32>
    %66 = vector.broadcast %65 : vector<1x32xf32> to vector<32x32xf32>
    %67 = arith.addf %64, %66 : vector<32x32xf32>
    %cst_29 = arith.constant 0.000000e+00 : f32
    %68 = vector.broadcast %cst_29 : f32 to vector<32x32xf32>
    %69 = arith.maximumf %67, %68 : vector<32x32xf32>
    %70 = vector.extract_strided_slice %69 {offsets = [0, 0], sizes = [8, 32], strides = [1, 1]} : vector<32x32xf32> to vector<8x32xf32>
    %71 = arith.truncf %70 : vector<8x32xf32> to vector<8x32xbf16>
    %c0_30 = arith.constant 0 : index
    %c0_31 = arith.constant 0 : index
    %c0_32 = arith.constant 0 : index
    %72 = vector.load %arg10[%c0_30, %c0_31, %c0_32] : memref<4x32x256xbf16, #tpu.memory_space<vmem>>, vector<1x32x256xbf16>
    %73 = vector.shape_cast %72 : vector<1x32x256xbf16> to vector<32x256xbf16>
    %cst_33 = arith.constant dense<0.000000e+00> : vector<8x256xf32>
    %74 = tpu.matmul %71, %73, %cst_33 {dimension_numbers = #tpu.dot_dimension_numbers<[1], [0], [0], [1], [0, 0, 1, 1], [], []>} : vector<8x32xbf16>, vector<32x256xbf16>, vector<8x256xf32> -> vector<8x256xf32>
    %75 = vector.extract_strided_slice %69 {offsets = [8, 0], sizes = [8, 32], strides = [1, 1]} : vector<32x32xf32> to vector<8x32xf32>
    %76 = arith.truncf %75 : vector<8x32xf32> to vector<8x32xbf16>
    %c1 = arith.constant 1 : index
    %c0_34 = arith.constant 0 : index
    %c0_35 = arith.constant 0 : index
    %77 = vector.load %arg10[%c1, %c0_34, %c0_35] : memref<4x32x256xbf16, #tpu.memory_space<vmem>>, vector<1x32x256xbf16>
    %78 = vector.shape_cast %77 : vector<1x32x256xbf16> to vector<32x256xbf16>
    %cst_36 = arith.constant dense<0.000000e+00> : vector<8x256xf32>
    %79 = tpu.matmul %76, %78, %cst_36 {dimension_numbers = #tpu.dot_dimension_numbers<[1], [0], [0], [1], [0, 0, 1, 1], [], []>} : vector<8x32xbf16>, vector<32x256xbf16>, vector<8x256xf32> -> vector<8x256xf32>
    %80 = arith.addf %74, %79 : vector<8x256xf32>
    %81 = vector.extract_strided_slice %69 {offsets = [16, 0], sizes = [8, 32], strides = [1, 1]} : vector<32x32xf32> to vector<8x32xf32>
    %82 = arith.truncf %81 : vector<8x32xf32> to vector<8x32xbf16>
    %c2 = arith.constant 2 : index
    %c0_37 = arith.constant 0 : index
    %c0_38 = arith.constant 0 : index
    %83 = vector.load %arg10[%c2, %c0_37, %c0_38] : memref<4x32x256xbf16, #tpu.memory_space<vmem>>, vector<1x32x256xbf16>
    %84 = vector.shape_cast %83 : vector<1x32x256xbf16> to vector<32x256xbf16>
    %cst_39 = arith.constant dense<0.000000e+00> : vector<8x256xf32>
    %85 = tpu.matmul %82, %84, %cst_39 {dimension_numbers = #tpu.dot_dimension_numbers<[1], [0], [0], [1], [0, 0, 1, 1], [], []>} : vector<8x32xbf16>, vector<32x256xbf16>, vector<8x256xf32> -> vector<8x256xf32>
    %86 = arith.addf %80, %85 : vector<8x256xf32>
    %87 = vector.extract_strided_slice %69 {offsets = [24, 0], sizes = [8, 32], strides = [1, 1]} : vector<32x32xf32> to vector<8x32xf32>
    %88 = arith.truncf %87 : vector<8x32xf32> to vector<8x32xbf16>
    %c3 = arith.constant 3 : index
    %c0_40 = arith.constant 0 : index
    %c0_41 = arith.constant 0 : index
    %89 = vector.load %arg10[%c3, %c0_40, %c0_41] : memref<4x32x256xbf16, #tpu.memory_space<vmem>>, vector<1x32x256xbf16>
    %90 = vector.shape_cast %89 : vector<1x32x256xbf16> to vector<32x256xbf16>
    %cst_42 = arith.constant dense<0.000000e+00> : vector<8x256xf32>
    %91 = tpu.matmul %88, %90, %cst_42 {dimension_numbers = #tpu.dot_dimension_numbers<[1], [0], [0], [1], [0, 0, 1, 1], [], []>} : vector<8x32xbf16>, vector<32x256xbf16>, vector<8x256xf32> -> vector<8x256xf32>
    %92 = arith.addf %86, %91 : vector<8x256xf32>
    %c0_43 = arith.constant 0 : index
    %c0_44 = arith.constant 0 : index
    %93 = vector.load %arg11[%c0_43, %c0_44] : memref<1x256xf32, #tpu.memory_space<vmem>>, vector<1x256xf32>
    %94 = vector.broadcast %93 : vector<1x256xf32> to vector<8x256xf32>
    %95 = arith.addf %92, %94 : vector<8x256xf32>
    %cst_45 = arith.constant 0.000000e+00 : f32
    %96 = vector.broadcast %cst_45 : f32 to vector<8x256xf32>
    %97 = arith.maximumf %95, %96 : vector<8x256xf32>
    %98 = arith.truncf %97 : vector<8x256xf32> to vector<8x256xbf16>
    %c0_46 = arith.constant 0 : index
    %c0_47 = arith.constant 0 : index
    %99 = vector.load %arg12[%c0_46, %c0_47] : memref<256x10xbf16, #tpu.memory_space<vmem>>, vector<256x10xbf16>
    %cst_48 = arith.constant dense<0.000000e+00> : vector<8x10xf32>
    %100 = tpu.matmul %98, %99, %cst_48 {dimension_numbers = #tpu.dot_dimension_numbers<[1], [0], [0], [1], [0, 0, 1, 1], [], []>} : vector<8x256xbf16>, vector<256x10xbf16>, vector<8x10xf32> -> vector<8x10xf32>
    %c0_49 = arith.constant 0 : index
    %c0_50 = arith.constant 0 : index
    %101 = vector.load %arg13[%c0_49, %c0_50] : memref<1x10xf32, #tpu.memory_space<vmem>>, vector<1x10xf32>
    %102 = vector.broadcast %101 : vector<1x10xf32> to vector<8x10xf32>
    %103 = arith.addf %100, %102 : vector<8x10xf32>
    %cst_51 = arith.constant dense<0xFF800000> : vector<8xf32>
    %104 = vector.multi_reduction <maximumf>, %103, %cst_51 [1] : vector<8x10xf32> to vector<8xf32>
    %105 = vector.shape_cast %104 : vector<8xf32> to vector<8x1xf32>
    %106 = vector.broadcast %105 : vector<8x1xf32> to vector<8x10xf32>
    %107 = arith.subf %103, %106 : vector<8x10xf32>
    %108 = math.exp %107 : vector<8x10xf32>
    %cst_52 = arith.constant dense<0.000000e+00> : vector<8xf32>
    %109 = vector.multi_reduction <add>, %108, %cst_52 [1] : vector<8x10xf32> to vector<8xf32>
    %110 = vector.shape_cast %109 : vector<8xf32> to vector<8x1xf32>
    %111 = tpu.reciprocal %110 {approx = true} : vector<8x1xf32> -> vector<8x1xf32>
    %112 = arith.mulf %110, %111 : vector<8x1xf32>
    %cst_53 = arith.constant 2.000000e+00 : f32
    %113 = vector.broadcast %cst_53 : f32 to vector<8x1xf32>
    %114 = arith.subf %113, %112 : vector<8x1xf32>
    %115 = arith.mulf %111, %114 : vector<8x1xf32>
    %116 = vector.broadcast %115 : vector<8x1xf32> to vector<8x10xf32>
    %117 = arith.mulf %108, %116 : vector<8x10xf32>
    %c0_54 = arith.constant 0 : index
    %c0_55 = arith.constant 0 : index
    %118 = vector.load %arg14[%c0_54, %c0_55] : memref<8x10xf32, #tpu.memory_space<vmem>>, vector<8x10xf32>
    tpu.vector_store %arg14[%c0_54, %c0_55], %117 {strides = array<i32>} : memref<8x10xf32, #tpu.memory_space<vmem>>, vector<8x10xf32>,
    return
  }
}

</mosaic_0001>

<llo_original>
// kernel: model1_forward.1
$region0: #{model1_forward.1}
  #allocation0 [shape = 'u32[]', space=smem, size = 0x4, offset = 0x4, fixed_abs, tag = 'smem constant byte address 0x4 - core index']
  #allocation1 [shape = 'u32[144,128]{1,0:T(1,128)}', space=vmem, size = 0x12000, scoped, tag = 'internal scratch']
  %s0 = inlined_call_operand.vmem [shape: s32[112,1], index: 0, kind: input, shape index: {}]
  %s1 = inlined_call_operand.vmem [shape: bf16[2048,32], index: 1, kind: input, shape index: {}]
  %s2 = inlined_call_operand.vmem [shape: bf16[32,256], index: 2, kind: input, shape index: {}]
  %s3 = inlined_call_operand.vmem [shape: bf16[32,256], index: 3, kind: input, shape index: {}]
  %s4 = inlined_call_operand.vmem [shape: bf16[32,256], index: 4, kind: input, shape index: {}]
  %s5 = inlined_call_operand.vmem [shape: f32[1,256], index: 5, kind: input, shape index: {}]
  %s6 = inlined_call_operand.vmem [shape: bf16[256,32], index: 6, kind: input, shape index: {}]
  %s7 = inlined_call_operand.vmem [shape: bf16[256,32], index: 7, kind: input, shape index: {}]
  %s8 = inlined_call_operand.vmem [shape: bf16[256,32], index: 8, kind: input, shape index: {}]
  %s9 = inlined_call_operand.vmem [shape: f32[1,32], index: 9, kind: input, shape index: {}]
  %s10 = inlined_call_operand.vmem [shape: bf16[4,32,256], index: 10, kind: input, shape index: {}]
  %s11 = inlined_call_operand.vmem [shape: f32[1,256], index: 11, kind: input, shape index: {}]
  %s12 = inlined_call_operand.vmem [shape: bf16[256,10], index: 12, kind: input, shape index: {}]
  %s13 = inlined_call_operand.vmem [shape: f32[1,10], index: 13, kind: input, shape index: {}]
  %s14 = inlined_call_operand.hbm [shape: f32[8,10], index: 14, kind: output, shape index: {}]
  %s15 = sld [smem:[#allocation0]]
  $region66: #{model1_forward.1} parent=0
    _
  %s17 = ssub.s32 1, %s15
  %s18 = scalar_select 0, %s17, %s15
  $region1: #{model1_forward.1} parent=0
    #allocation2 [shape = 'u8[4096]{0}', space=vmem, size = 0x1000, scoped, tag = 'output window, operand 0, single buffered']
    #allocation3 [shape = 's32[1]{0}', space=sflag, size = 0x4, scoped, tag = 'scoped memory for model1_forward.1']
    %19 = vsyncpa [#allocation3], 0
    // Predicated region
    $region2: #{model1_forward.1} parent=1 // pred_check
      _
    $region3: #{model1_forward.1} parent=1 // pred_check_branch
      %21 = sbr.rel (0) target = $region5
    $region4: #{model1_forward.1} parent=1 // pred_region
      _
    $region5: #{model1_forward.1} parent=1 // pred_fallthru
      _
    // Predicated region
    $region6: #{model1_forward.1} parent=1 // pred_check
      _
    $region7: #{model1_forward.1} parent=1 // pred_check_branch
      %23 = sbr.rel (0) target = $region9
    $region8: #{model1_forward.1} parent=1 // pred_region
      _
    $region9: #{model1_forward.1} parent=1 // pred_fallthru
      _
    // Predicated region
    $region10: #{model1_forward.1} parent=1 // pred_check
      _
    $region11: #{model1_forward.1} parent=1 // pred_check_branch
      %25 = sbr.rel (0) target = $region13
    $region12: #{model1_forward.1} parent=1 // pred_region
      _
    $region13: #{model1_forward.1} parent=1 // pred_fallthru
      _
    // Predicated region
    $region14: #{model1_forward.1} parent=1 // pred_check
      _
    $region15: #{model1_forward.1} parent=1 // pred_check_branch
      %27 = sbr.rel (0) target = $region17
    $region16: #{model1_forward.1} parent=1 // pred_region
      _
    $region17: #{model1_forward.1} parent=1 // pred_fallthru
      _
    // Predicated region
    $region18: #{model1_forward.1} parent=1 // pred_check
      _
    $region19: #{model1_forward.1} parent=1 // pred_check_branch
      %29 = sbr.rel (0) target = $region21
    $region20: #{model1_forward.1} parent=1 // pred_region
      _
    $region21: #{model1_forward.1} parent=1 // pred_fallthru
      _
    // Predicated region
    $region22: #{model1_forward.1} parent=1 // pred_check
      _
    $region23: #{model1_forward.1} parent=1 // pred_check_branch
      %31 = sbr.rel (0) target = $region25
    $region24: #{model1_forward.1} parent=1 // pred_region
      _
    $region25: #{model1_forward.1} parent=1 // pred_fallthru
      _
    // Predicated region
    $region26: #{model1_forward.1} parent=1 // pred_check
      _
    $region27: #{model1_forward.1} parent=1 // pred_check_branch
      %33 = sbr.rel (0) target = $region29
    $region28: #{model1_forward.1} parent=1 // pred_region
      _
    $region29: #{model1_forward.1} parent=1 // pred_fallthru
      _
    // Predicated region
    $region30: #{model1_forward.1} parent=1 // pred_check
      _
    $region31: #{model1_forward.1} parent=1 // pred_check_branch
      %35 = sbr.rel (0) target = $region33
    $region32: #{model1_forward.1} parent=1 // pred_region
      _
    $region33: #{model1_forward.1} parent=1 // pred_fallthru
      _
    // Predicated region
    $region34: #{model1_forward.1} parent=1 // pred_check
      _
    $region35: #{model1_forward.1} parent=1 // pred_check_branch
      %37 = sbr.rel (0) target = $region37
    $region36: #{model1_forward.1} parent=1 // pred_region
      _
    $region37: #{model1_forward.1} parent=1 // pred_fallthru
      _
    // Predicated region
    $region38: #{model1_forward.1} parent=1 // pred_check
      _
    $region39: #{model1_forward.1} parent=1 // pred_check_branch
      %39 = sbr.rel (0) target = $region41
    $region40: #{model1_forward.1} parent=1 // pred_region
      _
    $region41: #{model1_forward.1} parent=1 // pred_fallthru
      _
    // Predicated region
    $region42: #{model1_forward.1} parent=1 // pred_check
      _
    $region43: #{model1_forward.1} parent=1 // pred_check_branch
      %41 = sbr.rel (0) target = $region45
    $region44: #{model1_forward.1} parent=1 // pred_region
      _
    $region45: #{model1_forward.1} parent=1 // pred_fallthru
      _
    // Predicated region
    $region46: #{model1_forward.1} parent=1 // pred_check
      _
    $region47: #{model1_forward.1} parent=1 // pred_check_branch
      %43 = sbr.rel (0) target = $region49
    $region48: #{model1_forward.1} parent=1 // pred_region
      _
    $region49: #{model1_forward.1} parent=1 // pred_fallthru
      _
    // Predicated region
    $region50: #{model1_forward.1} parent=1 // pred_check
      _
    $region51: #{model1_forward.1} parent=1 // pred_check_branch
      %45 = sbr.rel (0) target = $region53
    $region52: #{model1_forward.1} parent=1 // pred_region
      _
    $region53: #{model1_forward.1} parent=1 // pred_fallthru
      _
    // Predicated region
    $region54: #{model1_forward.1} parent=1 // pred_check
      _
    $region55: #{model1_forward.1} parent=1 // pred_check_branch
      %47 = sbr.rel (0) target = $region57
    $region56: #{model1_forward.1} parent=1 // pred_region
      _
    $region57: #{model1_forward.1} parent=1 // pred_fallthru
      _
    %v49 = vld [vmem:[%s0] sm:$0xff]
    %v50 = vld [vmem:[%s0 + $0x8] sm:$0xff]
    %v51 = vld [vmem:[%s0 + $0x10] sm:$0xff]
    %v52 = vld [vmem:[%s0 + $0x18] sm:$0xff]
    %v53 = vld [vmem:[%s0 + $0x20] sm:$0xff]
    %v54 = vld [vmem:[%s0 + $0x28] sm:$0xff]
    %v55 = vld [vmem:[%s0 + $0x30] sm:$0xff]
    %v56 = vld [vmem:[%s0 + $0x38] sm:$0xff]
    %v57 = vld [vmem:[%s0 + $0x40] sm:$0xff]
    %v58 = vld [vmem:[%s0 + $0x48] sm:$0xff]
    %v59 = vld [vmem:[%s0 + $0x50] sm:$0xff]
    %v60 = vld [vmem:[%s0 + $0x58] sm:$0xff]
    %v61 = vld [vmem:[%s0 + $0x60] sm:$0xff]
    %v62 = vld [vmem:[%s0 + $0x68] sm:$0xff]
    %v63 = vlaneseq
    %v64 = vand.u32 %v63, 127
    %v65 = vadd.s32 %v64, 128
    %v66 = vadd.s32 %v64, 256
    %v67 = vadd.s32 %v64, 384
    %v68 = vadd.s32 %v64, 512
    %v69 = vadd.s32 %v64, 640
    %v70 = vadd.s32 %v64, 768
    %v71 = vadd.s32 %v64, 896
    %v72 = vadd.s32 %v64, 1024
    %v73 = vadd.s32 %v64, 1152
    %v74 = vadd.s32 %v64, 1280
    %v75 = vadd.s32 %v64, 1408
    %v76 = vadd.s32 %v64, 1536
    %v77 = vadd.s32 %v64, 1664
    %v78 = vadd.s32 %v64, 1792
    %v79 = vadd.s32 %v64, 1920
    %80 = vset.pattern.permute.xlu0 0
    %81 = vperm.xlu0 %80, %v49
    %v82 = vpop.permute.xlu0 %81
    %83 = vset.pattern.permute.xlu0 0
    %84 = vperm.xlu0 %83, %v50
    %v85 = vpop.permute.xlu0 %84
    %86 = vset.pattern.permute.xlu0 0
    %87 = vperm.xlu0 %86, %v51
    %v88 = vpop.permute.xlu0 %87
    %89 = vset.pattern.permute.xlu0 0
    %90 = vperm.xlu0 %89, %v52
    %v91 = vpop.permute.xlu0 %90
    %92 = vset.pattern.permute.xlu0 0
    %93 = vperm.xlu0 %92, %v53
    %v94 = vpop.permute.xlu0 %93
    %95 = vset.pattern.permute.xlu0 0
    %96 = vperm.xlu0 %95, %v54
    %v97 = vpop.permute.xlu0 %96
    %98 = vset.pattern.permute.xlu0 0
    %99 = vperm.xlu0 %98, %v55
    %v100 = vpop.permute.xlu0 %99
    %101 = vset.pattern.permute.xlu0 0
    %102 = vperm.xlu0 %101, %v56
    %v103 = vpop.permute.xlu0 %102
    %104 = vset.pattern.permute.xlu0 0
    %105 = vperm.xlu0 %104, %v57
    %v106 = vpop.permute.xlu0 %105
    %107 = vset.pattern.permute.xlu0 0
    %108 = vperm.xlu0 %107, %v58
    %v109 = vpop.permute.xlu0 %108
    %110 = vset.pattern.permute.xlu0 0
    %111 = vperm.xlu0 %110, %v59
    %v112 = vpop.permute.xlu0 %111
    %113 = vset.pattern.permute.xlu0 0
    %114 = vperm.xlu0 %113, %v60
    %v115 = vpop.permute.xlu0 %114
    %116 = vset.pattern.permute.xlu0 0
    %117 = vperm.xlu0 %116, %v61
    %v118 = vpop.permute.xlu0 %117
    %119 = vset.pattern.permute.xlu0 0
    %120 = vperm.xlu0 %119, %v62
    %v121 = vpop.permute.xlu0 %120
    %vm122 = vcmp.eq.s32.totalorder %v64, %v82
    %vm123 = vcmp.eq.s32.totalorder %v65, %v82
    %vm124 = vcmp.eq.s32.totalorder %v66, %v82
    %vm125 = vcmp.eq.s32.totalorder %v67, %v82
    %vm126 = vcmp.eq.s32.totalorder %v68, %v82
    %vm127 = vcmp.eq.s32.totalorder %v69, %v82
    %vm128 = vcmp.eq.s32.totalorder %v70, %v82
    %vm129 = vcmp.eq.s32.totalorder %v71, %v82
    %vm130 = vcmp.eq.s32.totalorder %v72, %v82
    %vm131 = vcmp.eq.s32.totalorder %v73, %v82
    %vm132 = vcmp.eq.s32.totalorder %v74, %v82
    %vm133 = vcmp.eq.s32.totalorder %v75, %v82
    %vm134 = vcmp.eq.s32.totalorder %v76, %v82
    %vm135 = vcmp.eq.s32.totalorder %v77, %v82
    %vm136 = vcmp.eq.s32.totalorder %v78, %v82
    %vm137 = vcmp.eq.s32.totalorder %v79, %v82
    %vm138 = vcmp.eq.s32.totalorder %v64, %v85
    %vm139 = vcmp.eq.s32.totalorder %v65, %v85
    %vm140 = vcmp.eq.s32.totalorder %v66, %v85
    %vm141 = vcmp.eq.s32.totalorder %v67, %v85
    %vm142 = vcmp.eq.s32.totalorder %v68, %v85
    %vm143 = vcmp.eq.s32.totalorder %v69, %v85
    %vm144 = vcmp.eq.s32.totalorder %v70, %v85
    %vm145 = vcmp.eq.s32.totalorder %v71, %v85
    %vm146 = vcmp.eq.s32.totalorder %v72, %v85
    %vm147 = vcmp.eq.s32.totalorder %v73, %v85
    %vm148 = vcmp.eq.s32.totalorder %v74, %v85
    %vm149 = vcmp.eq.s32.totalorder %v75, %v85
    %vm150 = vcmp.eq.s32.totalorder %v76, %v85
    %vm151 = vcmp.eq.s32.totalorder %v77, %v85
    %vm152 = vcmp.eq.s32.totalorder %v78, %v85
    %vm153 = vcmp.eq.s32.totalorder %v79, %v85
    %vm154 = vcmp.eq.s32.totalorder %v64, %v88
    %vm155 = vcmp.eq.s32.totalorder %v65, %v88
    %vm156 = vcmp.eq.s32.totalorder %v66, %v88
    %vm157 = vcmp.eq.s32.totalorder %v67, %v88
    %vm158 = vcmp.eq.s32.totalorder %v68, %v88
    %vm159 = vcmp.eq.s32.totalorder %v69, %v88
    %vm160 = vcmp.eq.s32.totalorder %v70, %v88
    %vm161 = vcmp.eq.s32.totalorder %v71, %v88
    %vm162 = vcmp.eq.s32.totalorder %v72, %v88
    %vm163 = vcmp.eq.s32.totalorder %v73, %v88
    %vm164 = vcmp.eq.s32.totalorder %v74, %v88
    %vm165 = vcmp.eq.s32.totalorder %v75, %v88
    %vm166 = vcmp.eq.s32.totalorder %v76, %v88
    %vm167 = vcmp.eq.s32.totalorder %v77, %v88
    %vm168 = vcmp.eq.s32.totalorder %v78, %v88
    %vm169 = vcmp.eq.s32.totalorder %v79, %v88
    %vm170 = vcmp.eq.s32.totalorder %v64, %v91
    %vm171 = vcmp.eq.s32.totalorder %v65, %v91
    %vm172 = vcmp.eq.s32.totalorder %v66, %v91
    %vm173 = vcmp.eq.s32.totalorder %v67, %v91
    %vm174 = vcmp.eq.s32.totalorder %v68, %v91
    %vm175 = vcmp.eq.s32.totalorder %v69, %v91
    %vm176 = vcmp.eq.s32.totalorder %v70, %v91
    %vm177 = vcmp.eq.s32.totalorder %v71, %v91
    %vm178 = vcmp.eq.s32.totalorder %v72, %v91
    %vm179 = vcmp.eq.s32.totalorder %v73, %v91
    %vm180 = vcmp.eq.s32.totalorder %v74, %v91
    %vm181 = vcmp.eq.s32.totalorder %v75, %v91
    %vm182 = vcmp.eq.s32.totalorder %v76, %v91
    %vm183 = vcmp.eq.s32.totalorder %v77, %v91
    %vm184 = vcmp.eq.s32.totalorder %v78, %v91
    %vm185 = vcmp.eq.s32.totalorder %v79, %v91
    %vm186 = vcmp.eq.s32.totalorder %v64, %v94
    %vm187 = vcmp.eq.s32.totalorder %v65, %v94
    %vm188 = vcmp.eq.s32.totalorder %v66, %v94
    %vm189 = vcmp.eq.s32.totalorder %v67, %v94
    %vm190 = vcmp.eq.s32.totalorder %v68, %v94
    %vm191 = vcmp.eq.s32.totalorder %v69, %v94
    %vm192 = vcmp.eq.s32.totalorder %v70, %v94
    %vm193 = vcmp.eq.s32.totalorder %v71, %v94
    %vm194 = vcmp.eq.s32.totalorder %v72, %v94
    %vm195 = vcmp.eq.s32.totalorder %v73, %v94
    %vm196 = vcmp.eq.s32.totalorder %v74, %v94
    %vm197 = vcmp.eq.s32.totalorder %v75, %v94
    %vm198 = vcmp.eq.s32.totalorder %v76, %v94
    %vm199 = vcmp.eq.s32.totalorder %v77, %v94
    %vm200 = vcmp.eq.s32.totalorder %v78, %v94
    %vm201 = vcmp.eq.s32.totalorder %v79, %v94
    %vm202 = vcmp.eq.s32.totalorder %v64, %v97
    %vm203 = vcmp.eq.s32.totalorder %v65, %v97
    %vm204 = vcmp.eq.s32.totalorder %v66, %v97
    %vm205 = vcmp.eq.s32.totalorder %v67, %v97
    %vm206 = vcmp.eq.s32.totalorder %v68, %v97
    %vm207 = vcmp.eq.s32.totalorder %v69, %v97
    %vm208 = vcmp.eq.s32.totalorder %v70, %v97
    %vm209 = vcmp.eq.s32.totalorder %v71, %v97
    %vm210 = vcmp.eq.s32.totalorder %v72, %v97
    %vm211 = vcmp.eq.s32.totalorder %v73, %v97
    %vm212 = vcmp.eq.s32.totalorder %v74, %v97
    %vm213 = vcmp.eq.s32.totalorder %v75, %v97
    %vm214 = vcmp.eq.s32.totalorder %v76, %v97
    %vm215 = vcmp.eq.s32.totalorder %v77, %v97
    %vm216 = vcmp.eq.s32.totalorder %v78, %v97
    %vm217 = vcmp.eq.s32.totalorder %v79, %v97
    %vm218 = vcmp.eq.s32.totalorder %v64, %v100
    %vm219 = vcmp.eq.s32.totalorder %v65, %v100
    %vm220 = vcmp.eq.s32.totalorder %v66, %v100
    %vm221 = vcmp.eq.s32.totalorder %v67, %v100
    %vm222 = vcmp.eq.s32.totalorder %v68, %v100
    %vm223 = vcmp.eq.s32.totalorder %v69, %v100
    %vm224 = vcmp.eq.s32.totalorder %v70, %v100
    %vm225 = vcmp.eq.s32.totalorder %v71, %v100
    %vm226 = vcmp.eq.s32.totalorder %v72, %v100
    %vm227 = vcmp.eq.s32.totalorder %v73, %v100
    %vm228 = vcmp.eq.s32.totalorder %v74, %v100
    %vm229 = vcmp.eq.s32.totalorder %v75, %v100
    %vm230 = vcmp.eq.s32.totalorder %v76, %v100
    %vm231 = vcmp.eq.s32.totalorder %v77, %v100
    %vm232 = vcmp.eq.s32.totalorder %v78, %v100
    %vm233 = vcmp.eq.s32.totalorder %v79, %v100
    %vm234 = vcmp.eq.s32.totalorder %v64, %v103
    %vm235 = vcmp.eq.s32.totalorder %v65, %v103
    %vm236 = vcmp.eq.s32.totalorder %v66, %v103
    %vm237 = vcmp.eq.s32.totalorder %v67, %v103
    %vm238 = vcmp.eq.s32.totalorder %v68, %v103
    %vm239 = vcmp.eq.s32.totalorder %v69, %v103
    %vm240 = vcmp.eq.s32.totalorder %v70, %v103
    %vm241 = vcmp.eq.s32.totalorder %v71, %v103
    %vm242 = vcmp.eq.s32.totalorder %v72, %v103
    %vm243 = vcmp.eq.s32.totalorder %v73, %v103
    %vm244 = vcmp.eq.s32.totalorder %v74, %v103
    %vm245 = vcmp.eq.s32.totalorder %v75, %v103
    %vm246 = vcmp.eq.s32.totalorder %v76, %v103
    %vm247 = vcmp.eq.s32.totalorder %v77, %v103
    %vm248 = vcmp.eq.s32.totalorder %v78, %v103
    %vm249 = vcmp.eq.s32.totalorder %v79, %v103
    %vm250 = vcmp.eq.s32.totalorder %v64, %v106
    %vm251 = vcmp.eq.s32.totalorder %v65, %v106
    %vm252 = vcmp.eq.s32.totalorder %v66, %v106
    %vm253 = vcmp.eq.s32.totalorder %v67, %v106
    %vm254 = vcmp.eq.s32.totalorder %v68, %v106
    %vm255 = vcmp.eq.s32.totalorder %v69, %v106
    %vm256 = vcmp.eq.s32.totalorder %v70, %v106
    %vm257 = vcmp.eq.s32.totalorder %v71, %v106
    %vm258 = vcmp.eq.s32.totalorder %v72, %v106
    %vm259 = vcmp.eq.s32.totalorder %v73, %v106
    %vm260 = vcmp.eq.s32.totalorder %v74, %v106
    %vm261 = vcmp.eq.s32.totalorder %v75, %v106
    %vm262 = vcmp.eq.s32.totalorder %v76, %v106
    %vm263 = vcmp.eq.s32.totalorder %v77, %v106
    %vm264 = vcmp.eq.s32.totalorder %v78, %v106
    %vm265 = vcmp.eq.s32.totalorder %v79, %v106
    %vm266 = vcmp.eq.s32.totalorder %v64, %v109
    %vm267 = vcmp.eq.s32.totalorder %v65, %v109
    %vm268 = vcmp.eq.s32.totalorder %v66, %v109
    %vm269 = vcmp.eq.s32.totalorder %v67, %v109
    %vm270 = vcmp.eq.s32.totalorder %v68, %v109
    %vm271 = vcmp.eq.s32.totalorder %v69, %v109
    %vm272 = vcmp.eq.s32.totalorder %v70, %v109
    %vm273 = vcmp.eq.s32.totalorder %v71, %v109
    %vm274 = vcmp.eq.s32.totalorder %v72, %v109
    %vm275 = vcmp.eq.s32.totalorder %v73, %v109
    %vm276 = vcmp.eq.s32.totalorder %v74, %v109
    %vm277 = vcmp.eq.s32.totalorder %v75, %v109
    %vm278 = vcmp.eq.s32.totalorder %v76, %v109
    %vm279 = vcmp.eq.s32.totalorder %v77, %v109
    %vm280 = vcmp.eq.s32.totalorder %v78, %v109
    %vm281 = vcmp.eq.s32.totalorder %v79, %v109
    %vm282 = vcmp.eq.s32.totalorder %v64, %v112
    %vm283 = vcmp.eq.s32.totalorder %v65, %v112
    %vm284 = vcmp.eq.s32.totalorder %v66, %v112
    %vm285 = vcmp.eq.s32.totalorder %v67, %v112
    %vm286 = vcmp.eq.s32.totalorder %v68, %v112
    %vm287 = vcmp.eq.s32.totalorder %v69, %v112
    %vm288 = vcmp.eq.s32.totalorder %v70, %v112
    %vm289 = vcmp.eq.s32.totalorder %v71, %v112
    %vm290 = vcmp.eq.s32.totalorder %v72, %v112
    %vm291 = vcmp.eq.s32.totalorder %v73, %v112
    %vm292 = vcmp.eq.s32.totalorder %v74, %v112
    %vm293 = vcmp.eq.s32.totalorder %v75, %v112
    %vm294 = vcmp.eq.s32.totalorder %v76, %v112
    %vm295 = vcmp.eq.s32.totalorder %v77, %v112
    %vm296 = vcmp.eq.s32.totalorder %v78, %v112
    %vm297 = vcmp.eq.s32.totalorder %v79, %v112
    %vm298 = vcmp.eq.s32.totalorder %v64, %v115
    %vm299 = vcmp.eq.s32.totalorder %v65, %v115
    %vm300 = vcmp.eq.s32.totalorder %v66, %v115
    %vm301 = vcmp.eq.s32.totalorder %v67, %v115
    %vm302 = vcmp.eq.s32.totalorder %v68, %v115
    %vm303 = vcmp.eq.s32.totalorder %v69, %v115
    %vm304 = vcmp.eq.s32.totalorder %v70, %v115
    %vm305 = vcmp.eq.s32.totalorder %v71, %v115
    %vm306 = vcmp.eq.s32.totalorder %v72, %v115
    %vm307 = vcmp.eq.s32.totalorder %v73, %v115
    %vm308 = vcmp.eq.s32.totalorder %v74, %v115
    %vm309 = vcmp.eq.s32.totalorder %v75, %v115
    %vm310 = vcmp.eq.s32.totalorder %v76, %v115
    %vm311 = vcmp.eq.s32.totalorder %v77, %v115
    %vm312 = vcmp.eq.s32.totalorder %v78, %v115
    %vm313 = vcmp.eq.s32.totalorder %v79, %v115
    %vm314 = vcmp.eq.s32.totalorder %v64, %v118
    %vm315 = vcmp.eq.s32.totalorder %v65, %v118
    %vm316 = vcmp.eq.s32.totalorder %v66, %v118
    %vm317 = vcmp.eq.s32.totalorder %v67, %v118
    %vm318 = vcmp.eq.s32.totalorder %v68, %v118
    %vm319 = vcmp.eq.s32.totalorder %v69, %v118
    %vm320 = vcmp.eq.s32.totalorder %v70, %v118
    %vm321 = vcmp.eq.s32.totalorder %v71, %v118
    %vm322 = vcmp.eq.s32.totalorder %v72, %v118
    %vm323 = vcmp.eq.s32.totalorder %v73, %v118
    %vm324 = vcmp.eq.s32.totalorder %v74, %v118
    %vm325 = vcmp.eq.s32.totalorder %v75, %v118
    %vm326 = vcmp.eq.s32.totalorder %v76, %v118
    %vm327 = vcmp.eq.s32.totalorder %v77, %v118
    %vm328 = vcmp.eq.s32.totalorder %v78, %v118
    %vm329 = vcmp.eq.s32.totalorder %v79, %v118
    %vm330 = vcmp.eq.s32.totalorder %v64, %v121
    %vm331 = vcmp.eq.s32.totalorder %v65, %v121
    %vm332 = vcmp.eq.s32.totalorder %v66, %v121
    %vm333 = vcmp.eq.s32.totalorder %v67, %v121
    %vm334 = vcmp.eq.s32.totalorder %v68, %v121
    %vm335 = vcmp.eq.s32.totalorder %v69, %v121
    %vm336 = vcmp.eq.s32.totalorder %v70, %v121
    %vm337 = vcmp.eq.s32.totalorder %v71, %v121
    %vm338 = vcmp.eq.s32.totalorder %v72, %v121
    %vm339 = vcmp.eq.s32.totalorder %v73, %v121
    %vm340 = vcmp.eq.s32.totalorder %v74, %v121
    %vm341 = vcmp.eq.s32.totalorder %v75, %v121
    %vm342 = vcmp.eq.s32.totalorder %v76, %v121
    %vm343 = vcmp.eq.s32.totalorder %v77, %v121
    %vm344 = vcmp.eq.s32.totalorder %v78, %v121
    %vm345 = vcmp.eq.s32.totalorder %v79, %v121
    %v346 = vsel %vm122, 1.0, 0.0
    %v347 = vsel %vm123, 1.0, 0.0
    %v348 = vsel %vm124, 1.0, 0.0
    %v349 = vsel %vm125, 1.0, 0.0
    %v350 = vsel %vm126, 1.0, 0.0
    %v351 = vsel %vm127, 1.0, 0.0
    %v352 = vsel %vm128, 1.0, 0.0
    %v353 = vsel %vm129, 1.0, 0.0
    %v354 = vsel %vm130, 1.0, 0.0
    %v355 = vsel %vm131, 1.0, 0.0
    %v356 = vsel %vm132, 1.0, 0.0
    %v357 = vsel %vm133, 1.0, 0.0
    %v358 = vsel %vm134, 1.0, 0.0
    %v359 = vsel %vm135, 1.0, 0.0
    %v360 = vsel %vm136, 1.0, 0.0
    %v361 = vsel %vm137, 1.0, 0.0
    %v362 = vsel %vm138, 1.0, 0.0
    %v363 = vsel %vm139, 1.0, 0.0
    %v364 = vsel %vm140, 1.0, 0.0
    %v365 = vsel %vm141, 1.0, 0.0
    %v366 = vsel %vm142, 1.0, 0.0
    %v367 = vsel %vm143, 1.0, 0.0
    %v368 = vsel %vm144, 1.0, 0.0
    %v369 = vsel %vm145, 1.0, 0.0
    %v370 = vsel %vm146, 1.0, 0.0
    %v371 = vsel %vm147, 1.0, 0.0
    %v372 = vsel %vm148, 1.0, 0.0
    %v373 = vsel %vm149, 1.0, 0.0
    %v374 = vsel %vm150, 1.0, 0.0
    %v375 = vsel %vm151, 1.0, 0.0
    %v376 = vsel %vm152, 1.0, 0.0
    %v377 = vsel %vm153, 1.0, 0.0
    %v378 = vsel %vm154, 1.0, 0.0
    %v379 = vsel %vm155, 1.0, 0.0
    %v380 = vsel %vm156, 1.0, 0.0
    %v381 = vsel %vm157, 1.0, 0.0
    %v382 = vsel %vm158, 1.0, 0.0
    %v383 = vsel %vm159, 1.0, 0.0
    %v384 = vsel %vm160, 1.0, 0.0
    %v385 = vsel %vm161, 1.0, 0.0
    %v386 = vsel %vm162, 1.0, 0.0
    %v387 = vsel %vm163, 1.0, 0.0
    %v388 = vsel %vm164, 1.0, 0.0
    %v389 = vsel %vm165, 1.0, 0.0
    %v390 = vsel %vm166, 1.0, 0.0
    %v391 = vsel %vm167, 1.0, 0.0
    %v392 = vsel %vm168, 1.0, 0.0
    %v393 = vsel %vm169, 1.0, 0.0
    %v394 = vsel %vm170, 1.0, 0.0
    %v395 = vsel %vm171, 1.0, 0.0
    %v396 = vsel %vm172, 1.0, 0.0
    %v397 = vsel %vm173, 1.0, 0.0
    %v398 = vsel %vm174, 1.0, 0.0
    %v399 = vsel %vm175, 1.0, 0.0
    %v400 = vsel %vm176, 1.0, 0.0
    %v401 = vsel %vm177, 1.0, 0.0
    %v402 = vsel %vm178, 1.0, 0.0
    %v403 = vsel %vm179, 1.0, 0.0
    %v404 = vsel %vm180, 1.0, 0.0
    %v405 = vsel %vm181, 1.0, 0.0
    %v406 = vsel %vm182, 1.0, 0.0
    %v407 = vsel %vm183, 1.0, 0.0
    %v408 = vsel %vm184, 1.0, 0.0
    %v409 = vsel %vm185, 1.0, 0.0
    %v410 = vsel %vm186, 1.0, 0.0
    %v411 = vsel %vm187, 1.0, 0.0
    %v412 = vsel %vm188, 1.0, 0.0
    %v413 = vsel %vm189, 1.0, 0.0
    %v414 = vsel %vm190, 1.0, 0.0
    %v415 = vsel %vm191, 1.0, 0.0
    %v416 = vsel %vm192, 1.0, 0.0
    %v417 = vsel %vm193, 1.0, 0.0
    %v418 = vsel %vm194, 1.0, 0.0
    %v419 = vsel %vm195, 1.0, 0.0
    %v420 = vsel %vm196, 1.0, 0.0
    %v421 = vsel %vm197, 1.0, 0.0
    %v422 = vsel %vm198, 1.0, 0.0
    %v423 = vsel %vm199, 1.0, 0.0
    %v424 = vsel %vm200, 1.0, 0.0
    %v425 = vsel %vm201, 1.0, 0.0
    %v426 = vsel %vm202, 1.0, 0.0
    %v427 = vsel %vm203, 1.0, 0.0
    %v428 = vsel %vm204, 1.0, 0.0
    %v429 = vsel %vm205, 1.0, 0.0
    %v430 = vsel %vm206, 1.0, 0.0
    %v431 = vsel %vm207, 1.0, 0.0
    %v432 = vsel %vm208, 1.0, 0.0
    %v433 = vsel %vm209, 1.0, 0.0
    %v434 = vsel %vm210, 1.0, 0.0
    %v435 = vsel %vm211, 1.0, 0.0
    %v436 = vsel %vm212, 1.0, 0.0
    %v437 = vsel %vm213, 1.0, 0.0
    %v438 = vsel %vm214, 1.0, 0.0
    %v439 = vsel %vm215, 1.0, 0.0
    %v440 = vsel %vm216, 1.0, 0.0
    %v441 = vsel %vm217, 1.0, 0.0
    %v442 = vsel %vm218, 1.0, 0.0
    %v443 = vsel %vm219, 1.0, 0.0
    %v444 = vsel %vm220, 1.0, 0.0
    %v445 = vsel %vm221, 1.0, 0.0
    %v446 = vsel %vm222, 1.0, 0.0
    %v447 = vsel %vm223, 1.0, 0.0
    %v448 = vsel %vm224, 1.0, 0.0
    %v449 = vsel %vm225, 1.0, 0.0
    %v450 = vsel %vm226, 1.0, 0.0
    %v451 = vsel %vm227, 1.0, 0.0
    %v452 = vsel %vm228, 1.0, 0.0
    %v453 = vsel %vm229, 1.0, 0.0
    %v454 = vsel %vm230, 1.0, 0.0
    %v455 = vsel %vm231, 1.0, 0.0
    %v456 = vsel %vm232, 1.0, 0.0
    %v457 = vsel %vm233, 1.0, 0.0
    %v458 = vsel %vm234, 1.0, 0.0
    %v459 = vsel %vm235, 1.0, 0.0
    %v460 = vsel %vm236, 1.0, 0.0
    %v461 = vsel %vm237, 1.0, 0.0
    %v462 = vsel %vm238, 1.0, 0.0
    %v463 = vsel %vm239, 1.0, 0.0
    %v464 = vsel %vm240, 1.0, 0.0
    %v465 = vsel %vm241, 1.0, 0.0
    %v466 = vsel %vm242, 1.0, 0.0
    %v467 = vsel %vm243, 1.0, 0.0
    %v468 = vsel %vm244, 1.0, 0.0
    %v469 = vsel %vm245, 1.0, 0.0
    %v470 = vsel %vm246, 1.0, 0.0
    %v471 = vsel %vm247, 1.0, 0.0
    %v472 = vsel %vm248, 1.0, 0.0
    %v473 = vsel %vm249, 1.0, 0.0
    %v474 = vsel %vm250, 1.0, 0.0
    %v475 = vsel %vm251, 1.0, 0.0
    %v476 = vsel %vm252, 1.0, 0.0
    %v477 = vsel %vm253, 1.0, 0.0
    %v478 = vsel %vm254, 1.0, 0.0
    %v479 = vsel %vm255, 1.0, 0.0
    %v480 = vsel %vm256, 1.0, 0.0
    %v481 = vsel %vm257, 1.0, 0.0
    %v482 = vsel %vm258, 1.0, 0.0
    %v483 = vsel %vm259, 1.0, 0.0
    %v484 = vsel %vm260, 1.0, 0.0
    %v485 = vsel %vm261, 1.0, 0.0
    %v486 = vsel %vm262, 1.0, 0.0
    %v487 = vsel %vm263, 1.0, 0.0
    %v488 = vsel %vm264, 1.0, 0.0
    %v489 = vsel %vm265, 1.0, 0.0
    %v490 = vsel %vm266, 1.0, 0.0
    %v491 = vsel %vm267, 1.0, 0.0
    %v492 = vsel %vm268, 1.0, 0.0
    %v493 = vsel %vm269, 1.0, 0.0
    %v494 = vsel %vm270, 1.0, 0.0
    %v495 = vsel %vm271, 1.0, 0.0
    %v496 = vsel %vm272, 1.0, 0.0
    %v497 = vsel %vm273, 1.0, 0.0
    %v498 = vsel %vm274, 1.0, 0.0
    %v499 = vsel %vm275, 1.0, 0.0
    %v500 = vsel %vm276, 1.0, 0.0
    %v501 = vsel %vm277, 1.0, 0.0
    %v502 = vsel %vm278, 1.0, 0.0
    %v503 = vsel %vm279, 1.0, 0.0
    %v504 = vsel %vm280, 1.0, 0.0
    %v505 = vsel %vm281, 1.0, 0.0
    %v506 = vsel %vm282, 1.0, 0.0
    %v507 = vsel %vm283, 1.0, 0.0
    %v508 = vsel %vm284, 1.0, 0.0
    %v509 = vsel %vm285, 1.0, 0.0
    %v510 = vsel %vm286, 1.0, 0.0
    %v511 = vsel %vm287, 1.0, 0.0
    %v512 = vsel %vm288, 1.0, 0.0
    %v513 = vsel %vm289, 1.0, 0.0
    %v514 = vsel %vm290, 1.0, 0.0
    %v515 = vsel %vm291, 1.0, 0.0
    %v516 = vsel %vm292, 1.0, 0.0
    %v517 = vsel %vm293, 1.0, 0.0
    %v518 = vsel %vm294, 1.0, 0.0
    %v519 = vsel %vm295, 1.0, 0.0
    %v520 = vsel %vm296, 1.0, 0.0
    %v521 = vsel %vm297, 1.0, 0.0
    %v522 = vsel %vm298, 1.0, 0.0
    %v523 = vsel %vm299, 1.0, 0.0
    %v524 = vsel %vm300, 1.0, 0.0
    %v525 = vsel %vm301, 1.0, 0.0
    %v526 = vsel %vm302, 1.0, 0.0
    %v527 = vsel %vm303, 1.0, 0.0
    %v528 = vsel %vm304, 1.0, 0.0
    %v529 = vsel %vm305, 1.0, 0.0
    %v530 = vsel %vm306, 1.0, 0.0
    %v531 = vsel %vm307, 1.0, 0.0
    %v532 = vsel %vm308, 1.0, 0.0
    %v533 = vsel %vm309, 1.0, 0.0
    %v534 = vsel %vm310, 1.0, 0.0
    %v535 = vsel %vm311, 1.0, 0.0
    %v536 = vsel %vm312, 1.0, 0.0
    %v537 = vsel %vm313, 1.0, 0.0
    %v538 = vsel %vm314, 1.0, 0.0
    %v539 = vsel %vm315, 1.0, 0.0
    %v540 = vsel %vm316, 1.0, 0.0
    %v541 = vsel %vm317, 1.0, 0.0
    %v542 = vsel %vm318, 1.0, 0.0
    %v543 = vsel %vm319, 1.0, 0.0
    %v544 = vsel %vm320, 1.0, 0.0
    %v545 = vsel %vm321, 1.0, 0.0
    %v546 = vsel %vm322, 1.0, 0.0
    %v547 = vsel %vm323, 1.0, 0.0
    %v548 = vsel %vm324, 1.0, 0.0
    %v549 = vsel %vm325, 1.0, 0.0
    %v550 = vsel %vm326, 1.0, 0.0
    %v551 = vsel %vm327, 1.0, 0.0
    %v552 = vsel %vm328, 1.0, 0.0
    %v553 = vsel %vm329, 1.0, 0.0
    %v554 = vsel %vm330, 1.0, 0.0
    %v555 = vsel %vm331, 1.0, 0.0
    %v556 = vsel %vm332, 1.0, 0.0
    %v557 = vsel %vm333, 1.0, 0.0
    %v558 = vsel %vm334, 1.0, 0.0
    %v559 = vsel %vm335, 1.0, 0.0
    %v560 = vsel %vm336, 1.0, 0.0
    %v561 = vsel %vm337, 1.0, 0.0
    %v562 = vsel %vm338, 1.0, 0.0
    %v563 = vsel %vm339, 1.0, 0.0
    %v564 = vsel %vm340, 1.0, 0.0
    %v565 = vsel %vm341, 1.0, 0.0
    %v566 = vsel %vm342, 1.0, 0.0
    %v567 = vsel %vm343, 1.0, 0.0
    %v568 = vsel %vm344, 1.0, 0.0
    %v569 = vsel %vm345, 1.0, 0.0
    %v570 = vpack.c.bf16 %v362, %v346
    %v571 = vpack.c.bf16 %v363, %v347
    %v572 = vpack.c.bf16 %v364, %v348
    %v573 = vpack.c.bf16 %v365, %v349
    %v574 = vpack.c.bf16 %v366, %v350
    %v575 = vpack.c.bf16 %v367, %v351
    %v576 = vpack.c.bf16 %v368, %v352
    %v577 = vpack.c.bf16 %v369, %v353
    %v578 = vpack.c.bf16 %v370, %v354
    %v579 = vpack.c.bf16 %v371, %v355
    %v580 = vpack.c.bf16 %v372, %v356
    %v581 = vpack.c.bf16 %v373, %v357
    %v582 = vpack.c.bf16 %v374, %v358
    %v583 = vpack.c.bf16 %v375, %v359
    %v584 = vpack.c.bf16 %v376, %v360
    %v585 = vpack.c.bf16 %v377, %v361
    %v586 = vpack.c.bf16 %v394, %v378
    %v587 = vpack.c.bf16 %v395, %v379
    %v588 = vpack.c.bf16 %v396, %v380
    %v589 = vpack.c.bf16 %v397, %v381
    %v590 = vpack.c.bf16 %v398, %v382
    %v591 = vpack.c.bf16 %v399, %v383
    %v592 = vpack.c.bf16 %v400, %v384
    %v593 = vpack.c.bf16 %v401, %v385
    %v594 = vpack.c.bf16 %v402, %v386
    %v595 = vpack.c.bf16 %v403, %v387
    %v596 = vpack.c.bf16 %v404, %v388
    %v597 = vpack.c.bf16 %v405, %v389
    %v598 = vpack.c.bf16 %v406, %v390
    %v599 = vpack.c.bf16 %v407, %v391
    %v600 = vpack.c.bf16 %v408, %v392
    %v601 = vpack.c.bf16 %v409, %v393
    %v602 = vpack.c.bf16 %v426, %v410
    %v603 = vpack.c.bf16 %v427, %v411
    %v604 = vpack.c.bf16 %v428, %v412
    %v605 = vpack.c.bf16 %v429, %v413
    %v606 = vpack.c.bf16 %v430, %v414
    %v607 = vpack.c.bf16 %v431, %v415
    %v608 = vpack.c.bf16 %v432, %v416
    %v609 = vpack.c.bf16 %v433, %v417
    %v610 = vpack.c.bf16 %v434, %v418
    %v611 = vpack.c.bf16 %v435, %v419
    %v612 = vpack.c.bf16 %v436, %v420
    %v613 = vpack.c.bf16 %v437, %v421
    %v614 = vpack.c.bf16 %v438, %v422
    %v615 = vpack.c.bf16 %v439, %v423
    %v616 = vpack.c.bf16 %v440, %v424
    %v617 = vpack.c.bf16 %v441, %v425
    %v618 = vpack.c.bf16 %v458, %v442
    %v619 = vpack.c.bf16 %v459, %v443
    %v620 = vpack.c.bf16 %v460, %v444
    %v621 = vpack.c.bf16 %v461, %v445
    %v622 = vpack.c.bf16 %v462, %v446
    %v623 = vpack.c.bf16 %v463, %v447
    %v624 = vpack.c.bf16 %v464, %v448
    %v625 = vpack.c.bf16 %v465, %v449
    %v626 = vpack.c.bf16 %v466, %v450
    %v627 = vpack.c.bf16 %v467, %v451
    %v628 = vpack.c.bf16 %v468, %v452
    %v629 = vpack.c.bf16 %v469, %v453
    %v630 = vpack.c.bf16 %v470, %v454
    %v631 = vpack.c.bf16 %v471, %v455
    %v632 = vpack.c.bf16 %v472, %v456
    %v633 = vpack.c.bf16 %v473, %v457
    %v634 = vpack.c.bf16 %v490, %v474
    %v635 = vpack.c.bf16 %v491, %v475
    %v636 = vpack.c.bf16 %v492, %v476
    %v637 = vpack.c.bf16 %v493, %v477
    %v638 = vpack.c.bf16 %v494, %v478
    %v639 = vpack.c.bf16 %v495, %v479
    %v640 = vpack.c.bf16 %v496, %v480
    %v641 = vpack.c.bf16 %v497, %v481
    %v642 = vpack.c.bf16 %v498, %v482
    %v643 = vpack.c.bf16 %v499, %v483
    %v644 = vpack.c.bf16 %v500, %v484
    %v645 = vpack.c.bf16 %v501, %v485
    %v646 = vpack.c.bf16 %v502, %v486
    %v647 = vpack.c.bf16 %v503, %v487
    %v648 = vpack.c.bf16 %v504, %v488
    %v649 = vpack.c.bf16 %v505, %v489
    %v650 = vpack.c.bf16 %v522, %v506
    %v651 = vpack.c.bf16 %v523, %v507
    %v652 = vpack.c.bf16 %v524, %v508
    %v653 = vpack.c.bf16 %v525, %v509
    %v654 = vpack.c.bf16 %v526, %v510
    %v655 = vpack.c.bf16 %v527, %v511
    %v656 = vpack.c.bf16 %v528, %v512
    %v657 = vpack.c.bf16 %v529, %v513
    %v658 = vpack.c.bf16 %v530, %v514
    %v659 = vpack.c.bf16 %v531, %v515
    %v660 = vpack.c.bf16 %v532, %v516
    %v661 = vpack.c.bf16 %v533, %v517
    %v662 = vpack.c.bf16 %v534, %v518
    %v663 = vpack.c.bf16 %v535, %v519
    %v664 = vpack.c.bf16 %v536, %v520
    %v665 = vpack.c.bf16 %v537, %v521
    %v666 = vpack.c.bf16 %v554, %v538
    %v667 = vpack.c.bf16 %v555, %v539
    %v668 = vpack.c.bf16 %v556, %v540
    %v669 = vpack.c.bf16 %v557, %v541
    %v670 = vpack.c.bf16 %v558, %v542
    %v671 = vpack.c.bf16 %v559, %v543
    %v672 = vpack.c.bf16 %v560, %v544
    %v673 = vpack.c.bf16 %v561, %v545
    %v674 = vpack.c.bf16 %v562, %v546
    %v675 = vpack.c.bf16 %v563, %v547
    %v676 = vpack.c.bf16 %v564, %v548
    %v677 = vpack.c.bf16 %v565, %v549
    %v678 = vpack.c.bf16 %v566, %v550
    %v679 = vpack.c.bf16 %v567, %v551
    %v680 = vpack.c.bf16 %v568, %v552
    %v681 = vpack.c.bf16 %v569, %v553
    %v682 = vld [vmem:[%s1] sm:$0xf]
    %v683 = vld [vmem:[%s1 + $0x4] sm:$0xf]
    %v684 = vld [vmem:[%s1 + $0x8] sm:$0xf]
    %v685 = vld [vmem:[%s1 + $0xc] sm:$0xf]
    %v686 = vld [vmem:[%s1 + $0x10] sm:$0xf]
    %v687 = vld [vmem:[%s1 + $0x14] sm:$0xf]
    %v688 = vld [vmem:[%s1 + $0x18] sm:$0xf]
    %v689 = vld [vmem:[%s1 + $0x1c] sm:$0xf]
    %v690 = vld [vmem:[%s1 + $0x20] sm:$0xf]
    %v691 = vld [vmem:[%s1 + $0x24] sm:$0xf]
    %v692 = vld [vmem:[%s1 + $0x28] sm:$0xf]
    %v693 = vld [vmem:[%s1 + $0x2c] sm:$0xf]
    %v694 = vld [vmem:[%s1 + $0x30] sm:$0xf]
    %v695 = vld [vmem:[%s1 + $0x34] sm:$0xf]
    %v696 = vld [vmem:[%s1 + $0x38] sm:$0xf]
    %v697 = vld [vmem:[%s1 + $0x3c] sm:$0xf]
    %v698 = vld [vmem:[%s1 + $0x40] sm:$0xf]
    %v699 = vld [vmem:[%s1 + $0x44] sm:$0xf]
    %v700 = vld [vmem:[%s1 + $0x48] sm:$0xf]
    %v701 = vld [vmem:[%s1 + $0x4c] sm:$0xf]
    %v702 = vld [vmem:[%s1 + $0x50] sm:$0xf]
    %v703 = vld [vmem:[%s1 + $0x54] sm:$0xf]
    %v704 = vld [vmem:[%s1 + $0x58] sm:$0xf]
    %v705 = vld [vmem:[%s1 + $0x5c] sm:$0xf]
    %v706 = vld [vmem:[%s1 + $0x60] sm:$0xf]
    %v707 = vld [vmem:[%s1 + $0x64] sm:$0xf]
    %v708 = vld [vmem:[%s1 + $0x68] sm:$0xf]
    %v709 = vld [vmem:[%s1 + $0x6c] sm:$0xf]
    %v710 = vld [vmem:[%s1 + $0x70] sm:$0xf]
    %v711 = vld [vmem:[%s1 + $0x74] sm:$0xf]
    %v712 = vld [vmem:[%s1 + $0x78] sm:$0xf]
    %v713 = vld [vmem:[%s1 + $0x7c] sm:$0xf]
    %v714 = vld [vmem:[%s1 + $0x80] sm:$0xf]
    %v715 = vld [vmem:[%s1 + $0x84] sm:$0xf]
    %v716 = vld [vmem:[%s1 + $0x88] sm:$0xf]
    %v717 = vld [vmem:[%s1 + $0x8c] sm:$0xf]
    %v718 = vld [vmem:[%s1 + $0x90] sm:$0xf]
    %v719 = vld [vmem:[%s1 + $0x94] sm:$0xf]
    %v720 = vld [vmem:[%s1 + $0x98] sm:$0xf]
    %v721 = vld [vmem:[%s1 + $0x9c] sm:$0xf]
    %v722 = vld [vmem:[%s1 + $0xa0] sm:$0xf]
    %v723 = vld [vmem:[%s1 + $0xa4] sm:$0xf]
    %v724 = vld [vmem:[%s1 + $0xa8] sm:$0xf]
    %v725 = vld [vmem:[%s1 + $0xac] sm:$0xf]
    %v726 = vld [vmem:[%s1 + $0xb0] sm:$0xf]
    %v727 = vld [vmem:[%s1 + $0xb4] sm:$0xf]
    %v728 = vld [vmem:[%s1 + $0xb8] sm:$0xf]
    %v729 = vld [vmem:[%s1 + $0xbc] sm:$0xf]
    %v730 = vld [vmem:[%s1 + $0xc0] sm:$0xf]
    %v731 = vld [vmem:[%s1 + $0xc4] sm:$0xf]
    %v732 = vld [vmem:[%s1 + $0xc8] sm:$0xf]
    %v733 = vld [vmem:[%s1 + $0xcc] sm:$0xf]
    %v734 = vld [vmem:[%s1 + $0xd0] sm:$0xf]
    %v735 = vld [vmem:[%s1 + $0xd4] sm:$0xf]
    %v736 = vld [vmem:[%s1 + $0xd8] sm:$0xf]
    %v737 = vld [vmem:[%s1 + $0xdc] sm:$0xf]
    %v738 = vld [vmem:[%s1 + $0xe0] sm:$0xf]
    %v739 = vld [vmem:[%s1 + $0xe4] sm:$0xf]
    %v740 = vld [vmem:[%s1 + $0xe8] sm:$0xf]
    %v741 = vld [vmem:[%s1 + $0xec] sm:$0xf]
    %v742 = vld [vmem:[%s1 + $0xf0] sm:$0xf]
    %v743 = vld [vmem:[%s1 + $0xf4] sm:$0xf]
    %v744 = vld [vmem:[%s1 + $0xf8] sm:$0xf]
    %v745 = vld [vmem:[%s1 + $0xfc] sm:$0xf]
    %v746 = vld [vmem:[%s1 + $0x100] sm:$0xf]
    %v747 = vld [vmem:[%s1 + $0x104] sm:$0xf]
    %v748 = vld [vmem:[%s1 + $0x108] sm:$0xf]
    %v749 = vld [vmem:[%s1 + $0x10c] sm:$0xf]
    %v750 = vld [vmem:[%s1 + $0x110] sm:$0xf]
    %v751 = vld [vmem:[%s1 + $0x114] sm:$0xf]
    %v752 = vld [vmem:[%s1 + $0x118] sm:$0xf]
    %v753 = vld [vmem:[%s1 + $0x11c] sm:$0xf]
    %v754 = vld [vmem:[%s1 + $0x120] sm:$0xf]
    %v755 = vld [vmem:[%s1 + $0x124] sm:$0xf]
    %v756 = vld [vmem:[%s1 + $0x128] sm:$0xf]
    %v757 = vld [vmem:[%s1 + $0x12c] sm:$0xf]
    %v758 = vld [vmem:[%s1 + $0x130] sm:$0xf]
    %v759 = vld [vmem:[%s1 + $0x134] sm:$0xf]
    %v760 = vld [vmem:[%s1 + $0x138] sm:$0xf]
    %v761 = vld [vmem:[%s1 + $0x13c] sm:$0xf]
    %v762 = vld [vmem:[%s1 + $0x140] sm:$0xf]
    %v763 = vld [vmem:[%s1 + $0x144] sm:$0xf]
    %v764 = vld [vmem:[%s1 + $0x148] sm:$0xf]
    %v765 = vld [vmem:[%s1 + $0x14c] sm:$0xf]
    %v766 = vld [vmem:[%s1 + $0x150] sm:$0xf]
    %v767 = vld [vmem:[%s1 + $0x154] sm:$0xf]
    %v768 = vld [vmem:[%s1 + $0x158] sm:$0xf]
    %v769 = vld [vmem:[%s1 + $0x15c] sm:$0xf]
    %v770 = vld [vmem:[%s1 + $0x160] sm:$0xf]
    %v771 = vld [vmem:[%s1 + $0x164] sm:$0xf]
    %v772 = vld [vmem:[%s1 + $0x168] sm:$0xf]
    %v773 = vld [vmem:[%s1 + $0x16c] sm:$0xf]
    %v774 = vld [vmem:[%s1 + $0x170] sm:$0xf]
    %v775 = vld [vmem:[%s1 + $0x174] sm:$0xf]
    %v776 = vld [vmem:[%s1 + $0x178] sm:$0xf]
    %v777 = vld [vmem:[%s1 + $0x17c] sm:$0xf]
    %v778 = vld [vmem:[%s1 + $0x180] sm:$0xf]
    %v779 = vld [vmem:[%s1 + $0x184] sm:$0xf]
    %v780 = vld [vmem:[%s1 + $0x188] sm:$0xf]
    %v781 = vld [vmem:[%s1 + $0x18c] sm:$0xf]
    %v782 = vld [vmem:[%s1 + $0x190] sm:$0xf]
    %v783 = vld [vmem:[%s1 + $0x194] sm:$0xf]
    %v784 = vld [vmem:[%s1 + $0x198] sm:$0xf]
    %v785 = vld [vmem:[%s1 + $0x19c] sm:$0xf]
    %v786 = vld [vmem:[%s1 + $0x1a0] sm:$0xf]
    %v787 = vld [vmem:[%s1 + $0x1a4] sm:$0xf]
    %v788 = vld [vmem:[%s1 + $0x1a8] sm:$0xf]
    %v789 = vld [vmem:[%s1 + $0x1ac] sm:$0xf]
    %v790 = vld [vmem:[%s1 + $0x1b0] sm:$0xf]
    %v791 = vld [vmem:[%s1 + $0x1b4] sm:$0xf]
    %v792 = vld [vmem:[%s1 + $0x1b8] sm:$0xf]
    %v793 = vld [vmem:[%s1 + $0x1bc] sm:$0xf]
    %v794 = vld [vmem:[%s1 + $0x1c0] sm:$0xf]
    %v795 = vld [vmem:[%s1 + $0x1c4] sm:$0xf]
    %v796 = vld [vmem:[%s1 + $0x1c8] sm:$0xf]
    %v797 = vld [vmem:[%s1 + $0x1cc] sm:$0xf]
    %v798 = vld [vmem:[%s1 + $0x1d0] sm:$0xf]
    %v799 = vld [vmem:[%s1 + $0x1d4] sm:$0xf]
    %v800 = vld [vmem:[%s1 + $0x1d8] sm:$0xf]
    %v801 = vld [vmem:[%s1 + $0x1dc] sm:$0xf]
    %v802 = vld [vmem:[%s1 + $0x1e0] sm:$0xf]
    %v803 = vld [vmem:[%s1 + $0x1e4] sm:$0xf]
    %v804 = vld [vmem:[%s1 + $0x1e8] sm:$0xf]
    %v805 = vld [vmem:[%s1 + $0x1ec] sm:$0xf]
    %v806 = vld [vmem:[%s1 + $0x1f0] sm:$0xf]
    %v807 = vld [vmem:[%s1 + $0x1f4] sm:$0xf]
    %v808 = vld [vmem:[%s1 + $0x1f8] sm:$0xf]
    %v809 = vld [vmem:[%s1 + $0x1fc] sm:$0xf]
    %v810 = vld [vmem:[%s1 + $0x200] sm:$0xf]
    %v811 = vld [vmem:[%s1 + $0x204] sm:$0xf]
    %v812 = vld [vmem:[%s1 + $0x208] sm:$0xf]
    %v813 = vld [vmem:[%s1 + $0x20c] sm:$0xf]
    %v814 = vld [vmem:[%s1 + $0x210] sm:$0xf]
    %v815 = vld [vmem:[%s1 + $0x214] sm:$0xf]
    %v816 = vld [vmem:[%s1 + $0x218] sm:$0xf]
    %v817 = vld [vmem:[%s1 + $0x21c] sm:$0xf]
    %v818 = vld [vmem:[%s1 + $0x220] sm:$0xf]
    %v819 = vld [vmem:[%s1 + $0x224] sm:$0xf]
    %v820 = vld [vmem:[%s1 + $0x228] sm:$0xf]
    %v821 = vld [vmem:[%s1 + $0x22c] sm:$0xf]
    %v822 = vld [vmem:[%s1 + $0x230] sm:$0xf]
    %v823 = vld [vmem:[%s1 + $0x234] sm:$0xf]
    %v824 = vld [vmem:[%s1 + $0x238] sm:$0xf]
    %v825 = vld [vmem:[%s1 + $0x23c] sm:$0xf]
    %v826 = vld [vmem:[%s1 + $0x240] sm:$0xf]
    %v827 = vld [vmem:[%s1 + $0x244] sm:$0xf]
    %v828 = vld [vmem:[%s1 + $0x248] sm:$0xf]
    %v829 = vld [vmem:[%s1 + $0x24c] sm:$0xf]
    %v830 = vld [vmem:[%s1 + $0x250] sm:$0xf]
    %v831 = vld [vmem:[%s1 + $0x254] sm:$0xf]
    %v832 = vld [vmem:[%s1 + $0x258] sm:$0xf]
    %v833 = vld [vmem:[%s1 + $0x25c] sm:$0xf]
    %v834 = vld [vmem:[%s1 + $0x260] sm:$0xf]
    %v835 = vld [vmem:[%s1 + $0x264] sm:$0xf]
    %v836 = vld [vmem:[%s1 + $0x268] sm:$0xf]
    %v837 = vld [vmem:[%s1 + $0x26c] sm:$0xf]
    %v838 = vld [vmem:[%s1 + $0x270] sm:$0xf]
    %v839 = vld [vmem:[%s1 + $0x274] sm:$0xf]
    %v840 = vld [vmem:[%s1 + $0x278] sm:$0xf]
    %v841 = vld [vmem:[%s1 + $0x27c] sm:$0xf]
    %v842 = vld [vmem:[%s1 + $0x280] sm:$0xf]
    %v843 = vld [vmem:[%s1 + $0x284] sm:$0xf]
    %v844 = vld [vmem:[%s1 + $0x288] sm:$0xf]
    %v845 = vld [vmem:[%s1 + $0x28c] sm:$0xf]
    %v846 = vld [vmem:[%s1 + $0x290] sm:$0xf]
    %v847 = vld [vmem:[%s1 + $0x294] sm:$0xf]
    %v848 = vld [vmem:[%s1 + $0x298] sm:$0xf]
    %v849 = vld [vmem:[%s1 + $0x29c] sm:$0xf]
    %v850 = vld [vmem:[%s1 + $0x2a0] sm:$0xf]
    %v851 = vld [vmem:[%s1 + $0x2a4] sm:$0xf]
    %v852 = vld [vmem:[%s1 + $0x2a8] sm:$0xf]
    %v853 = vld [vmem:[%s1 + $0x2ac] sm:$0xf]
    %v854 = vld [vmem:[%s1 + $0x2b0] sm:$0xf]
    %v855 = vld [vmem:[%s1 + $0x2b4] sm:$0xf]
    %v856 = vld [vmem:[%s1 + $0x2b8] sm:$0xf]
    %v857 = vld [vmem:[%s1 + $0x2bc] sm:$0xf]
    %v858 = vld [vmem:[%s1 + $0x2c0] sm:$0xf]
    %v859 = vld [vmem:[%s1 + $0x2c4] sm:$0xf]
    %v860 = vld [vmem:[%s1 + $0x2c8] sm:$0xf]
    %v861 = vld [vmem:[%s1 + $0x2cc] sm:$0xf]
    %v862 = vld [vmem:[%s1 + $0x2d0] sm:$0xf]
    %v863 = vld [vmem:[%s1 + $0x2d4] sm:$0xf]
    %v864 = vld [vmem:[%s1 + $0x2d8] sm:$0xf]
    %v865 = vld [vmem:[%s1 + $0x2dc] sm:$0xf]
    %v866 = vld [vmem:[%s1 + $0x2e0] sm:$0xf]
    %v867 = vld [vmem:[%s1 + $0x2e4] sm:$0xf]
    %v868 = vld [vmem:[%s1 + $0x2e8] sm:$0xf]
    %v869 = vld [vmem:[%s1 + $0x2ec] sm:$0xf]
    %v870 = vld [vmem:[%s1 + $0x2f0] sm:$0xf]
    %v871 = vld [vmem:[%s1 + $0x2f4] sm:$0xf]
    %v872 = vld [vmem:[%s1 + $0x2f8] sm:$0xf]
    %v873 = vld [vmem:[%s1 + $0x2fc] sm:$0xf]
    %v874 = vld [vmem:[%s1 + $0x300] sm:$0xf]
    %v875 = vld [vmem:[%s1 + $0x304] sm:$0xf]
    %v876 = vld [vmem:[%s1 + $0x308] sm:$0xf]
    %v877 = vld [vmem:[%s1 + $0x30c] sm:$0xf]
    %v878 = vld [vmem:[%s1 + $0x310] sm:$0xf]
    %v879 = vld [vmem:[%s1 + $0x314] sm:$0xf]
    %v880 = vld [vmem:[%s1 + $0x318] sm:$0xf]
    %v881 = vld [vmem:[%s1 + $0x31c] sm:$0xf]
    %v882 = vld [vmem:[%s1 + $0x320] sm:$0xf]
    %v883 = vld [vmem:[%s1 + $0x324] sm:$0xf]
    %v884 = vld [vmem:[%s1 + $0x328] sm:$0xf]
    %v885 = vld [vmem:[%s1 + $0x32c] sm:$0xf]
    %v886 = vld [vmem:[%s1 + $0x330] sm:$0xf]
    %v887 = vld [vmem:[%s1 + $0x334] sm:$0xf]
    %v888 = vld [vmem:[%s1 + $0x338] sm:$0xf]
    %v889 = vld [vmem:[%s1 + $0x33c] sm:$0xf]
    %v890 = vld [vmem:[%s1 + $0x340] sm:$0xf]
    %v891 = vld [vmem:[%s1 + $0x344] sm:$0xf]
    %v892 = vld [vmem:[%s1 + $0x348] sm:$0xf]
    %v893 = vld [vmem:[%s1 + $0x34c] sm:$0xf]
    %v894 = vld [vmem:[%s1 + $0x350] sm:$0xf]
    %v895 = vld [vmem:[%s1 + $0x354] sm:$0xf]
    %v896 = vld [vmem:[%s1 + $0x358] sm:$0xf]
    %v897 = vld [vmem:[%s1 + $0x35c] sm:$0xf]
    %v898 = vld [vmem:[%s1 + $0x360] sm:$0xf]
    %v899 = vld [vmem:[%s1 + $0x364] sm:$0xf]
    %v900 = vld [vmem:[%s1 + $0x368] sm:$0xf]
    %v901 = vld [vmem:[%s1 + $0x36c] sm:$0xf]
    %v902 = vld [vmem:[%s1 + $0x370] sm:$0xf]
    %v903 = vld [vmem:[%s1 + $0x374] sm:$0xf]
    %v904 = vld [vmem:[%s1 + $0x378] sm:$0xf]
    %v905 = vld [vmem:[%s1 + $0x37c] sm:$0xf]
    %v906 = vld [vmem:[%s1 + $0x380] sm:$0xf]
    %v907 = vld [vmem:[%s1 + $0x384] sm:$0xf]
    %v908 = vld [vmem:[%s1 + $0x388] sm:$0xf]
    %v909 = vld [vmem:[%s1 + $0x38c] sm:$0xf]
    %v910 = vld [vmem:[%s1 + $0x390] sm:$0xf]
    %v911 = vld [vmem:[%s1 + $0x394] sm:$0xf]
    %v912 = vld [vmem:[%s1 + $0x398] sm:$0xf]
    %v913 = vld [vmem:[%s1 + $0x39c] sm:$0xf]
    %v914 = vld [vmem:[%s1 + $0x3a0] sm:$0xf]
    %v915 = vld [vmem:[%s1 + $0x3a4] sm:$0xf]
    %v916 = vld [vmem:[%s1 + $0x3a8] sm:$0xf]
    %v917 = vld [vmem:[%s1 + $0x3ac] sm:$0xf]
    %v918 = vld [vmem:[%s1 + $0x3b0] sm:$0xf]
    %v919 = vld [vmem:[%s1 + $0x3b4] sm:$0xf]
    %v920 = vld [vmem:[%s1 + $0x3b8] sm:$0xf]
    %v921 = vld [vmem:[%s1 + $0x3bc] sm:$0xf]
    %v922 = vld [vmem:[%s1 + $0x3c0] sm:$0xf]
    %v923 = vld [vmem:[%s1 + $0x3c4] sm:$0xf]
    %v924 = vld [vmem:[%s1 + $0x3c8] sm:$0xf]
    %v925 = vld [vmem:[%s1 + $0x3cc] sm:$0xf]
    %v926 = vld [vmem:[%s1 + $0x3d0] sm:$0xf]
    %v927 = vld [vmem:[%s1 + $0x3d4] sm:$0xf]
    %v928 = vld [vmem:[%s1 + $0x3d8] sm:$0xf]
    %v929 = vld [vmem:[%s1 + $0x3dc] sm:$0xf]
    %v930 = vld [vmem:[%s1 + $0x3e0] sm:$0xf]
    %v931 = vld [vmem:[%s1 + $0x3e4] sm:$0xf]
    %v932 = vld [vmem:[%s1 + $0x3e8] sm:$0xf]
    %v933 = vld [vmem:[%s1 + $0x3ec] sm:$0xf]
    %v934 = vld [vmem:[%s1 + $0x3f0] sm:$0xf]
    %v935 = vld [vmem:[%s1 + $0x3f4] sm:$0xf]
    %v936 = vld [vmem:[%s1 + $0x3f8] sm:$0xf]
    %v937 = vld [vmem:[%s1 + $0x3fc] sm:$0xf]
    %v1194 = vunpack.c.l.b16 %v682
    %v1195 = vunpack.c.l.b16 %v683
    %v1196 = vunpack.c.l.b16 %v684
    %v1197 = vunpack.c.l.b16 %v685
    %v1198 = vunpack.c.l.b16 %v686
    %v1199 = vunpack.c.l.b16 %v687
    %v1200 = vunpack.c.l.b16 %v688
    %v1201 = vunpack.c.l.b16 %v689
    %v1202 = vunpack.c.l.b16 %v690
    %v1203 = vunpack.c.l.b16 %v691
    %v1204 = vunpack.c.l.b16 %v692
    %v1205 = vunpack.c.l.b16 %v693
    %v1206 = vunpack.c.l.b16 %v694
    %v1207 = vunpack.c.l.b16 %v695
    %v1208 = vunpack.c.l.b16 %v696
    %v1209 = vunpack.c.l.b16 %v697
    %v1210 = vunpack.c.l.b16 %v698
    %v1211 = vunpack.c.l.b16 %v699
    %v1212 = vunpack.c.l.b16 %v700
    %v1213 = vunpack.c.l.b16 %v701
    %v1214 = vunpack.c.l.b16 %v702
    %v1215 = vunpack.c.l.b16 %v703
    %v1216 = vunpack.c.l.b16 %v704
    %v1217 = vunpack.c.l.b16 %v705
    %v1218 = vunpack.c.l.b16 %v706
    %v1219 = vunpack.c.l.b16 %v707
    %v1220 = vunpack.c.l.b16 %v708
    %v1221 = vunpack.c.l.b16 %v709
    %v1222 = vunpack.c.l.b16 %v710
    %v1223 = vunpack.c.l.b16 %v711
    %v1224 = vunpack.c.l.b16 %v712
    %v1225 = vunpack.c.l.b16 %v713
    %v1226 = vunpack.c.l.b16 %v714
    %v1227 = vunpack.c.l.b16 %v715
    %v1228 = vunpack.c.l.b16 %v716
    %v1229 = vunpack.c.l.b16 %v717
    %v1230 = vunpack.c.l.b16 %v718
    %v1231 = vunpack.c.l.b16 %v719
    %v1232 = vunpack.c.l.b16 %v720
    %v1233 = vunpack.c.l.b16 %v721
    %v1234 = vunpack.c.l.b16 %v722
    %v1235 = vunpack.c.l.b16 %v723
    %v1236 = vunpack.c.l.b16 %v724
    %v1237 = vunpack.c.l.b16 %v725
    %v1238 = vunpack.c.l.b16 %v726
    %v1239 = vunpack.c.l.b16 %v727
    %v1240 = vunpack.c.l.b16 %v728
    %v1241 = vunpack.c.l.b16 %v729
    %v1242 = vunpack.c.l.b16 %v730
    %v1243 = vunpack.c.l.b16 %v731
    %v1244 = vunpack.c.l.b16 %v732
    %v1245 = vunpack.c.l.b16 %v733
    %v1246 = vunpack.c.l.b16 %v734
    %v1247 = vunpack.c.l.b16 %v735
    %v1248 = vunpack.c.l.b16 %v736
    %v1249 = vunpack.c.l.b16 %v737
    %v1250 = vunpack.c.l.b16 %v738
    %v1251 = vunpack.c.l.b16 %v739
    %v1252 = vunpack.c.l.b16 %v740
    %v1253 = vunpack.c.l.b16 %v741
    %v1254 = vunpack.c.l.b16 %v742
    %v1255 = vunpack.c.l.b16 %v743
    %v1256 = vunpack.c.l.b16 %v744
    %v1257 = vunpack.c.l.b16 %v745
    %v1258 = vunpack.c.l.b16 %v746
    %v1259 = vunpack.c.l.b16 %v747
    %v1260 = vunpack.c.l.b16 %v748
    %v1261 = vunpack.c.l.b16 %v749
    %v1262 = vunpack.c.l.b16 %v750
    %v1263 = vunpack.c.l.b16 %v751
    %v1264 = vunpack.c.l.b16 %v752
    %v1265 = vunpack.c.l.b16 %v753
    %v1266 = vunpack.c.l.b16 %v754
    %v1267 = vunpack.c.l.b16 %v755
    %v1268 = vunpack.c.l.b16 %v756
    %v1269 = vunpack.c.l.b16 %v757
    %v1270 = vunpack.c.l.b16 %v758
    %v1271 = vunpack.c.l.b16 %v759
    %v1272 = vunpack.c.l.b16 %v760
    %v1273 = vunpack.c.l.b16 %v761
    %v1274 = vunpack.c.l.b16 %v762
    %v1275 = vunpack.c.l.b16 %v763
    %v1276 = vunpack.c.l.b16 %v764
    %v1277 = vunpack.c.l.b16 %v765
    %v1278 = vunpack.c.l.b16 %v766
    %v1279 = vunpack.c.l.b16 %v767
    %v1280 = vunpack.c.l.b16 %v768
    %v1281 = vunpack.c.l.b16 %v769
    %v1282 = vunpack.c.l.b16 %v770
    %v1283 = vunpack.c.l.b16 %v771
    %v1284 = vunpack.c.l.b16 %v772
    %v1285 = vunpack.c.l.b16 %v773
    %v1286 = vunpack.c.l.b16 %v774
    %v1287 = vunpack.c.l.b16 %v775
    %v1288 = vunpack.c.l.b16 %v776
    %v1289 = vunpack.c.l.b16 %v777
    %v1290 = vunpack.c.l.b16 %v778
    %v1291 = vunpack.c.l.b16 %v779
    %v1292 = vunpack.c.l.b16 %v780
    %v1293 = vunpack.c.l.b16 %v781
    %v1294 = vunpack.c.l.b16 %v782
    %v1295 = vunpack.c.l.b16 %v783
    %v1296 = vunpack.c.l.b16 %v784
    %v1297 = vunpack.c.l.b16 %v785
    %v1298 = vunpack.c.l.b16 %v786
    %v1299 = vunpack.c.l.b16 %v787
    %v1300 = vunpack.c.l.b16 %v788
    %v1301 = vunpack.c.l.b16 %v789
    %v1302 = vunpack.c.l.b16 %v790
    %v1303 = vunpack.c.l.b16 %v791
    %v1304 = vunpack.c.l.b16 %v792
    %v1305 = vunpack.c.l.b16 %v793
    %v1306 = vunpack.c.l.b16 %v794
    %v1307 = vunpack.c.l.b16 %v795
    %v1308 = vunpack.c.l.b16 %v796
    %v1309 = vunpack.c.l.b16 %v797
    %v1310 = vunpack.c.l.b16 %v798
    %v1311 = vunpack.c.l.b16 %v799
    %v1312 = vunpack.c.l.b16 %v800
    %v1313 = vunpack.c.l.b16 %v801
    %v1314 = vunpack.c.l.b16 %v802
    %v1315 = vunpack.c.l.b16 %v803
    %v1316 = vunpack.c.l.b16 %v804
    %v1317 = vunpack.c.l.b16 %v805
    %v1318 = vunpack.c.l.b16 %v806
    %v1319 = vunpack.c.l.b16 %v807
    %v1320 = vunpack.c.l.b16 %v808
    %v1321 = vunpack.c.l.b16 %v809
    %v1322 = vunpack.c.l.b16 %v810
    %v1323 = vunpack.c.l.b16 %v811
    %v1324 = vunpack.c.l.b16 %v812
    %v1325 = vunpack.c.l.b16 %v813
    %v1326 = vunpack.c.l.b16 %v814
    %v1327 = vunpack.c.l.b16 %v815
    %v1328 = vunpack.c.l.b16 %v816
    %v1329 = vunpack.c.l.b16 %v817
    %v1330 = vunpack.c.l.b16 %v818
    %v1331 = vunpack.c.l.b16 %v819
    %v1332 = vunpack.c.l.b16 %v820
    %v1333 = vunpack.c.l.b16 %v821
    %v1334 = vunpack.c.l.b16 %v822
    %v1335 = vunpack.c.l.b16 %v823
    %v1336 = vunpack.c.l.b16 %v824
    %v1337 = vunpack.c.l.b16 %v825
    %v1338 = vunpack.c.l.b16 %v826
    %v1339 = vunpack.c.l.b16 %v827
    %v1340 = vunpack.c.l.b16 %v828
    %v1341 = vunpack.c.l.b16 %v829
    %v1342 = vunpack.c.l.b16 %v830
    %v1343 = vunpack.c.l.b16 %v831
    %v1344 = vunpack.c.l.b16 %v832
    %v1345 = vunpack.c.l.b16 %v833
    %v1346 = vunpack.c.l.b16 %v834
    %v1347 = vunpack.c.l.b16 %v835
    %v1348 = vunpack.c.l.b16 %v836
    %v1349 = vunpack.c.l.b16 %v837
    %v1350 = vunpack.c.l.b16 %v838
    %v1351 = vunpack.c.l.b16 %v839
    %v1352 = vunpack.c.l.b16 %v840
    %v1353 = vunpack.c.l.b16 %v841
    %v1354 = vunpack.c.l.b16 %v842
    %v1355 = vunpack.c.l.b16 %v843
    %v1356 = vunpack.c.l.b16 %v844
    %v1357 = vunpack.c.l.b16 %v845
    %v1358 = vunpack.c.l.b16 %v846
    %v1359 = vunpack.c.l.b16 %v847
    %v1360 = vunpack.c.l.b16 %v848
    %v1361 = vunpack.c.l.b16 %v849
    %v1362 = vunpack.c.l.b16 %v850
    %v1363 = vunpack.c.l.b16 %v851
    %v1364 = vunpack.c.l.b16 %v852
    %v1365 = vunpack.c.l.b16 %v853
    %v1366 = vunpack.c.l.b16 %v854
    %v1367 = vunpack.c.l.b16 %v855
    %v1368 = vunpack.c.l.b16 %v856
    %v1369 = vunpack.c.l.b16 %v857
    %v1370 = vunpack.c.l.b16 %v858
    %v1371 = vunpack.c.l.b16 %v859
    %v1372 = vunpack.c.l.b16 %v860
    %v1373 = vunpack.c.l.b16 %v861
    %v1374 = vunpack.c.l.b16 %v862
    %v1375 = vunpack.c.l.b16 %v863
    %v1376 = vunpack.c.l.b16 %v864
    %v1377 = vunpack.c.l.b16 %v865
    %v1378 = vunpack.c.l.b16 %v866
    %v1379 = vunpack.c.l.b16 %v867
    %v1380 = vunpack.c.l.b16 %v868
    %v1381 = vunpack.c.l.b16 %v869
    %v1382 = vunpack.c.l.b16 %v870
    %v1383 = vunpack.c.l.b16 %v871
    %v1384 = vunpack.c.l.b16 %v872
    %v1385 = vunpack.c.l.b16 %v873
    %v1386 = vunpack.c.l.b16 %v874
    %v1387 = vunpack.c.l.b16 %v875
    %v1388 = vunpack.c.l.b16 %v876
    %v1389 = vunpack.c.l.b16 %v877
    %v1390 = vunpack.c.l.b16 %v878
    %v1391 = vunpack.c.l.b16 %v879
    %v1392 = vunpack.c.l.b16 %v880
    %v1393 = vunpack.c.l.b16 %v881
    %v1394 = vunpack.c.l.b16 %v882
    %v1395 = vunpack.c.l.b16 %v883
    %v1396 = vunpack.c.l.b16 %v884
    %v1397 = vunpack.c.l.b16 %v885
    %v1398 = vunpack.c.l.b16 %v886
    %v1399 = vunpack.c.l.b16 %v887
    %v1400 = vunpack.c.l.b16 %v888
    %v1401 = vunpack.c.l.b16 %v889
    %v1402 = vunpack.c.l.b16 %v890
    %v1403 = vunpack.c.l.b16 %v891
    %v1404 = vunpack.c.l.b16 %v892
    %v1405 = vunpack.c.l.b16 %v893
    %v1406 = vunpack.c.l.b16 %v894
    %v1407 = vunpack.c.l.b16 %v895
    %v1408 = vunpack.c.l.b16 %v896
    %v1409 = vunpack.c.l.b16 %v897
    %v1410 = vunpack.c.l.b16 %v898
    %v1411 = vunpack.c.l.b16 %v899
    %v1412 = vunpack.c.l.b16 %v900
    %v1413 = vunpack.c.l.b16 %v901
    %v1414 = vunpack.c.l.b16 %v902
    %v1415 = vunpack.c.l.b16 %v903
    %v1416 = vunpack.c.l.b16 %v904
    %v1417 = vunpack.c.l.b16 %v905
    %v1418 = vunpack.c.l.b16 %v906
    %v1419 = vunpack.c.l.b16 %v907
    %v1420 = vunpack.c.l.b16 %v908
    %v1421 = vunpack.c.l.b16 %v909
    %v1422 = vunpack.c.l.b16 %v910
    %v1423 = vunpack.c.l.b16 %v911
    %v1424 = vunpack.c.l.b16 %v912
    %v1425 = vunpack.c.l.b16 %v913
    %v1426 = vunpack.c.l.b16 %v914
    %v1427 = vunpack.c.l.b16 %v915
    %v1428 = vunpack.c.l.b16 %v916
    %v1429 = vunpack.c.l.b16 %v917
    %v1430 = vunpack.c.l.b16 %v918
    %v1431 = vunpack.c.l.b16 %v919
    %v1432 = vunpack.c.l.b16 %v920
    %v1433 = vunpack.c.l.b16 %v921
    %v1434 = vunpack.c.l.b16 %v922
    %v1435 = vunpack.c.l.b16 %v923
    %v1436 = vunpack.c.l.b16 %v924
    %v1437 = vunpack.c.l.b16 %v925
    %v1438 = vunpack.c.l.b16 %v926
    %v1439 = vunpack.c.l.b16 %v927
    %v1440 = vunpack.c.l.b16 %v928
    %v1441 = vunpack.c.l.b16 %v929
    %v1442 = vunpack.c.l.b16 %v930
    %v1443 = vunpack.c.l.b16 %v931
    %v1444 = vunpack.c.l.b16 %v932
    %v1445 = vunpack.c.l.b16 %v933
    %v1446 = vunpack.c.l.b16 %v934
    %v1447 = vunpack.c.l.b16 %v935
    %v1448 = vunpack.c.l.b16 %v936
    %v1449 = vunpack.c.l.b16 %v937
    %v1450 = vpack.c.b16 %v1195, %v1194
    %v1451 = vpack.c.b16 %v1197, %v1196
    %v1452 = vpack.c.b16 %v1199, %v1198
    %v1453 = vpack.c.b16 %v1201, %v1200
    %v1454 = vpack.c.b16 %v1203, %v1202
    %v1455 = vpack.c.b16 %v1205, %v1204
    %v1456 = vpack.c.b16 %v1207, %v1206
    %v1457 = vpack.c.b16 %v1209, %v1208
    %v1458 = vpack.c.b16 %v1211, %v1210
    %v1459 = vpack.c.b16 %v1213, %v1212
    %v1460 = vpack.c.b16 %v1215, %v1214
    %v1461 = vpack.c.b16 %v1217, %v1216
    %v1462 = vpack.c.b16 %v1219, %v1218
    %v1463 = vpack.c.b16 %v1221, %v1220
    %v1464 = vpack.c.b16 %v1223, %v1222
    %v1465 = vpack.c.b16 %v1225, %v1224
    %v1466 = vpack.c.b16 %v1227, %v1226
    %v1467 = vpack.c.b16 %v1229, %v1228
    %v1468 = vpack.c.b16 %v1231, %v1230
    %v1469 = vpack.c.b16 %v1233, %v1232
    %v1470 = vpack.c.b16 %v1235, %v1234
    %v1471 = vpack.c.b16 %v1237, %v1236
    %v1472 = vpack.c.b16 %v1239, %v1238
    %v1473 = vpack.c.b16 %v1241, %v1240
    %v1474 = vpack.c.b16 %v1243, %v1242
    %v1475 = vpack.c.b16 %v1245, %v1244
    %v1476 = vpack.c.b16 %v1247, %v1246
    %v1477 = vpack.c.b16 %v1249, %v1248
    %v1478 = vpack.c.b16 %v1251, %v1250
    %v1479 = vpack.c.b16 %v1253, %v1252
    %v1480 = vpack.c.b16 %v1255, %v1254
    %v1481 = vpack.c.b16 %v1257, %v1256
    %v1482 = vpack.c.b16 %v1259, %v1258
    %v1483 = vpack.c.b16 %v1261, %v1260
    %v1484 = vpack.c.b16 %v1263, %v1262
    %v1485 = vpack.c.b16 %v1265, %v1264
    %v1486 = vpack.c.b16 %v1267, %v1266
    %v1487 = vpack.c.b16 %v1269, %v1268
    %v1488 = vpack.c.b16 %v1271, %v1270
    %v1489 = vpack.c.b16 %v1273, %v1272
    %v1490 = vpack.c.b16 %v1275, %v1274
    %v1491 = vpack.c.b16 %v1277, %v1276
    %v1492 = vpack.c.b16 %v1279, %v1278
    %v1493 = vpack.c.b16 %v1281, %v1280
    %v1494 = vpack.c.b16 %v1283, %v1282
    %v1495 = vpack.c.b16 %v1285, %v1284
    %v1496 = vpack.c.b16 %v1287, %v1286
    %v1497 = vpack.c.b16 %v1289, %v1288
    %v1498 = vpack.c.b16 %v1291, %v1290
    %v1499 = vpack.c.b16 %v1293, %v1292
    %v1500 = vpack.c.b16 %v1295, %v1294
    %v1501 = vpack.c.b16 %v1297, %v1296
    %v1502 = vpack.c.b16 %v1299, %v1298
    %v1503 = vpack.c.b16 %v1301, %v1300
    %v1504 = vpack.c.b16 %v1303, %v1302
    %v1505 = vpack.c.b16 %v1305, %v1304
    %v1506 = vpack.c.b16 %v1307, %v1306
    %v1507 = vpack.c.b16 %v1309, %v1308
    %v1508 = vpack.c.b16 %v1311, %v1310
    %v1509 = vpack.c.b16 %v1313, %v1312
    %v1510 = vpack.c.b16 %v1315, %v1314
    %v1511 = vpack.c.b16 %v1317, %v1316
    %v1512 = vpack.c.b16 %v1319, %v1318
    %v1513 = vpack.c.b16 %v1321, %v1320
    %v1514 = vpack.c.b16 %v1323, %v1322
    %v1515 = vpack.c.b16 %v1325, %v1324
    %v1516 = vpack.c.b16 %v1327, %v1326
    %v1517 = vpack.c.b16 %v1329, %v1328
    %v1518 = vpack.c.b16 %v1331, %v1330
    %v1519 = vpack.c.b16 %v1333, %v1332
    %v1520 = vpack.c.b16 %v1335, %v1334
    %v1521 = vpack.c.b16 %v1337, %v1336
    %v1522 = vpack.c.b16 %v1339, %v1338
    %v1523 = vpack.c.b16 %v1341, %v1340
    %v1524 = vpack.c.b16 %v1343, %v1342
    %v1525 = vpack.c.b16 %v1345, %v1344
    %v1526 = vpack.c.b16 %v1347, %v1346
    %v1527 = vpack.c.b16 %v1349, %v1348
    %v1528 = vpack.c.b16 %v1351, %v1350
    %v1529 = vpack.c.b16 %v1353, %v1352
    %v1530 = vpack.c.b16 %v1355, %v1354
    %v1531 = vpack.c.b16 %v1357, %v1356
    %v1532 = vpack.c.b16 %v1359, %v1358
    %v1533 = vpack.c.b16 %v1361, %v1360
    %v1534 = vpack.c.b16 %v1363, %v1362
    %v1535 = vpack.c.b16 %v1365, %v1364
    %v1536 = vpack.c.b16 %v1367, %v1366
    %v1537 = vpack.c.b16 %v1369, %v1368
    %v1538 = vpack.c.b16 %v1371, %v1370
    %v1539 = vpack.c.b16 %v1373, %v1372
    %v1540 = vpack.c.b16 %v1375, %v1374
    %v1541 = vpack.c.b16 %v1377, %v1376
    %v1542 = vpack.c.b16 %v1379, %v1378
    %v1543 = vpack.c.b16 %v1381, %v1380
    %v1544 = vpack.c.b16 %v1383, %v1382
    %v1545 = vpack.c.b16 %v1385, %v1384
    %v1546 = vpack.c.b16 %v1387, %v1386
    %v1547 = vpack.c.b16 %v1389, %v1388
    %v1548 = vpack.c.b16 %v1391, %v1390
    %v1549 = vpack.c.b16 %v1393, %v1392
    %v1550 = vpack.c.b16 %v1395, %v1394
    %v1551 = vpack.c.b16 %v1397, %v1396
    %v1552 = vpack.c.b16 %v1399, %v1398
    %v1553 = vpack.c.b16 %v1401, %v1400
    %v1554 = vpack.c.b16 %v1403, %v1402
    %v1555 = vpack.c.b16 %v1405, %v1404
    %v1556 = vpack.c.b16 %v1407, %v1406
    %v1557 = vpack.c.b16 %v1409, %v1408
    %v1558 = vpack.c.b16 %v1411, %v1410
    %v1559 = vpack.c.b16 %v1413, %v1412
    %v1560 = vpack.c.b16 %v1415, %v1414
    %v1561 = vpack.c.b16 %v1417, %v1416
    %v1562 = vpack.c.b16 %v1419, %v1418
    %v1563 = vpack.c.b16 %v1421, %v1420
    %v1564 = vpack.c.b16 %v1423, %v1422
    %v1565 = vpack.c.b16 %v1425, %v1424
    %v1566 = vpack.c.b16 %v1427, %v1426
    %v1567 = vpack.c.b16 %v1429, %v1428
    %v1568 = vpack.c.b16 %v1431, %v1430
    %v1569 = vpack.c.b16 %v1433, %v1432
    %v1570 = vpack.c.b16 %v1435, %v1434
    %v1571 = vpack.c.b16 %v1437, %v1436
    %v1572 = vpack.c.b16 %v1439, %v1438
    %v1573 = vpack.c.b16 %v1441, %v1440
    %v1574 = vpack.c.b16 %v1443, %v1442
    %v1575 = vpack.c.b16 %v1445, %v1444
    %v1576 = vpack.c.b16 %v1447, %v1446
    %v1577 = vpack.c.b16 %v1449, %v1448
    %1706 = vmatprep.subr.bf16.mxu0 0
    %1707 = vmatpush1.bf16.msra.mxu0 %v1450
    %1708 = vmatprep.subr.bf16.mxu0 0
    %1709 = vmatpush1.bf16.msra.mxu0 %v1451
    %1710 = vmatprep.subr.bf16.mxu0 0
    %1711 = vmatpush1.bf16.msra.mxu0 %v1452
    %1712 = vmatprep.subr.bf16.mxu0 0
    %1713 = vmatpush1.bf16.msra.mxu0 %v1453
    %1714 = vmatprep.subr.bf16.mxu0 0
    %1715 = vmatpush1.bf16.msra.mxu0 %v1454
    %1716 = vmatprep.subr.bf16.mxu0 0
    %1717 = vmatpush1.bf16.msra.mxu0 %v1455
    %1718 = vmatprep.subr.bf16.mxu0 0
    %1719 = vmatpush1.bf16.msra.mxu0 %v1456
    %1720 = vmatprep.subr.bf16.mxu0 0
    %1721 = vmatpush1.bf16.msra.mxu0 %v1457
    %1722 = vmatprep.subr.bf16.mxu0 0
    %1723 = vmatpush1.bf16.msra.mxu0 %v1458
    %1724 = vmatprep.subr.bf16.mxu0 0
    %1725 = vmatpush1.bf16.msra.mxu0 %v1459
    %1726 = vmatprep.subr.bf16.mxu0 0
    %1727 = vmatpush1.bf16.msra.mxu0 %v1460
    %1728 = vmatprep.subr.bf16.mxu0 0
    %1729 = vmatpush1.bf16.msra.mxu0 %v1461
    %1730 = vmatprep.subr.bf16.mxu0 0
    %1731 = vmatpush1.bf16.msra.mxu0 %v1462
    %1732 = vmatprep.subr.bf16.mxu0 0
    %1733 = vmatpush1.bf16.msra.mxu0 %v1463
    %1734 = vmatprep.subr.bf16.mxu0 0
    %1735 = vmatpush1.bf16.msra.mxu0 %v1464
    %1736 = vmatprep.subr.bf16.mxu0 0
    %1737 = vmatpush1.bf16.msra.mxu0 %v1465
    %1738 = vmatprep.mubr.bf16.mxu0 %v571
    %1739 = vmatmul.mubr.bf16.gmra.mrb[0].mxu0 %v570
    %v1740 = vpop.f32.mrb[0].mxu0
    %v1741 = vadd.f32 0.0, %v1740
    %v1742 = vpop.f32.mrb[0].mxu0
    %v1743 = vpop.f32.mrb[0].mxu0
    %v1744 = vadd.f32 0.0, %v1743
    %v1745 = vpop.f32.mrb[0].mxu0
    %1746 = vmatprep.mubr.bf16.mxu0 %v587
    %1747 = vmatmul.mubr.bf16.gmra.mrb[0].mxu0 %v586
    %v1748 = vpop.f32.mrb[0].mxu0
    %v1749 = vadd.f32 0.0, %v1748
    %v1750 = vpop.f32.mrb[0].mxu0
    %v1751 = vpop.f32.mrb[0].mxu0
    %v1752 = vadd.f32 0.0, %v1751
    %v1753 = vpop.f32.mrb[0].mxu0
    %1754 = vmatprep.mubr.bf16.mxu0 %v603
    %1755 = vmatmul.mubr.bf16.gmra.mrb[0].mxu0 %v602
    %v1756 = vpop.f32.mrb[0].mxu0
    %v1757 = vadd.f32 0.0, %v1756
    %v1758 = vpop.f32.mrb[0].mxu0
    %v1759 = vpop.f32.mrb[0].mxu0
    %v1760 = vadd.f32 0.0, %v1759
    %v1761 = vpop.f32.mrb[0].mxu0
    %1762 = vmatprep.mubr.bf16.mxu0 %v619
    %1763 = vmatmul.mubr.bf16.gmra.mrb[0].mxu0 %v618
    %v1764 = vpop.f32.mrb[0].mxu0
    %v1765 = vadd.f32 0.0, %v1764
    %v1766 = vpop.f32.mrb[0].mxu0
    %v1767 = vpop.f32.mrb[0].mxu0
    %v1768 = vadd.f32 0.0, %v1767
    %v1769 = vpop.f32.mrb[0].mxu0
    %1770 = vmatprep.mubr.bf16.mxu0 %v635
    %1771 = vmatmul.mubr.bf16.gmra.mrb[0].mxu0 %v634
    %v1772 = vpop.f32.mrb[0].mxu0
    %v1773 = vadd.f32 0.0, %v1772
    %v1774 = vpop.f32.mrb[0].mxu0
    %v1775 = vpop.f32.mrb[0].mxu0
    %v1776 = vadd.f32 0.0, %v1775
    %v1777 = vpop.f32.mrb[0].mxu0
    %1778 = vmatprep.mubr.bf16.mxu0 %v651
    %1779 = vmatmul.mubr.bf16.gmra.mrb[0].mxu0 %v650
    %v1780 = vpop.f32.mrb[0].mxu0
    %v1781 = vadd.f32 0.0, %v1780
    %v1782 = vpop.f32.mrb[0].mxu0
    %v1783 = vpop.f32.mrb[0].mxu0
    %v1784 = vadd.f32 0.0, %v1783
    %v1785 = vpop.f32.mrb[0].mxu0
    %1786 = vmatprep.mubr.bf16.mxu0 %v667
    %1787 = vmatmul.mubr.bf16.gmra.mrb[0].mxu0 %v666
    %v1788 = vpop.f32.mrb[0].mxu0
    %v1789 = vadd.f32 0.0, %v1788
    %v1790 = vpop.f32.mrb[0].mxu0
    %v1791 = vpop.f32.mrb[0].mxu0
    %v1792 = vadd.f32 0.0, %v1791
    %v1793 = vpop.f32.mrb[0].mxu0
    %1794 = vdwg.mxu0
    %1795 = vmatprep.subr.bf16.mxu0 0
    %1796 = vmatpush1.bf16.msra.mxu0 %v1466
    %1797 = vmatprep.subr.bf16.mxu0 0
    %1798 = vmatpush1.bf16.msra.mxu0 %v1467
    %1799 = vmatprep.subr.bf16.mxu0 0
    %1800 = vmatpush1.bf16.msra.mxu0 %v1468
    %1801 = vmatprep.subr.bf16.mxu0 0
    %1802 = vmatpush1.bf16.msra.mxu0 %v1469
    %1803 = vmatprep.subr.bf16.mxu0 0
    %1804 = vmatpush1.bf16.msra.mxu0 %v1470
    %1805 = vmatprep.subr.bf16.mxu0 0
    %1806 = vmatpush1.bf16.msra.mxu0 %v1471
    %1807 = vmatprep.subr.bf16.mxu0 0
    %1808 = vmatpush1.bf16.msra.mxu0 %v1472
    %1809 = vmatprep.subr.bf16.mxu0 0
    %1810 = vmatpush1.bf16.msra.mxu0 %v1473
    %1811 = vmatprep.subr.bf16.mxu0 0
    %1812 = vmatpush1.bf16.msra.mxu0 %v1474
    %1813 = vmatprep.subr.bf16.mxu0 0
    %1814 = vmatpush1.bf16.msra.mxu0 %v1475
    %1815 = vmatprep.subr.bf16.mxu0 0
    %1816 = vmatpush1.bf16.msra.mxu0 %v1476
    %1817 = vmatprep.subr.bf16.mxu0 0
    %1818 = vmatpush1.bf16.msra.mxu0 %v1477
    %1819 = vmatprep.subr.bf16.mxu0 0
    %1820 = vmatpush1.bf16.msra.mxu0 %v1478
    %1821 = vmatprep.subr.bf16.mxu0 0
    %1822 = vmatpush1.bf16.msra.mxu0 %v1479
    %1823 = vmatprep.subr.bf16.mxu0 0
    %1824 = vmatpush1.bf16.msra.mxu0 %v1480
    %1825 = vmatprep.subr.bf16.mxu0 0
    %1826 = vmatpush1.bf16.msra.mxu0 %v1481
    %1827 = vmatprep.mubr.bf16.mxu0 %v573
    %1828 = vmatmul.mubr.bf16.gmra.mrb[0].mxu0 %v572
    %v1829 = vpop.f32.mrb[0].mxu0
    %v1830 = vadd.f32 %v1741, %v1829
    %v1831 = vpop.f32.mrb[0].mxu0
    %v1832 = vpop.f32.mrb[0].mxu0
    %v1833 = vadd.f32 %v1744, %v1832
    %v1834 = vpop.f32.mrb[0].mxu0
    %1835 = vmatprep.mubr.bf16.mxu0 %v589
    %1836 = vmatmul.mubr.bf16.gmra.mrb[0].mxu0 %v588
    %v1837 = vpop.f32.mrb[0].mxu0
    %v1838 = vadd.f32 %v1749, %v1837
    %v1839 = vpop.f32.mrb[0].mxu0
    %v1840 = vpop.f32.mrb[0].mxu0
    %v1841 = vadd.f32 %v1752, %v1840
    %v1842 = vpop.f32.mrb[0].mxu0
    %1843 = vmatprep.mubr.bf16.mxu0 %v605
    %1844 = vmatmul.mubr.bf16.gmra.mrb[0].mxu0 %v604
    %v1845 = vpop.f32.mrb[0].mxu0
    %v1846 = vadd.f32 %v1757, %v1845
    %v1847 = vpop.f32.mrb[0].mxu0
    %v1848 = vpop.f32.mrb[0].mxu0
    %v1849 = vadd.f32 %v1760, %v1848
    %v1850 = vpop.f32.mrb[0].mxu0
    %1851 = vmatprep.mubr.bf16.mxu0 %v621
    %1852 = vmatmul.mubr.bf16.gmra.mrb[0].mxu0 %v620
    %v1853 = vpop.f32.mrb[0].mxu0
    %v1854 = vadd.f32 %v1765, %v1853
    %v1855 = vpop.f32.mrb[0].mxu0
    %v1856 = vpop.f32.mrb[0].mxu0
    %v1857 = vadd.f32 %v1768, %v1856
    %v1858 = vpop.f32.mrb[0].mxu0
    %1859 = vmatprep.mubr.bf16.mxu0 %v637
    %1860 = vmatmul.mubr.bf16.gmra.mrb[0].mxu0 %v636
    %v1861 = vpop.f32.mrb[0].mxu0
    %v1862 = vadd.f32 %v1773, %v1861
    %v1863 = vpop.f32.mrb[0].mxu0
    %v1864 = vpop.f32.mrb[0].mxu0
    %v1865 = vadd.f32 %v1776, %v1864
    %v1866 = vpop.f32.mrb[0].mxu0
    %1867 = vmatprep.mubr.bf16.mxu0 %v653
    %1868 = vmatmul.mubr.bf16.gmra.mrb[0].mxu0 %v652
    %v1869 = vpop.f32.mrb[0].mxu0
    %v1870 = vadd.f32 %v1781, %v1869
    %v1871 = vpop.f32.mrb[0].mxu0
    %v1872 = vpop.f32.mrb[0].mxu0
    %v1873 = vadd.f32 %v1784, %v1872
    %v1874 = vpop.f32.mrb[0].mxu0
    %1875 = vmatprep.mubr.bf16.mxu0 %v669
    %1876 = vmatmul.mubr.bf16.gmra.mrb[0].mxu0 %v668
    %v1877 = vpop.f32.mrb[0].mxu0
    %v1878 = vadd.f32 %v1789, %v1877
    %v1879 = vpop.f32.mrb[0].mxu0
    %v1880 = vpop.f32.mrb[0].mxu0
    %v1881 = vadd.f32 %v1792, %v1880
    %v1882 = vpop.f32.mrb[0].mxu0
    %1883 = vdwg.mxu0
    %1884 = vmatprep.subr.bf16.mxu0 0
    %1885 = vmatpush1.bf16.msra.mxu0 %v1482
    %1886 = vmatprep.subr.bf16.mxu0 0
    %1887 = vmatpush1.bf16.msra.mxu0 %v1483
    %1888 = vmatprep.subr.bf16.mxu0 0
    %1889 = vmatpush1.bf16.msra.mxu0 %v1484
    %1890 = vmatprep.subr.bf16.mxu0 0
    %1891 = vmatpush1.bf16.msra.mxu0 %v1485
    %1892 = vmatprep.subr.bf16.mxu0 0
    %1893 = vmatpush1.bf16.msra.mxu0 %v1486
    %1894 = vmatprep.subr.bf16.mxu0 0
    %1895 = vmatpush1.bf16.msra.mxu0 %v1487
    %1896 = vmatprep.subr.bf16.mxu0 0
    %1897 = vmatpush1.bf16.msra.mxu0 %v1488
    %1898 = vmatprep.subr.bf16.mxu0 0
    %1899 = vmatpush1.bf16.msra.mxu0 %v1489
    %1900 = vmatprep.subr.bf16.mxu0 0
    %1901 = vmatpush1.bf16.msra.mxu0 %v1490
    %1902 = vmatprep.subr.bf16.mxu0 0
    %1903 = vmatpush1.bf16.msra.mxu0 %v1491
    %1904 = vmatprep.subr.bf16.mxu0 0
    %1905 = vmatpush1.bf16.msra.mxu0 %v1492
    %1906 = vmatprep.subr.bf16.mxu0 0
    %1907 = vmatpush1.bf16.msra.mxu0 %v1493
    %1908 = vmatprep.subr.bf16.mxu0 0
    %1909 = vmatpush1.bf16.msra.mxu0 %v1494
    %1910 = vmatprep.subr.bf16.mxu0 0
    %1911 = vmatpush1.bf16.msra.mxu0 %v1495
    %1912 = vmatprep.subr.bf16.mxu0 0
    %1913 = vmatpush1.bf16.msra.mxu0 %v1496
    %1914 = vmatprep.subr.bf16.mxu0 0
    %1915 = vmatpush1.bf16.msra.mxu0 %v1497
    %1916 = vmatprep.mubr.bf16.mxu0 %v575
    %1917 = vmatmul.mubr.bf16.gmra.mrb[0].mxu0 %v574
    %v1918 = vpop.f32.mrb[0].mxu0
    %v1919 = vadd.f32 %v1830, %v1918
    %v1920 = vpop.f32.mrb[0].mxu0
    %v1921 = vpop.f32.mrb[0].mxu0
    %v1922 = vadd.f32 %v1833, %v1921
    %v1923 = vpop.f32.mrb[0].mxu0
    %1924 = vmatprep.mubr.bf16.mxu0 %v591
    %1925 = vmatmul.mubr.bf16.gmra.mrb[0].mxu0 %v590
    %v1926 = vpop.f32.mrb[0].mxu0
    %v1927 = vadd.f32 %v1838, %v1926
    %v1928 = vpop.f32.mrb[0].mxu0
    %v1929 = vpop.f32.mrb[0].mxu0
    %v1930 = vadd.f32 %v1841, %v1929
    %v1931 = vpop.f32.mrb[0].mxu0
    %1932 = vmatprep.mubr.bf16.mxu0 %v607
    %1933 = vmatmul.mubr.bf16.gmra.mrb[0].mxu0 %v606
    %v1934 = vpop.f32.mrb[0].mxu0
    %v1935 = vadd.f32 %v1846, %v1934
    %v1936 = vpop.f32.mrb[0].mxu0
    %v1937 = vpop.f32.mrb[0].mxu0
    %v1938 = vadd.f32 %v1849, %v1937
    %v1939 = vpop.f32.mrb[0].mxu0
    %1940 = vmatprep.mubr.bf16.mxu0 %v623
    %1941 = vmatmul.mubr.bf16.gmra.mrb[0].mxu0 %v622
    %v1942 = vpop.f32.mrb[0].mxu0
    %v1943 = vadd.f32 %v1854, %v1942
    %v1944 = vpop.f32.mrb[0].mxu0
    %v1945 = vpop.f32.mrb[0].mxu0
    %v1946 = vadd.f32 %v1857, %v1945
    %v1947 = vpop.f32.mrb[0].mxu0
    %1948 = vmatprep.mubr.bf16.mxu0 %v639
    %1949 = vmatmul.mubr.bf16.gmra.mrb[0].mxu0 %v638
    %v1950 = vpop.f32.mrb[0].mxu0
    %v1951 = vadd.f32 %v1862, %v1950
    %v1952 = vpop.f32.mrb[0].mxu0
    %v1953 = vpop.f32.mrb[0].mxu0
    %v1954 = vadd.f32 %v1865, %v1953
    %v1955 = vpop.f32.mrb[0].mxu0
    %1956 = vmatprep.mubr.bf16.mxu0 %v655
    %1957 = vmatmul.mubr.bf16.gmra.mrb[0].mxu0 %v654
    %v1958 = vpop.f32.mrb[0].mxu0
    %v1959 = vadd.f32 %v1870, %v1958
    %v1960 = vpop.f32.mrb[0].mxu0
    %v1961 = vpop.f32.mrb[0].mxu0
    %v1962 = vadd.f32 %v1873, %v1961
    %v1963 = vpop.f32.mrb[0].mxu0
    %1964 = vmatprep.mubr.bf16.mxu0 %v671
    %1965 = vmatmul.mubr.bf16.gmra.mrb[0].mxu0 %v670
    %v1966 = vpop.f32.mrb[0].mxu0
    %v1967 = vadd.f32 %v1878, %v1966
    %v1968 = vpop.f32.mrb[0].mxu0
    %v1969 = vpop.f32.mrb[0].mxu0
    %v1970 = vadd.f32 %v1881, %v1969
    %v1971 = vpop.f32.mrb[0].mxu0
    %1972 = vdwg.mxu0
    %1973 = vmatprep.subr.bf16.mxu0 0
    %1974 = vmatpush1.bf16.msra.mxu0 %v1498
    %1975 = vmatprep.subr.bf16.mxu0 0
    %1976 = vmatpush1.bf16.msra.mxu0 %v1499
    %1977 = vmatprep.subr.bf16.mxu0 0
    %1978 = vmatpush1.bf16.msra.mxu0 %v1500
    %1979 = vmatprep.subr.bf16.mxu0 0
    %1980 = vmatpush1.bf16.msra.mxu0 %v1501
    %1981 = vmatprep.subr.bf16.mxu0 0
    %1982 = vmatpush1.bf16.msra.mxu0 %v1502
    %1983 = vmatprep.subr.bf16.mxu0 0
    %1984 = vmatpush1.bf16.msra.mxu0 %v1503
    %1985 = vmatprep.subr.bf16.mxu0 0
    %1986 = vmatpush1.bf16.msra.mxu0 %v1504
    %1987 = vmatprep.subr.bf16.mxu0 0
    %1988 = vmatpush1.bf16.msra.mxu0 %v1505
    %1989 = vmatprep.subr.bf16.mxu0 0
    %1990 = vmatpush1.bf16.msra.mxu0 %v1506
    %1991 = vmatprep.subr.bf16.mxu0 0
    %1992 = vmatpush1.bf16.msra.mxu0 %v1507
    %1993 = vmatprep.subr.bf16.mxu0 0
    %1994 = vmatpush1.bf16.msra.mxu0 %v1508
    %1995 = vmatprep.subr.bf16.mxu0 0
    %1996 = vmatpush1.bf16.msra.mxu0 %v1509
    %1997 = vmatprep.subr.bf16.mxu0 0
    %1998 = vmatpush1.bf16.msra.mxu0 %v1510
    %1999 = vmatprep.subr.bf16.mxu0 0
    %2000 = vmatpush1.bf16.msra.mxu0 %v1511
    %2001 = vmatprep.subr.bf16.mxu0 0
    %2002 = vmatpush1.bf16.msra.mxu0 %v1512
    %2003 = vmatprep.subr.bf16.mxu0 0
    %2004 = vmatpush1.bf16.msra.mxu0 %v1513
    %2005 = vmatprep.mubr.bf16.mxu0 %v577
    %2006 = vmatmul.mubr.bf16.gmra.mrb[0].mxu0 %v576
    %v2007 = vpop.f32.mrb[0].mxu0
    %v2008 = vadd.f32 %v1919, %v2007
    %v2009 = vpop.f32.mrb[0].mxu0
    %v2010 = vpop.f32.mrb[0].mxu0
    %v2011 = vadd.f32 %v1922, %v2010
    %v2012 = vpop.f32.mrb[0].mxu0
    %2013 = vmatprep.mubr.bf16.mxu0 %v593
    %2014 = vmatmul.mubr.bf16.gmra.mrb[0].mxu0 %v592
    %v2015 = vpop.f32.mrb[0].mxu0
    %v2016 = vadd.f32 %v1927, %v2015
    %v2017 = vpop.f32.mrb[0].mxu0
    %v2018 = vpop.f32.mrb[0].mxu0
    %v2019 = vadd.f32 %v1930, %v2018
    %v2020 = vpop.f32.mrb[0].mxu0
    %2021 = vmatprep.mubr.bf16.mxu0 %v609
    %2022 = vmatmul.mubr.bf16.gmra.mrb[0].mxu0 %v608
    %v2023 = vpop.f32.mrb[0].mxu0
    %v2024 = vadd.f32 %v1935, %v2023
    %v2025 = vpop.f32.mrb[0].mxu0
    %v2026 = vpop.f32.mrb[0].mxu0
    %v2027 = vadd.f32 %v1938, %v2026
    %v2028 = vpop.f32.mrb[0].mxu0
    %2029 = vmatprep.mubr.bf16.mxu0 %v625
    %2030 = vmatmul.mubr.bf16.gmra.mrb[0].mxu0 %v624
    %v2031 = vpop.f32.mrb[0].mxu0
    %v2032 = vadd.f32 %v1943, %v2031
    %v2033 = vpop.f32.mrb[0].mxu0
    %v2034 = vpop.f32.mrb[0].mxu0
    %v2035 = vadd.f32 %v1946, %v2034
    %v2036 = vpop.f32.mrb[0].mxu0
    %2037 = vmatprep.mubr.bf16.mxu0 %v641
    %2038 = vmatmul.mubr.bf16.gmra.mrb[0].mxu0 %v640
    %v2039 = vpop.f32.mrb[0].mxu0
    %v2040 = vadd.f32 %v1951, %v2039
    %v2041 = vpop.f32.mrb[0].mxu0
    %v2042 = vpop.f32.mrb[0].mxu0
    %v2043 = vadd.f32 %v1954, %v2042
    %v2044 = vpop.f32.mrb[0].mxu0
    %2045 = vmatprep.mubr.bf16.mxu0 %v657
    %2046 = vmatmul.mubr.bf16.gmra.mrb[0].mxu0 %v656
    %v2047 = vpop.f32.mrb[0].mxu0
    %v2048 = vadd.f32 %v1959, %v2047
    %v2049 = vpop.f32.mrb[0].mxu0
    %v2050 = vpop.f32.mrb[0].mxu0
    %v2051 = vadd.f32 %v1962, %v2050
    %v2052 = vpop.f32.mrb[0].mxu0
    %2053 = vmatprep.mubr.bf16.mxu0 %v673
    %2054 = vmatmul.mubr.bf16.gmra.mrb[0].mxu0 %v672
    %v2055 = vpop.f32.mrb[0].mxu0
    %v2056 = vadd.f32 %v1967, %v2055
    %v2057 = vpop.f32.mrb[0].mxu0
    %v2058 = vpop.f32.mrb[0].mxu0
    %v2059 = vadd.f32 %v1970, %v2058
    %v2060 = vpop.f32.mrb[0].mxu0
    %2061 = vdwg.mxu0
    %2062 = vmatprep.subr.bf16.mxu0 0
    %2063 = vmatpush1.bf16.msra.mxu0 %v1514
    %2064 = vmatprep.subr.bf16.mxu0 0
    %2065 = vmatpush1.bf16.msra.mxu0 %v1515
    %2066 = vmatprep.subr.bf16.mxu0 0
    %2067 = vmatpush1.bf16.msra.mxu0 %v1516
    %2068 = vmatprep.subr.bf16.mxu0 0
    %2069 = vmatpush1.bf16.msra.mxu0 %v1517
    %2070 = vmatprep.subr.bf16.mxu0 0
    %2071 = vmatpush1.bf16.msra.mxu0 %v1518
    %2072 = vmatprep.subr.bf16.mxu0 0
    %2073 = vmatpush1.bf16.msra.mxu0 %v1519
    %2074 = vmatprep.subr.bf16.mxu0 0
    %2075 = vmatpush1.bf16.msra.mxu0 %v1520
    %2076 = vmatprep.subr.bf16.mxu0 0
    %2077 = vmatpush1.bf16.msra.mxu0 %v1521
    %2078 = vmatprep.subr.bf16.mxu0 0
    %2079 = vmatpush1.bf16.msra.mxu0 %v1522
    %2080 = vmatprep.subr.bf16.mxu0 0
    %2081 = vmatpush1.bf16.msra.mxu0 %v1523
    %2082 = vmatprep.subr.bf16.mxu0 0
    %2083 = vmatpush1.bf16.msra.mxu0 %v1524
    %2084 = vmatprep.subr.bf16.mxu0 0
    %2085 = vmatpush1.bf16.msra.mxu0 %v1525
    %2086 = vmatprep.subr.bf16.mxu0 0
    %2087 = vmatpush1.bf16.msra.mxu0 %v1526
    %2088 = vmatprep.subr.bf16.mxu0 0
    %2089 = vmatpush1.bf16.msra.mxu0 %v1527
    %2090 = vmatprep.subr.bf16.mxu0 0
    %2091 = vmatpush1.bf16.msra.mxu0 %v1528
    %2092 = vmatprep.subr.bf16.mxu0 0
    %2093 = vmatpush1.bf16.msra.mxu0 %v1529
    %2094 = vmatprep.mubr.bf16.mxu0 %v579
    %2095 = vmatmul.mubr.bf16.gmra.mrb[0].mxu0 %v578
    %v2096 = vpop.f32.mrb[0].mxu0
    %v2097 = vadd.f32 %v2008, %v2096
    %v2098 = vpop.f32.mrb[0].mxu0
    %v2099 = vpop.f32.mrb[0].mxu0
    %v2100 = vadd.f32 %v2011, %v2099
    %v2101 = vpop.f32.mrb[0].mxu0
    %2102 = vmatprep.mubr.bf16.mxu0 %v595
    %2103 = vmatmul.mubr.bf16.gmra.mrb[0].mxu0 %v594
    %v2104 = vpop.f32.mrb[0].mxu0
    %v2105 = vadd.f32 %v2016, %v2104
    %v2106 = vpop.f32.mrb[0].mxu0
    %v2107 = vpop.f32.mrb[0].mxu0
    %v2108 = vadd.f32 %v2019, %v2107
    %v2109 = vpop.f32.mrb[0].mxu0
    %2110 = vmatprep.mubr.bf16.mxu0 %v611
    %2111 = vmatmul.mubr.bf16.gmra.mrb[0].mxu0 %v610
    %v2112 = vpop.f32.mrb[0].mxu0
    %v2113 = vadd.f32 %v2024, %v2112
    %v2114 = vpop.f32.mrb[0].mxu0
    %v2115 = vpop.f32.mrb[0].mxu0
    %v2116 = vadd.f32 %v2027, %v2115
    %v2117 = vpop.f32.mrb[0].mxu0
    %2118 = vmatprep.mubr.bf16.mxu0 %v627
    %2119 = vmatmul.mubr.bf16.gmra.mrb[0].mxu0 %v626
    %v2120 = vpop.f32.mrb[0].mxu0
    %v2121 = vadd.f32 %v2032, %v2120
    %v2122 = vpop.f32.mrb[0].mxu0
    %v2123 = vpop.f32.mrb[0].mxu0
    %v2124 = vadd.f32 %v2035, %v2123
    %v2125 = vpop.f32.mrb[0].mxu0
    %2126 = vmatprep.mubr.bf16.mxu0 %v643
    %2127 = vmatmul.mubr.bf16.gmra.mrb[0].mxu0 %v642
    %v2128 = vpop.f32.mrb[0].mxu0
    %v2129 = vadd.f32 %v2040, %v2128
    %v2130 = vpop.f32.mrb[0].mxu0
    %v2131 = vpop.f32.mrb[0].mxu0
    %v2132 = vadd.f32 %v2043, %v2131
    %v2133 = vpop.f32.mrb[0].mxu0
    %2134 = vmatprep.mubr.bf16.mxu0 %v659
    %2135 = vmatmul.mubr.bf16.gmra.mrb[0].mxu0 %v658
    %v2136 = vpop.f32.mrb[0].mxu0
    %v2137 = vadd.f32 %v2048, %v2136
    %v2138 = vpop.f32.mrb[0].mxu0
    %v2139 = vpop.f32.mrb[0].mxu0
    %v2140 = vadd.f32 %v2051, %v2139
    %v2141 = vpop.f32.mrb[0].mxu0
    %2142 = vmatprep.mubr.bf16.mxu0 %v675
    %2143 = vmatmul.mubr.bf16.gmra.mrb[0].mxu0 %v674
    %v2144 = vpop.f32.mrb[0].mxu0
    %v2145 = vadd.f32 %v2056, %v2144
    %v2146 = vpop.f32.mrb[0].mxu0
    %v2147 = vpop.f32.mrb[0].mxu0
    %v2148 = vadd.f32 %v2059, %v2147
    %v2149 = vpop.f32.mrb[0].mxu0
    %2150 = vdwg.mxu0
    %2151 = vmatprep.subr.bf16.mxu0 0
    %2152 = vmatpush1.bf16.msra.mxu0 %v1530
    %2153 = vmatprep.subr.bf16.mxu0 0
    %2154 = vmatpush1.bf16.msra.mxu0 %v1531
    %2155 = vmatprep.subr.bf16.mxu0 0
    %2156 = vmatpush1.bf16.msra.mxu0 %v1532
    %2157 = vmatprep.subr.bf16.mxu0 0
    %2158 = vmatpush1.bf16.msra.mxu0 %v1533
    %2159 = vmatprep.subr.bf16.mxu0 0
    %2160 = vmatpush1.bf16.msra.mxu0 %v1534
    %2161 = vmatprep.subr.bf16.mxu0 0
    %2162 = vmatpush1.bf16.msra.mxu0 %v1535
    %2163 = vmatprep.subr.bf16.mxu0 0
    %2164 = vmatpush1.bf16.msra.mxu0 %v1536
    %2165 = vmatprep.subr.bf16.mxu0 0
    %2166 = vmatpush1.bf16.msra.mxu0 %v1537
    %2167 = vmatprep.subr.bf16.mxu0 0
    %2168 = vmatpush1.bf16.msra.mxu0 %v1538
    %2169 = vmatprep.subr.bf16.mxu0 0
    %2170 = vmatpush1.bf16.msra.mxu0 %v1539
    %2171 = vmatprep.subr.bf16.mxu0 0
    %2172 = vmatpush1.bf16.msra.mxu0 %v1540
    %2173 = vmatprep.subr.bf16.mxu0 0
    %2174 = vmatpush1.bf16.msra.mxu0 %v1541
    %2175 = vmatprep.subr.bf16.mxu0 0
    %2176 = vmatpush1.bf16.msra.mxu0 %v1542
    %2177 = vmatprep.subr.bf16.mxu0 0
    %2178 = vmatpush1.bf16.msra.mxu0 %v1543
    %2179 = vmatprep.subr.bf16.mxu0 0
    %2180 = vmatpush1.bf16.msra.mxu0 %v1544
    %2181 = vmatprep.subr.bf16.mxu0 0
    %2182 = vmatpush1.bf16.msra.mxu0 %v1545
    %2183 = vmatprep.mubr.bf16.mxu0 %v581
    %2184 = vmatmul.mubr.bf16.gmra.mrb[0].mxu0 %v580
    %v2185 = vpop.f32.mrb[0].mxu0
    %v2186 = vadd.f32 %v2097, %v2185
    %v2187 = vpop.f32.mrb[0].mxu0
    %v2188 = vpop.f32.mrb[0].mxu0
    %v2189 = vadd.f32 %v2100, %v2188
    %v2190 = vpop.f32.mrb[0].mxu0
    %2191 = vmatprep.mubr.bf16.mxu0 %v597
    %2192 = vmatmul.mubr.bf16.gmra.mrb[0].mxu0 %v596
    %v2193 = vpop.f32.mrb[0].mxu0
    %v2194 = vadd.f32 %v2105, %v2193
    %v2195 = vpop.f32.mrb[0].mxu0
    %v2196 = vpop.f32.mrb[0].mxu0
    %v2197 = vadd.f32 %v2108, %v2196
    %v2198 = vpop.f32.mrb[0].mxu0
    %2199 = vmatprep.mubr.bf16.mxu0 %v613
    %2200 = vmatmul.mubr.bf16.gmra.mrb[0].mxu0 %v612
    %v2201 = vpop.f32.mrb[0].mxu0
    %v2202 = vadd.f32 %v2113, %v2201
    %v2203 = vpop.f32.mrb[0].mxu0
    %v2204 = vpop.f32.mrb[0].mxu0
    %v2205 = vadd.f32 %v2116, %v2204
    %v2206 = vpop.f32.mrb[0].mxu0
    %2207 = vmatprep.mubr.bf16.mxu0 %v629
    %2208 = vmatmul.mubr.bf16.gmra.mrb[0].mxu0 %v628
    %v2209 = vpop.f32.mrb[0].mxu0
    %v2210 = vadd.f32 %v2121, %v2209
    %v2211 = vpop.f32.mrb[0].mxu0
    %v2212 = vpop.f32.mrb[0].mxu0
    %v2213 = vadd.f32 %v2124, %v2212
    %v2214 = vpop.f32.mrb[0].mxu0
    %2215 = vmatprep.mubr.bf16.mxu0 %v645
    %2216 = vmatmul.mubr.bf16.gmra.mrb[0].mxu0 %v644
    %v2217 = vpop.f32.mrb[0].mxu0
    %v2218 = vadd.f32 %v2129, %v2217
    %v2219 = vpop.f32.mrb[0].mxu0
    %v2220 = vpop.f32.mrb[0].mxu0
    %v2221 = vadd.f32 %v2132, %v2220
    %v2222 = vpop.f32.mrb[0].mxu0
    %2223 = vmatprep.mubr.bf16.mxu0 %v661
    %2224 = vmatmul.mubr.bf16.gmra.mrb[0].mxu0 %v660
    %v2225 = vpop.f32.mrb[0].mxu0
    %v2226 = vadd.f32 %v2137, %v2225
    %v2227 = vpop.f32.mrb[0].mxu0
    %v2228 = vpop.f32.mrb[0].mxu0
    %v2229 = vadd.f32 %v2140, %v2228
    %v2230 = vpop.f32.mrb[0].mxu0
    %2231 = vmatprep.mubr.bf16.mxu0 %v677
    %2232 = vmatmul.mubr.bf16.gmra.mrb[0].mxu0 %v676
    %v2233 = vpop.f32.mrb[0].mxu0
    %v2234 = vadd.f32 %v2145, %v2233
    %v2235 = vpop.f32.mrb[0].mxu0
    %v2236 = vpop.f32.mrb[0].mxu0
    %v2237 = vadd.f32 %v2148, %v2236
    %v2238 = vpop.f32.mrb[0].mxu0
    %2239 = vdwg.mxu0
    %2240 = vmatprep.subr.bf16.mxu0 0
    %2241 = vmatpush1.bf16.msra.mxu0 %v1546
    %2242 = vmatprep.subr.bf16.mxu0 0
    %2243 = vmatpush1.bf16.msra.mxu0 %v1547
    %2244 = vmatprep.subr.bf16.mxu0 0
    %2245 = vmatpush1.bf16.msra.mxu0 %v1548
    %2246 = vmatprep.subr.bf16.mxu0 0
    %2247 = vmatpush1.bf16.msra.mxu0 %v1549
    %2248 = vmatprep.subr.bf16.mxu0 0
    %2249 = vmatpush1.bf16.msra.mxu0 %v1550
    %2250 = vmatprep.subr.bf16.mxu0 0
    %2251 = vmatpush1.bf16.msra.mxu0 %v1551
    %2252 = vmatprep.subr.bf16.mxu0 0
    %2253 = vmatpush1.bf16.msra.mxu0 %v1552
    %2254 = vmatprep.subr.bf16.mxu0 0
    %2255 = vmatpush1.bf16.msra.mxu0 %v1553
    %2256 = vmatprep.subr.bf16.mxu0 0
    %2257 = vmatpush1.bf16.msra.mxu0 %v1554
    %2258 = vmatprep.subr.bf16.mxu0 0
    %2259 = vmatpush1.bf16.msra.mxu0 %v1555
    %2260 = vmatprep.subr.bf16.mxu0 0
    %2261 = vmatpush1.bf16.msra.mxu0 %v1556
    %2262 = vmatprep.subr.bf16.mxu0 0
    %2263 = vmatpush1.bf16.msra.mxu0 %v1557
    %2264 = vmatprep.subr.bf16.mxu0 0
    %2265 = vmatpush1.bf16.msra.mxu0 %v1558
    %2266 = vmatprep.subr.bf16.mxu0 0
    %2267 = vmatpush1.bf16.msra.mxu0 %v1559
    %2268 = vmatprep.subr.bf16.mxu0 0
    %2269 = vmatpush1.bf16.msra.mxu0 %v1560
    %2270 = vmatprep.subr.bf16.mxu0 0
    %2271 = vmatpush1.bf16.msra.mxu0 %v1561
    %2272 = vmatprep.mubr.bf16.mxu0 %v583
    %2273 = vmatmul.mubr.bf16.gmra.mrb[0].mxu0 %v582
    %v2274 = vpop.f32.mrb[0].mxu0
    %v2275 = vadd.f32 %v2186, %v2274
    %v2276 = vpop.f32.mrb[0].mxu0
    %v2277 = vpop.f32.mrb[0].mxu0
    %v2278 = vadd.f32 %v2189, %v2277
    %v2279 = vpop.f32.mrb[0].mxu0
    %2280 = vmatprep.mubr.bf16.mxu0 %v599
    %2281 = vmatmul.mubr.bf16.gmra.mrb[0].mxu0 %v598
    %v2282 = vpop.f32.mrb[0].mxu0
    %v2283 = vadd.f32 %v2194, %v2282
    %v2284 = vpop.f32.mrb[0].mxu0
    %v2285 = vpop.f32.mrb[0].mxu0
    %v2286 = vadd.f32 %v2197, %v2285
    %v2287 = vpop.f32.mrb[0].mxu0
    %2288 = vmatprep.mubr.bf16.mxu0 %v615
    %2289 = vmatmul.mubr.bf16.gmra.mrb[0].mxu0 %v614
    %v2290 = vpop.f32.mrb[0].mxu0
    %v2291 = vadd.f32 %v2202, %v2290
    %v2292 = vpop.f32.mrb[0].mxu0
    %v2293 = vpop.f32.mrb[0].mxu0
    %v2294 = vadd.f32 %v2205, %v2293
    %v2295 = vpop.f32.mrb[0].mxu0
    %2296 = vmatprep.mubr.bf16.mxu0 %v631
    %2297 = vmatmul.mubr.bf16.gmra.mrb[0].mxu0 %v630
    %v2298 = vpop.f32.mrb[0].mxu0
    %v2299 = vadd.f32 %v2210, %v2298
    %v2300 = vpop.f32.mrb[0].mxu0
    %v2301 = vpop.f32.mrb[0].mxu0
    %v2302 = vadd.f32 %v2213, %v2301
    %v2303 = vpop.f32.mrb[0].mxu0
    %2304 = vmatprep.mubr.bf16.mxu0 %v647
    %2305 = vmatmul.mubr.bf16.gmra.mrb[0].mxu0 %v646
    %v2306 = vpop.f32.mrb[0].mxu0
    %v2307 = vadd.f32 %v2218, %v2306
    %v2308 = vpop.f32.mrb[0].mxu0
    %v2309 = vpop.f32.mrb[0].mxu0
    %v2310 = vadd.f32 %v2221, %v2309
    %v2311 = vpop.f32.mrb[0].mxu0
    %2312 = vmatprep.mubr.bf16.mxu0 %v663
    %2313 = vmatmul.mubr.bf16.gmra.mrb[0].mxu0 %v662
    %v2314 = vpop.f32.mrb[0].mxu0
    %v2315 = vadd.f32 %v2226, %v2314
    %v2316 = vpop.f32.mrb[0].mxu0
    %v2317 = vpop.f32.mrb[0].mxu0
    %v2318 = vadd.f32 %v2229, %v2317
    %v2319 = vpop.f32.mrb[0].mxu0
    %2320 = vmatprep.mubr.bf16.mxu0 %v679
    %2321 = vmatmul.mubr.bf16.gmra.mrb[0].mxu0 %v678
    %v2322 = vpop.f32.mrb[0].mxu0
    %v2323 = vadd.f32 %v2234, %v2322
    %v2324 = vpop.f32.mrb[0].mxu0
    %v2325 = vpop.f32.mrb[0].mxu0
    %v2326 = vadd.f32 %v2237, %v2325
    %v2327 = vpop.f32.mrb[0].mxu0
    %2328 = vdwg.mxu0
    %2329 = vmatprep.subr.bf16.mxu0 0
    %2330 = vmatpush1.bf16.msra.mxu0 %v1562
    %2331 = vmatprep.subr.bf16.mxu0 0
    %2332 = vmatpush1.bf16.msra.mxu0 %v1563
    %2333 = vmatprep.subr.bf16.mxu0 0
    %2334 = vmatpush1.bf16.msra.mxu0 %v1564
    %2335 = vmatprep.subr.bf16.mxu0 0
    %2336 = vmatpush1.bf16.msra.mxu0 %v1565
    %2337 = vmatprep.subr.bf16.mxu0 0
    %2338 = vmatpush1.bf16.msra.mxu0 %v1566
    %2339 = vmatprep.subr.bf16.mxu0 0
    %2340 = vmatpush1.bf16.msra.mxu0 %v1567
    %2341 = vmatprep.subr.bf16.mxu0 0
    %2342 = vmatpush1.bf16.msra.mxu0 %v1568
    %2343 = vmatprep.subr.bf16.mxu0 0
    %2344 = vmatpush1.bf16.msra.mxu0 %v1569
    %2345 = vmatprep.subr.bf16.mxu0 0
    %2346 = vmatpush1.bf16.msra.mxu0 %v1570
    %2347 = vmatprep.subr.bf16.mxu0 0
    %2348 = vmatpush1.bf16.msra.mxu0 %v1571
    %2349 = vmatprep.subr.bf16.mxu0 0
    %2350 = vmatpush1.bf16.msra.mxu0 %v1572
    %2351 = vmatprep.subr.bf16.mxu0 0
    %2352 = vmatpush1.bf16.msra.mxu0 %v1573
    %2353 = vmatprep.subr.bf16.mxu0 0
    %2354 = vmatpush1.bf16.msra.mxu0 %v1574
    %2355 = vmatprep.subr.bf16.mxu0 0
    %2356 = vmatpush1.bf16.msra.mxu0 %v1575
    %2357 = vmatprep.subr.bf16.mxu0 0
    %2358 = vmatpush1.bf16.msra.mxu0 %v1576
    %2359 = vmatprep.subr.bf16.mxu0 0
    %2360 = vmatpush1.bf16.msra.mxu0 %v1577
    %2361 = vmatprep.mubr.bf16.mxu0 %v585
    %2362 = vmatmul.mubr.bf16.gmra.mrb[0].mxu0 %v584
    %v2363 = vpop.f32.mrb[0].mxu0
    %v2364 = vadd.f32 %v2275, %v2363
    %v2365 = vpop.f32.mrb[0].mxu0
    %v2366 = vpop.f32.mrb[0].mxu0
    %v2367 = vadd.f32 %v2278, %v2366
    %v2368 = vpop.f32.mrb[0].mxu0
    %2369 = vmatprep.mubr.bf16.mxu0 %v601
    %2370 = vmatmul.mubr.bf16.gmra.mrb[0].mxu0 %v600
    %v2371 = vpop.f32.mrb[0].mxu0
    %v2372 = vadd.f32 %v2283, %v2371
    %v2373 = vpop.f32.mrb[0].mxu0
    %v2374 = vpop.f32.mrb[0].mxu0
    %v2375 = vadd.f32 %v2286, %v2374
    %v2376 = vpop.f32.mrb[0].mxu0
    %2377 = vmatprep.mubr.bf16.mxu0 %v617
    %2378 = vmatmul.mubr.bf16.gmra.mrb[0].mxu0 %v616
    %v2379 = vpop.f32.mrb[0].mxu0
    %v2380 = vadd.f32 %v2291, %v2379
    %v2381 = vpop.f32.mrb[0].mxu0
    %v2382 = vpop.f32.mrb[0].mxu0
    %v2383 = vadd.f32 %v2294, %v2382
    %v2384 = vpop.f32.mrb[0].mxu0
    %2385 = vmatprep.mubr.bf16.mxu0 %v633
    %2386 = vmatmul.mubr.bf16.gmra.mrb[0].mxu0 %v632
    %v2387 = vpop.f32.mrb[0].mxu0
    %v2388 = vadd.f32 %v2299, %v2387
    %v2389 = vpop.f32.mrb[0].mxu0
    %v2390 = vpop.f32.mrb[0].mxu0
    %v2391 = vadd.f32 %v2302, %v2390
    %v2392 = vpop.f32.mrb[0].mxu0
    %2393 = vmatprep.mubr.bf16.mxu0 %v649
    %2394 = vmatmul.mubr.bf16.gmra.mrb[0].mxu0 %v648
    %v2395 = vpop.f32.mrb[0].mxu0
    %v2396 = vadd.f32 %v2307, %v2395
    %v2397 = vpop.f32.mrb[0].mxu0
    %v2398 = vpop.f32.mrb[0].mxu0
    %v2399 = vadd.f32 %v2310, %v2398
    %v2400 = vpop.f32.mrb[0].mxu0
    %2401 = vmatprep.mubr.bf16.mxu0 %v665
    %2402 = vmatmul.mubr.bf16.gmra.mrb[0].mxu0 %v664
    %v2403 = vpop.f32.mrb[0].mxu0
    %v2404 = vadd.f32 %v2315, %v2403
    %v2405 = vpop.f32.mrb[0].mxu0
    %v2406 = vpop.f32.mrb[0].mxu0
    %v2407 = vadd.f32 %v2318, %v2406
    %v2408 = vpop.f32.mrb[0].mxu0
    %2409 = vmatprep.mubr.bf16.mxu0 %v681
    %2410 = vmatmul.mubr.bf16.gmra.mrb[0].mxu0 %v680
    %v2411 = vpop.f32.mrb[0].mxu0
    %v2412 = vadd.f32 %v2323, %v2411
    %v2413 = vpop.f32.mrb[0].mxu0
    %v2414 = vpop.f32.mrb[0].mxu0
    %v2415 = vadd.f32 %v2326, %v2414
    %v2416 = vpop.f32.mrb[0].mxu0
    %2417 = vdwg.mxu0
    %v2418 = vpack.c.bf16 %v2367, %v2364
    %v2419 = vpack.c.bf16 %v2375, %v2372
    %v2420 = vpack.c.bf16 %v2383, %v2380
    %v2421 = vpack.c.bf16 %v2391, %v2388
    %v2422 = vpack.c.bf16 %v2399, %v2396
    %v2423 = vpack.c.bf16 %v2407, %v2404
    %v2424 = vpack.c.bf16 %v2372, %v2367
    %v2425 = vpack.c.bf16 %v2380, %v2375
    %v2426 = vpack.c.bf16 %v2388, %v2383
    %v2427 = vpack.c.bf16 %v2396, %v2391
    %v2428 = vpack.c.bf16 %v2404, %v2399
    %v2429 = vpack.c.bf16 %v2412, %v2407
    %v2430 = vpack.c.bf16 %v2415, %v2412
    %v2431 = vld [vmem:[%s2] sm:$0xff]
    %v2432 = vld [vmem:[%s2 + $0x8] sm:$0xff]
    %v2433 = vld [vmem:[%s2 + $0x10] sm:$0xff]
    %v2434 = vld [vmem:[%s2 + $0x18] sm:$0xff]
    %v2435 = vld [vmem:[%s3] sm:$0xff]
    %v2436 = vld [vmem:[%s3 + $0x8] sm:$0xff]
    %v2437 = vld [vmem:[%s3 + $0x10] sm:$0xff]
    %v2438 = vld [vmem:[%s3 + $0x18] sm:$0xff]
    %v2443 = vunpack.c.l.b16 %v2435
    %v2444 = vunpack.c.h.b16 %v2435
    %v2445 = vunpack.c.l.b16 %v2436
    %v2446 = vunpack.c.h.b16 %v2436
    %v2447 = vunpack.c.l.b16 %v2437
    %v2448 = vunpack.c.h.b16 %v2437
    %v2449 = vunpack.c.l.b16 %v2438
    %v2450 = vunpack.c.h.b16 %v2438
    %v2451 = vpack.c.b16 %v2445, %v2443
    %v2452 = vpack.c.b16 %v2446, %v2444
    %v2453 = vpack.c.b16 %v2449, %v2447
    %v2454 = vpack.c.b16 %v2450, %v2448
    %vm2459 = vcmask 261120
    %v2461 = vsel %vm2459, %v2424, 0
    %v2464 = vsel %vm2459, %v2425, 0
    %v2467 = vsel %vm2459, %v2426, 0
    %v2470 = vsel %vm2459, %v2427, 0
    %v2473 = vsel %vm2459, %v2428, 0
    %v2476 = vsel %vm2459, %v2429, 0
    %2478 = vmatprep.subr.bf16.mxu0 %v2452
    %2479 = vmatpush1.bf16.msra.mxu0 %v2451
    %2480 = vmatprep.subr.bf16.mxu0 %v2454
    %2481 = vmatpush1.bf16.msra.mxu0 %v2453
    %2482 = vmatprep.subr.bf16.mxu0 0
    %2483 = vmatpush1.bf16.msra.mxu0 0
    %2484 = vmatprep.subr.bf16.mxu0 0
    %2485 = vmatpush1.bf16.msra.mxu0 0
    %2486 = vmatprep.subr.bf16.mxu0 0
    %2487 = vmatpush1.bf16.msra.mxu0 0
    %2488 = vmatprep.subr.bf16.mxu0 0
    %2489 = vmatpush1.bf16.msra.mxu0 0
    %2490 = vmatprep.subr.bf16.mxu0 0
    %2491 = vmatpush1.bf16.msra.mxu0 0
    %2492 = vmatprep.subr.bf16.mxu0 0
    %2493 = vmatpush1.bf16.msra.mxu0 0
    %2494 = vmatprep.subr.bf16.mxu0 0
    %2495 = vmatpush1.bf16.msra.mxu0 0
    %2496 = vmatprep.subr.bf16.mxu0 0
    %2497 = vmatpush1.bf16.msra.mxu0 0
    %2498 = vmatprep.subr.bf16.mxu0 0
    %2499 = vmatpush1.bf16.msra.mxu0 0
    %2500 = vmatprep.subr.bf16.mxu0 0
    %2501 = vmatpush1.bf16.msra.mxu0 0
    %2502 = vmatprep.subr.bf16.mxu0 0
    %2503 = vmatpush1.bf16.msra.mxu0 0
    %2504 = vmatprep.subr.bf16.mxu0 0
    %2505 = vmatpush1.bf16.msra.mxu0 0
    %2506 = vmatprep.subr.bf16.mxu0 0
    %2507 = vmatpush1.bf16.msra.mxu0 0
    %2508 = vmatprep.subr.bf16.mxu0 0
    %2509 = vmatpush1.bf16.msra.mxu0 0
    %2510 = vmatprep.mubr.bf16.mxu0 0
    %2511 = vmatmul.mubr.bf16.gmra.mrb[0].mxu0 %v2461
    %v2512 = vpop.f32.mrb[0].mxu0
    %v2513 = vadd.f32 0.0, %v2512
    %v2514 = vpop.f32.mrb[0].mxu0
    %v2515 = vadd.f32 0.0, %v2514
    %v2516 = vpop.f32.mrb[0].mxu0
    %v2517 = vadd.f32 0.0, %v2516
    %v2518 = vpop.f32.mrb[0].mxu0
    %v2519 = vadd.f32 0.0, %v2518
    %2520 = vmatprep.mubr.bf16.mxu0 0
    %2521 = vmatmul.mubr.bf16.gmra.mrb[0].mxu0 %v2464
    %v2522 = vpop.f32.mrb[0].mxu0
    %v2523 = vadd.f32 0.0, %v2522
    %v2524 = vpop.f32.mrb[0].mxu0
    %v2525 = vadd.f32 0.0, %v2524
    %v2526 = vpop.f32.mrb[0].mxu0
    %v2527 = vadd.f32 0.0, %v2526
    %v2528 = vpop.f32.mrb[0].mxu0
    %v2529 = vadd.f32 0.0, %v2528
    %2530 = vmatprep.mubr.bf16.mxu0 0
    %2531 = vmatmul.mubr.bf16.gmra.mrb[0].mxu0 %v2467
    %v2532 = vpop.f32.mrb[0].mxu0
    %v2533 = vadd.f32 0.0, %v2532
    %v2534 = vpop.f32.mrb[0].mxu0
    %v2535 = vadd.f32 0.0, %v2534
    %v2536 = vpop.f32.mrb[0].mxu0
    %v2537 = vadd.f32 0.0, %v2536
    %v2538 = vpop.f32.mrb[0].mxu0
    %v2539 = vadd.f32 0.0, %v2538
    %2540 = vmatprep.mubr.bf16.mxu0 0
    %2541 = vmatmul.mubr.bf16.gmra.mrb[0].mxu0 %v2470
    %v2542 = vpop.f32.mrb[0].mxu0
    %v2543 = vadd.f32 0.0, %v2542
    %v2544 = vpop.f32.mrb[0].mxu0
    %v2545 = vadd.f32 0.0, %v2544
    %v2546 = vpop.f32.mrb[0].mxu0
    %v2547 = vadd.f32 0.0, %v2546
    %v2548 = vpop.f32.mrb[0].mxu0
    %v2549 = vadd.f32 0.0, %v2548
    %2550 = vmatprep.mubr.bf16.mxu0 0
    %2551 = vmatmul.mubr.bf16.gmra.mrb[0].mxu0 %v2473
    %v2552 = vpop.f32.mrb[0].mxu0
    %v2553 = vadd.f32 0.0, %v2552
    %v2554 = vpop.f32.mrb[0].mxu0
    %v2555 = vadd.f32 0.0, %v2554
    %v2556 = vpop.f32.mrb[0].mxu0
    %v2557 = vadd.f32 0.0, %v2556
    %v2558 = vpop.f32.mrb[0].mxu0
    %v2559 = vadd.f32 0.0, %v2558
    %2560 = vmatprep.mubr.bf16.mxu0 0
    %2561 = vmatmul.mubr.bf16.gmra.mrb[0].mxu0 %v2476
    %v2562 = vpop.f32.mrb[0].mxu0
    %v2563 = vadd.f32 0.0, %v2562
    %v2564 = vpop.f32.mrb[0].mxu0
    %v2565 = vadd.f32 0.0, %v2564
    %v2566 = vpop.f32.mrb[0].mxu0
    %v2567 = vadd.f32 0.0, %v2566
    %v2568 = vpop.f32.mrb[0].mxu0
    %v2569 = vadd.f32 0.0, %v2568
    %2570 = vdwg.mxu0
    %v2575 = vunpack.c.l.b16 %v2431
    %v2576 = vunpack.c.h.b16 %v2431
    %v2577 = vunpack.c.l.b16 %v2432
    %v2578 = vunpack.c.h.b16 %v2432
    %v2579 = vunpack.c.l.b16 %v2433
    %v2580 = vunpack.c.h.b16 %v2433
    %v2581 = vunpack.c.l.b16 %v2434
    %v2582 = vunpack.c.h.b16 %v2434
    %v2583 = vpack.c.b16 %v2577, %v2575
    %v2584 = vpack.c.b16 %v2578, %v2576
    %v2585 = vpack.c.b16 %v2581, %v2579
    %v2586 = vpack.c.b16 %v2582, %v2580
    %v2592 = vsel %vm2459, %v2418, 0
    %v2595 = vsel %vm2459, %v2419, 0
    %v2598 = vsel %vm2459, %v2420, 0
    %v2601 = vsel %vm2459, %v2421, 0
    %v2604 = vsel %vm2459, %v2422, 0
    %v2607 = vsel %vm2459, %v2423, 0
    %2609 = vmatprep.subr.bf16.mxu0 %v2584
    %2610 = vmatpush1.bf16.msra.mxu0 %v2583
    %2611 = vmatprep.subr.bf16.mxu0 %v2586
    %2612 = vmatpush1.bf16.msra.mxu0 %v2585
    %2613 = vmatprep.subr.bf16.mxu0 0
    %2614 = vmatpush1.bf16.msra.mxu0 0
    %2615 = vmatprep.subr.bf16.mxu0 0
    %2616 = vmatpush1.bf16.msra.mxu0 0
    %2617 = vmatprep.subr.bf16.mxu0 0
    %2618 = vmatpush1.bf16.msra.mxu0 0
    %2619 = vmatprep.subr.bf16.mxu0 0
    %2620 = vmatpush1.bf16.msra.mxu0 0
    %2621 = vmatprep.subr.bf16.mxu0 0
    %2622 = vmatpush1.bf16.msra.mxu0 0
    %2623 = vmatprep.subr.bf16.mxu0 0
    %2624 = vmatpush1.bf16.msra.mxu0 0
    %2625 = vmatprep.subr.bf16.mxu0 0
    %2626 = vmatpush1.bf16.msra.mxu0 0
    %2627 = vmatprep.subr.bf16.mxu0 0
    %2628 = vmatpush1.bf16.msra.mxu0 0
    %2629 = vmatprep.subr.bf16.mxu0 0
    %2630 = vmatpush1.bf16.msra.mxu0 0
    %2631 = vmatprep.subr.bf16.mxu0 0
    %2632 = vmatpush1.bf16.msra.mxu0 0
    %2633 = vmatprep.subr.bf16.mxu0 0
    %2634 = vmatpush1.bf16.msra.mxu0 0
    %2635 = vmatprep.subr.bf16.mxu0 0
    %2636 = vmatpush1.bf16.msra.mxu0 0
    %2637 = vmatprep.subr.bf16.mxu0 0
    %2638 = vmatpush1.bf16.msra.mxu0 0
    %2639 = vmatprep.subr.bf16.mxu0 0
    %2640 = vmatpush1.bf16.msra.mxu0 0
    %2641 = vmatprep.mubr.bf16.mxu0 0
    %2642 = vmatmul.mubr.bf16.gmra.mrb[0].mxu0 %v2592
    %v2643 = vpop.f32.mrb[0].mxu0
    %v2644 = vadd.f32 %v2513, %v2643
    %v2645 = vpop.f32.mrb[0].mxu0
    %v2646 = vadd.f32 %v2515, %v2645
    %v2647 = vpop.f32.mrb[0].mxu0
    %v2648 = vadd.f32 %v2517, %v2647
    %v2649 = vpop.f32.mrb[0].mxu0
    %v2650 = vadd.f32 %v2519, %v2649
    %2651 = vmatprep.mubr.bf16.mxu0 0
    %2652 = vmatmul.mubr.bf16.gmra.mrb[0].mxu0 %v2595
    %v2653 = vpop.f32.mrb[0].mxu0
    %v2654 = vadd.f32 %v2523, %v2653
    %v2655 = vpop.f32.mrb[0].mxu0
    %v2656 = vadd.f32 %v2525, %v2655
    %v2657 = vpop.f32.mrb[0].mxu0
    %v2658 = vadd.f32 %v2527, %v2657
    %v2659 = vpop.f32.mrb[0].mxu0
    %v2660 = vadd.f32 %v2529, %v2659
    %2661 = vmatprep.mubr.bf16.mxu0 0
    %2662 = vmatmul.mubr.bf16.gmra.mrb[0].mxu0 %v2598
    %v2663 = vpop.f32.mrb[0].mxu0
    %v2664 = vadd.f32 %v2533, %v2663
    %v2665 = vpop.f32.mrb[0].mxu0
    %v2666 = vadd.f32 %v2535, %v2665
    %v2667 = vpop.f32.mrb[0].mxu0
    %v2668 = vadd.f32 %v2537, %v2667
    %v2669 = vpop.f32.mrb[0].mxu0
    %v2670 = vadd.f32 %v2539, %v2669
    %2671 = vmatprep.mubr.bf16.mxu0 0
    %2672 = vmatmul.mubr.bf16.gmra.mrb[0].mxu0 %v2601
    %v2673 = vpop.f32.mrb[0].mxu0
    %v2674 = vadd.f32 %v2543, %v2673
    %v2675 = vpop.f32.mrb[0].mxu0
    %v2676 = vadd.f32 %v2545, %v2675
    %v2677 = vpop.f32.mrb[0].mxu0
    %v2678 = vadd.f32 %v2547, %v2677
    %v2679 = vpop.f32.mrb[0].mxu0
    %v2680 = vadd.f32 %v2549, %v2679
    %2681 = vmatprep.mubr.bf16.mxu0 0
    %2682 = vmatmul.mubr.bf16.gmra.mrb[0].mxu0 %v2604
    %v2683 = vpop.f32.mrb[0].mxu0
    %v2684 = vadd.f32 %v2553, %v2683
    %v2685 = vpop.f32.mrb[0].mxu0
    %v2686 = vadd.f32 %v2555, %v2685
    %v2687 = vpop.f32.mrb[0].mxu0
    %v2688 = vadd.f32 %v2557, %v2687
    %v2689 = vpop.f32.mrb[0].mxu0
    %v2690 = vadd.f32 %v2559, %v2689
    %2691 = vmatprep.mubr.bf16.mxu0 0
    %2692 = vmatmul.mubr.bf16.gmra.mrb[0].mxu0 %v2607
    %v2693 = vpop.f32.mrb[0].mxu0
    %v2694 = vadd.f32 %v2563, %v2693
    %v2695 = vpop.f32.mrb[0].mxu0
    %v2696 = vadd.f32 %v2565, %v2695
    %v2697 = vpop.f32.mrb[0].mxu0
    %v2698 = vadd.f32 %v2567, %v2697
    %v2699 = vpop.f32.mrb[0].mxu0
    %v2700 = vadd.f32 %v2569, %v2699
    %2701 = vdwg.mxu0
    %v2702 = vld [vmem:[%s4] sm:$0xff]
    %v2703 = vld [vmem:[%s4 + $0x8] sm:$0xff]
    %v2704 = vld [vmem:[%s4 + $0x10] sm:$0xff]
    %v2705 = vld [vmem:[%s4 + $0x18] sm:$0xff]
    %v2710 = vunpack.c.l.b16 %v2702
    %v2711 = vunpack.c.h.b16 %v2702
    %v2712 = vunpack.c.l.b16 %v2703
    %v2713 = vunpack.c.h.b16 %v2703
    %v2714 = vunpack.c.l.b16 %v2704
    %v2715 = vunpack.c.h.b16 %v2704
    %v2716 = vunpack.c.l.b16 %v2705
    %v2717 = vunpack.c.h.b16 %v2705
    %v2718 = vpack.c.b16 %v2712, %v2710
    %v2719 = vpack.c.b16 %v2713, %v2711
    %v2720 = vpack.c.b16 %v2716, %v2714
    %v2721 = vpack.c.b16 %v2717, %v2715
    %v2727 = vsel %vm2459, %v2430, 0
    %2729 = vmatprep.subr.bf16.mxu0 %v2719
    %2730 = vmatpush1.bf16.msra.mxu0 %v2718
    %2731 = vmatprep.subr.bf16.mxu0 %v2721
    %2732 = vmatpush1.bf16.msra.mxu0 %v2720
    %2733 = vmatprep.subr.bf16.mxu0 0
    %2734 = vmatpush1.bf16.msra.mxu0 0
    %2735 = vmatprep.subr.bf16.mxu0 0
    %2736 = vmatpush1.bf16.msra.mxu0 0
    %2737 = vmatprep.subr.bf16.mxu0 0
    %2738 = vmatpush1.bf16.msra.mxu0 0
    %2739 = vmatprep.subr.bf16.mxu0 0
    %2740 = vmatpush1.bf16.msra.mxu0 0
    %2741 = vmatprep.subr.bf16.mxu0 0
    %2742 = vmatpush1.bf16.msra.mxu0 0
    %2743 = vmatprep.subr.bf16.mxu0 0
    %2744 = vmatpush1.bf16.msra.mxu0 0
    %2745 = vmatprep.subr.bf16.mxu0 0
    %2746 = vmatpush1.bf16.msra.mxu0 0
    %2747 = vmatprep.subr.bf16.mxu0 0
    %2748 = vmatpush1.bf16.msra.mxu0 0
    %2749 = vmatprep.subr.bf16.mxu0 0
    %2750 = vmatpush1.bf16.msra.mxu0 0
    %2751 = vmatprep.subr.bf16.mxu0 0
    %2752 = vmatpush1.bf16.msra.mxu0 0
    %2753 = vmatprep.subr.bf16.mxu0 0
    %2754 = vmatpush1.bf16.msra.mxu0 0
    %2755 = vmatprep.subr.bf16.mxu0 0
    %2756 = vmatpush1.bf16.msra.mxu0 0
    %2757 = vmatprep.subr.bf16.mxu0 0
    %2758 = vmatpush1.bf16.msra.mxu0 0
    %2759 = vmatprep.subr.bf16.mxu0 0
    %2760 = vmatpush1.bf16.msra.mxu0 0
    %2761 = vmatprep.mubr.bf16.mxu0 0
    %2762 = vmatmul.mubr.bf16.gmra.mrb[0].mxu0 %v2595
    %v2763 = vpop.f32.mrb[0].mxu0
    %v2764 = vadd.f32 0.0, %v2763
    %v2765 = vpop.f32.mrb[0].mxu0
    %v2766 = vadd.f32 0.0, %v2765
    %v2767 = vpop.f32.mrb[0].mxu0
    %v2768 = vadd.f32 0.0, %v2767
    %v2769 = vpop.f32.mrb[0].mxu0
    %v2770 = vadd.f32 0.0, %v2769
    %2771 = vmatprep.mubr.bf16.mxu0 0
    %2772 = vmatmul.mubr.bf16.gmra.mrb[0].mxu0 %v2598
    %v2773 = vpop.f32.mrb[0].mxu0
    %v2774 = vadd.f32 0.0, %v2773
    %v2775 = vpop.f32.mrb[0].mxu0
    %v2776 = vadd.f32 0.0, %v2775
    %v2777 = vpop.f32.mrb[0].mxu0
    %v2778 = vadd.f32 0.0, %v2777
    %v2779 = vpop.f32.mrb[0].mxu0
    %v2780 = vadd.f32 0.0, %v2779
    %2781 = vmatprep.mubr.bf16.mxu0 0
    %2782 = vmatmul.mubr.bf16.gmra.mrb[0].mxu0 %v2601
    %v2783 = vpop.f32.mrb[0].mxu0
    %v2784 = vadd.f32 0.0, %v2783
    %v2785 = vpop.f32.mrb[0].mxu0
    %v2786 = vadd.f32 0.0, %v2785
    %v2787 = vpop.f32.mrb[0].mxu0
    %v2788 = vadd.f32 0.0, %v2787
    %v2789 = vpop.f32.mrb[0].mxu0
    %v2790 = vadd.f32 0.0, %v2789
    %2791 = vmatprep.mubr.bf16.mxu0 0
    %2792 = vmatmul.mubr.bf16.gmra.mrb[0].mxu0 %v2604
    %v2793 = vpop.f32.mrb[0].mxu0
    %v2794 = vadd.f32 0.0, %v2793
    %v2795 = vpop.f32.mrb[0].mxu0
    %v2796 = vadd.f32 0.0, %v2795
    %v2797 = vpop.f32.mrb[0].mxu0
    %v2798 = vadd.f32 0.0, %v2797
    %v2799 = vpop.f32.mrb[0].mxu0
    %v2800 = vadd.f32 0.0, %v2799
    %2801 = vmatprep.mubr.bf16.mxu0 0
    %2802 = vmatmul.mubr.bf16.gmra.mrb[0].mxu0 %v2607
    %v2803 = vpop.f32.mrb[0].mxu0
    %v2804 = vadd.f32 0.0, %v2803
    %v2805 = vpop.f32.mrb[0].mxu0
    %v2806 = vadd.f32 0.0, %v2805
    %v2807 = vpop.f32.mrb[0].mxu0
    %v2808 = vadd.f32 0.0, %v2807
    %v2809 = vpop.f32.mrb[0].mxu0
    %v2810 = vadd.f32 0.0, %v2809
    %2811 = vmatprep.mubr.bf16.mxu0 0
    %2812 = vmatmul.mubr.bf16.gmra.mrb[0].mxu0 %v2727
    %v2813 = vpop.f32.mrb[0].mxu0
    %v2814 = vadd.f32 0.0, %v2813
    %v2815 = vpop.f32.mrb[0].mxu0
    %v2816 = vadd.f32 0.0, %v2815
    %v2817 = vpop.f32.mrb[0].mxu0
    %v2818 = vadd.f32 0.0, %v2817
    %v2819 = vpop.f32.mrb[0].mxu0
    %v2820 = vadd.f32 0.0, %v2819
    %2821 = vdwg.mxu0
    %v2822 = vadd.f32 %v2644, %v2764
    %v2823 = vadd.f32 %v2646, %v2766
    %v2824 = vadd.f32 %v2648, %v2768
    %v2825 = vadd.f32 %v2650, %v2770
    %v2826 = vadd.f32 %v2654, %v2774
    %v2827 = vadd.f32 %v2656, %v2776
    %v2828 = vadd.f32 %v2658, %v2778
    %v2829 = vadd.f32 %v2660, %v2780
    %v2830 = vadd.f32 %v2664, %v2784
    %v2831 = vadd.f32 %v2666, %v2786
    %v2832 = vadd.f32 %v2668, %v2788
    %v2833 = vadd.f32 %v2670, %v2790
    %v2834 = vadd.f32 %v2674, %v2794
    %v2835 = vadd.f32 %v2676, %v2796
    %v2836 = vadd.f32 %v2678, %v2798
    %v2837 = vadd.f32 %v2680, %v2800
    %v2838 = vadd.f32 %v2684, %v2804
    %v2839 = vadd.f32 %v2686, %v2806
    %v2840 = vadd.f32 %v2688, %v2808
    %v2841 = vadd.f32 %v2690, %v2810
    %v2842 = vadd.f32 %v2694, %v2814
    %v2843 = vadd.f32 %v2696, %v2816
    %v2844 = vadd.f32 %v2698, %v2818
    %v2845 = vadd.f32 %v2700, %v2820
    %v2846 = vld [vmem:[%s5] sm:$0x3]
    %v2848 = vlaneseq
    %v2849 = vshrl.u32 %v2848, 7
    %v2850 = vsub.s32 0, %v2849
    %v2851 = vrot.slane %v2846, %v2850
    %v2852 = vlaneseq
    %v2853 = vshrl.u32 %v2852, 7
    %v2854 = vsub.s32 1, %v2853
    %v2855 = vrot.slane %v2846, %v2854
    %v2858 = vadd.f32 %v2822, %v2851
    %v2859 = vadd.f32 %v2823, %v2855
    %v2860 = vadd.f32 %v2824, %v2851
    %v2861 = vadd.f32 %v2825, %v2855
    %v2862 = vadd.f32 %v2826, %v2851
    %v2863 = vadd.f32 %v2827, %v2855
    %v2864 = vadd.f32 %v2828, %v2851
    %v2865 = vadd.f32 %v2829, %v2855
    %v2866 = vadd.f32 %v2830, %v2851
    %v2867 = vadd.f32 %v2831, %v2855
    %v2868 = vadd.f32 %v2832, %v2851
    %v2869 = vadd.f32 %v2833, %v2855
    %v2870 = vadd.f32 %v2834, %v2851
    %v2871 = vadd.f32 %v2835, %v2855
    %v2872 = vadd.f32 %v2836, %v2851
    %v2873 = vadd.f32 %v2837, %v2855
    %v2874 = vadd.f32 %v2838, %v2851
    %v2875 = vadd.f32 %v2839, %v2855
    %v2876 = vadd.f32 %v2840, %v2851
    %v2877 = vadd.f32 %v2841, %v2855
    %v2878 = vadd.f32 %v2842, %v2851
    %v2879 = vadd.f32 %v2843, %v2855
    %v2880 = vadd.f32 %v2844, %v2851
    %v2881 = vadd.f32 %v2845, %v2855
    %v2882 = vmax.f32 %v2858, 0.0
    %v2883 = vmax.f32 %v2859, 0.0
    %v2884 = vmax.f32 %v2860, 0.0
    %v2885 = vmax.f32 %v2861, 0.0
    %v2886 = vmax.f32 %v2862, 0.0
    %v2887 = vmax.f32 %v2863, 0.0
    %v2888 = vmax.f32 %v2864, 0.0
    %v2889 = vmax.f32 %v2865, 0.0
    %v2890 = vmax.f32 %v2866, 0.0
    %v2891 = vmax.f32 %v2867, 0.0
    %v2892 = vmax.f32 %v2868, 0.0
    %v2893 = vmax.f32 %v2869, 0.0
    %v2894 = vmax.f32 %v2870, 0.0
    %v2895 = vmax.f32 %v2871, 0.0
    %v2896 = vmax.f32 %v2872, 0.0
    %v2897 = vmax.f32 %v2873, 0.0
    %v2898 = vmax.f32 %v2874, 0.0
    %v2899 = vmax.f32 %v2875, 0.0
    %v2900 = vmax.f32 %v2876, 0.0
    %v2901 = vmax.f32 %v2877, 0.0
    %v2902 = vmax.f32 %v2878, 0.0
    %v2903 = vmax.f32 %v2879, 0.0
    %v2904 = vmax.f32 %v2880, 0.0
    %v2905 = vmax.f32 %v2881, 0.0
    %v2906 = vmax.f32 %v2882, %v2884
    %v2907 = vmax.f32 %v2883, %v2885
    %v2908 = vmax.f32 %v2906, %v2886
    %v2909 = vmax.f32 %v2907, %v2887
    %v2910 = vmax.f32 %v2888, %v2890
    %v2911 = vmax.f32 %v2889, %v2891
    %v2912 = vmax.f32 %v2910, %v2892
    %v2913 = vmax.f32 %v2911, %v2893
    %v2914 = vmax.f32 %v2894, %v2896
    %v2915 = vmax.f32 %v2895, %v2897
    %v2916 = vmax.f32 %v2914, %v2898
    %v2917 = vmax.f32 %v2915, %v2899
    %v2918 = vmax.f32 %v2900, %v2902
    %v2919 = vmax.f32 %v2901, %v2903
    %v2920 = vmax.f32 %v2918, %v2904
    %v2921 = vmax.f32 %v2919, %v2905
    %v2922 = vpack.c.bf16 %v2908, 0.0
    %v2923 = vpack.c.bf16 %v2909, 0.0
    %v2924 = vpack.c.bf16 %v2916, %v2912
    %v2925 = vpack.c.bf16 %v2917, %v2913
    %v2926 = vpack.c.bf16 %v2912, %v2908
    %v2927 = vpack.c.bf16 %v2913, %v2909
    %v2928 = vpack.c.bf16 %v2920, %v2916
    %v2929 = vpack.c.bf16 %v2921, %v2917
    %v2930 = vpack.c.bf16 0.0, %v2920
    %v2931 = vpack.c.bf16 0.0, %v2921
    %v2932 = vld [vmem:[%s6] sm:$0xf]
    %v2933 = vld [vmem:[%s6 + $0x4] sm:$0xf]
    %v2934 = vld [vmem:[%s6 + $0x8] sm:$0xf]
    %v2935 = vld [vmem:[%s6 + $0xc] sm:$0xf]
    %v2936 = vld [vmem:[%s6 + $0x10] sm:$0xf]
    %v2937 = vld [vmem:[%s6 + $0x14] sm:$0xf]
    %v2938 = vld [vmem:[%s6 + $0x18] sm:$0xf]
    %v2939 = vld [vmem:[%s6 + $0x1c] sm:$0xf]
    %v2940 = vld [vmem:[%s6 + $0x20] sm:$0xf]
    %v2941 = vld [vmem:[%s6 + $0x24] sm:$0xf]
    %v2942 = vld [vmem:[%s6 + $0x28] sm:$0xf]
    %v2943 = vld [vmem:[%s6 + $0x2c] sm:$0xf]
    %v2944 = vld [vmem:[%s6 + $0x30] sm:$0xf]
    %v2945 = vld [vmem:[%s6 + $0x34] sm:$0xf]
    %v2946 = vld [vmem:[%s6 + $0x38] sm:$0xf]
    %v2947 = vld [vmem:[%s6 + $0x3c] sm:$0xf]
    %v2948 = vld [vmem:[%s6 + $0x40] sm:$0xf]
    %v2949 = vld [vmem:[%s6 + $0x44] sm:$0xf]
    %v2950 = vld [vmem:[%s6 + $0x48] sm:$0xf]
    %v2951 = vld [vmem:[%s6 + $0x4c] sm:$0xf]
    %v2952 = vld [vmem:[%s6 + $0x50] sm:$0xf]
    %v2953 = vld [vmem:[%s6 + $0x54] sm:$0xf]
    %v2954 = vld [vmem:[%s6 + $0x58] sm:$0xf]
    %v2955 = vld [vmem:[%s6 + $0x5c] sm:$0xf]
    %v2956 = vld [vmem:[%s6 + $0x60] sm:$0xf]
    %v2957 = vld [vmem:[%s6 + $0x64] sm:$0xf]
    %v2958 = vld [vmem:[%s6 + $0x68] sm:$0xf]
    %v2959 = vld [vmem:[%s6 + $0x6c] sm:$0xf]
    %v2960 = vld [vmem:[%s6 + $0x70] sm:$0xf]
    %v2961 = vld [vmem:[%s6 + $0x74] sm:$0xf]
    %v2962 = vld [vmem:[%s6 + $0x78] sm:$0xf]
    %v2963 = vld [vmem:[%s6 + $0x7c] sm:$0xf]
    %v2964 = vld [vmem:[%s7] sm:$0xf]
    %v2965 = vld [vmem:[%s7 + $0x4] sm:$0xf]
    %v2966 = vld [vmem:[%s7 + $0x8] sm:$0xf]
    %v2967 = vld [vmem:[%s7 + $0xc] sm:$0xf]
    %v2968 = vld [vmem:[%s7 + $0x10] sm:$0xf]
    %v2969 = vld [vmem:[%s7 + $0x14] sm:$0xf]
    %v2970 = vld [vmem:[%s7 + $0x18] sm:$0xf]
    %v2971 = vld [vmem:[%s7 + $0x1c] sm:$0xf]
    %v2972 = vld [vmem:[%s7 + $0x20] sm:$0xf]
    %v2973 = vld [vmem:[%s7 + $0x24] sm:$0xf]
    %v2974 = vld [vmem:[%s7 + $0x28] sm:$0xf]
    %v2975 = vld [vmem:[%s7 + $0x2c] sm:$0xf]
    %v2976 = vld [vmem:[%s7 + $0x30] sm:$0xf]
    %v2977 = vld [vmem:[%s7 + $0x34] sm:$0xf]
    %v2978 = vld [vmem:[%s7 + $0x38] sm:$0xf]
    %v2979 = vld [vmem:[%s7 + $0x3c] sm:$0xf]
    %v2980 = vld [vmem:[%s7 + $0x40] sm:$0xf]
    %v2981 = vld [vmem:[%s7 + $0x44] sm:$0xf]
    %v2982 = vld [vmem:[%s7 + $0x48] sm:$0xf]
    %v2983 = vld [vmem:[%s7 + $0x4c] sm:$0xf]
    %v2984 = vld [vmem:[%s7 + $0x50] sm:$0xf]
    %v2985 = vld [vmem:[%s7 + $0x54] sm:$0xf]
    %v2986 = vld [vmem:[%s7 + $0x58] sm:$0xf]
    %v2987 = vld [vmem:[%s7 + $0x5c] sm:$0xf]
    %v2988 = vld [vmem:[%s7 + $0x60] sm:$0xf]
    %v2989 = vld [vmem:[%s7 + $0x64] sm:$0xf]
    %v2990 = vld [vmem:[%s7 + $0x68] sm:$0xf]
    %v2991 = vld [vmem:[%s7 + $0x6c] sm:$0xf]
    %v2992 = vld [vmem:[%s7 + $0x70] sm:$0xf]
    %v2993 = vld [vmem:[%s7 + $0x74] sm:$0xf]
    %v2994 = vld [vmem:[%s7 + $0x78] sm:$0xf]
    %v2995 = vld [vmem:[%s7 + $0x7c] sm:$0xf]
    %v3028 = vunpack.c.l.b16 %v2964
    %v3029 = vunpack.c.l.b16 %v2965
    %v3030 = vunpack.c.l.b16 %v2966
    %v3031 = vunpack.c.l.b16 %v2967
    %v3032 = vunpack.c.l.b16 %v2968
    %v3033 = vunpack.c.l.b16 %v2969
    %v3034 = vunpack.c.l.b16 %v2970
    %v3035 = vunpack.c.l.b16 %v2971
    %v3036 = vunpack.c.l.b16 %v2972
    %v3037 = vunpack.c.l.b16 %v2973
    %v3038 = vunpack.c.l.b16 %v2974
    %v3039 = vunpack.c.l.b16 %v2975
    %v3040 = vunpack.c.l.b16 %v2976
    %v3041 = vunpack.c.l.b16 %v2977
    %v3042 = vunpack.c.l.b16 %v2978
    %v3043 = vunpack.c.l.b16 %v2979
    %v3044 = vunpack.c.l.b16 %v2980
    %v3045 = vunpack.c.l.b16 %v2981
    %v3046 = vunpack.c.l.b16 %v2982
    %v3047 = vunpack.c.l.b16 %v2983
    %v3048 = vunpack.c.l.b16 %v2984
    %v3049 = vunpack.c.l.b16 %v2985
    %v3050 = vunpack.c.l.b16 %v2986
    %v3051 = vunpack.c.l.b16 %v2987
    %v3052 = vunpack.c.l.b16 %v2988
    %v3053 = vunpack.c.l.b16 %v2989
    %v3054 = vunpack.c.l.b16 %v2990
    %v3055 = vunpack.c.l.b16 %v2991
    %v3056 = vunpack.c.l.b16 %v2992
    %v3057 = vunpack.c.l.b16 %v2993
    %v3058 = vunpack.c.l.b16 %v2994
    %v3059 = vunpack.c.l.b16 %v2995
    %v3060 = vpack.c.b16 %v3029, %v3028
    %v3061 = vpack.c.b16 %v3031, %v3030
    %v3062 = vpack.c.b16 %v3033, %v3032
    %v3063 = vpack.c.b16 %v3035, %v3034
    %v3064 = vpack.c.b16 %v3037, %v3036
    %v3065 = vpack.c.b16 %v3039, %v3038
    %v3066 = vpack.c.b16 %v3041, %v3040
    %v3067 = vpack.c.b16 %v3043, %v3042
    %v3068 = vpack.c.b16 %v3045, %v3044
    %v3069 = vpack.c.b16 %v3047, %v3046
    %v3070 = vpack.c.b16 %v3049, %v3048
    %v3071 = vpack.c.b16 %v3051, %v3050
    %v3072 = vpack.c.b16 %v3053, %v3052
    %v3073 = vpack.c.b16 %v3055, %v3054
    %v3074 = vpack.c.b16 %v3057, %v3056
    %v3075 = vpack.c.b16 %v3059, %v3058
    %3092 = vmatprep.subr.bf16.mxu0 0
    %3093 = vmatpush1.bf16.msra.mxu0 %v3060
    %3094 = vmatprep.subr.bf16.mxu0 0
    %3095 = vmatpush1.bf16.msra.mxu0 %v3061
    %3096 = vmatprep.subr.bf16.mxu0 0
    %3097 = vmatpush1.bf16.msra.mxu0 %v3062
    %3098 = vmatprep.subr.bf16.mxu0 0
    %3099 = vmatpush1.bf16.msra.mxu0 %v3063
    %3100 = vmatprep.subr.bf16.mxu0 0
    %3101 = vmatpush1.bf16.msra.mxu0 %v3064
    %3102 = vmatprep.subr.bf16.mxu0 0
    %3103 = vmatpush1.bf16.msra.mxu0 %v3065
    %3104 = vmatprep.subr.bf16.mxu0 0
    %3105 = vmatpush1.bf16.msra.mxu0 %v3066
    %3106 = vmatprep.subr.bf16.mxu0 0
    %3107 = vmatpush1.bf16.msra.mxu0 %v3067
    %3108 = vmatprep.subr.bf16.mxu0 0
    %3109 = vmatpush1.bf16.msra.mxu0 %v3068
    %3110 = vmatprep.subr.bf16.mxu0 0
    %3111 = vmatpush1.bf16.msra.mxu0 %v3069
    %3112 = vmatprep.subr.bf16.mxu0 0
    %3113 = vmatpush1.bf16.msra.mxu0 %v3070
    %3114 = vmatprep.subr.bf16.mxu0 0
    %3115 = vmatpush1.bf16.msra.mxu0 %v3071
    %3116 = vmatprep.subr.bf16.mxu0 0
    %3117 = vmatpush1.bf16.msra.mxu0 %v3072
    %3118 = vmatprep.subr.bf16.mxu0 0
    %3119 = vmatpush1.bf16.msra.mxu0 %v3073
    %3120 = vmatprep.subr.bf16.mxu0 0
    %3121 = vmatpush1.bf16.msra.mxu0 %v3074
    %3122 = vmatprep.subr.bf16.mxu0 0
    %3123 = vmatpush1.bf16.msra.mxu0 %v3075
    %3124 = vmatprep.mubr.bf16.mxu0 %v2927
    %3125 = vmatmul.mubr.bf16.gmra.mrb[0].mxu0 %v2926
    %v3126 = vpop.f32.mrb[0].mxu0
    %v3127 = vadd.f32 0.0, %v3126
    %v3128 = vpop.f32.mrb[0].mxu0
    %v3129 = vpop.f32.mrb[0].mxu0
    %v3130 = vadd.f32 0.0, %v3129
    %v3131 = vpop.f32.mrb[0].mxu0
    %3132 = vmatprep.mubr.bf16.mxu0 %v2929
    %3133 = vmatmul.mubr.bf16.gmra.mrb[0].mxu0 %v2928
    %v3134 = vpop.f32.mrb[0].mxu0
    %v3135 = vadd.f32 0.0, %v3134
    %v3136 = vpop.f32.mrb[0].mxu0
    %v3137 = vpop.f32.mrb[0].mxu0
    %v3138 = vadd.f32 0.0, %v3137
    %v3139 = vpop.f32.mrb[0].mxu0
    %3140 = vdwg.mxu0
    %v3173 = vunpack.c.l.b16 %v2932
    %v3174 = vunpack.c.l.b16 %v2933
    %v3175 = vunpack.c.l.b16 %v2934
    %v3176 = vunpack.c.l.b16 %v2935
    %v3177 = vunpack.c.l.b16 %v2936
    %v3178 = vunpack.c.l.b16 %v2937
    %v3179 = vunpack.c.l.b16 %v2938
    %v3180 = vunpack.c.l.b16 %v2939
    %v3181 = vunpack.c.l.b16 %v2940
    %v3182 = vunpack.c.l.b16 %v2941
    %v3183 = vunpack.c.l.b16 %v2942
    %v3184 = vunpack.c.l.b16 %v2943
    %v3185 = vunpack.c.l.b16 %v2944
    %v3186 = vunpack.c.l.b16 %v2945
    %v3187 = vunpack.c.l.b16 %v2946
    %v3188 = vunpack.c.l.b16 %v2947
    %v3189 = vunpack.c.l.b16 %v2948
    %v3190 = vunpack.c.l.b16 %v2949
    %v3191 = vunpack.c.l.b16 %v2950
    %v3192 = vunpack.c.l.b16 %v2951
    %v3193 = vunpack.c.l.b16 %v2952
    %v3194 = vunpack.c.l.b16 %v2953
    %v3195 = vunpack.c.l.b16 %v2954
    %v3196 = vunpack.c.l.b16 %v2955
    %v3197 = vunpack.c.l.b16 %v2956
    %v3198 = vunpack.c.l.b16 %v2957
    %v3199 = vunpack.c.l.b16 %v2958
    %v3200 = vunpack.c.l.b16 %v2959
    %v3201 = vunpack.c.l.b16 %v2960
    %v3202 = vunpack.c.l.b16 %v2961
    %v3203 = vunpack.c.l.b16 %v2962
    %v3204 = vunpack.c.l.b16 %v2963
    %v3205 = vpack.c.b16 %v3174, %v3173
    %v3206 = vpack.c.b16 %v3176, %v3175
    %v3207 = vpack.c.b16 %v3178, %v3177
    %v3208 = vpack.c.b16 %v3180, %v3179
    %v3209 = vpack.c.b16 %v3182, %v3181
    %v3210 = vpack.c.b16 %v3184, %v3183
    %v3211 = vpack.c.b16 %v3186, %v3185
    %v3212 = vpack.c.b16 %v3188, %v3187
    %v3213 = vpack.c.b16 %v3190, %v3189
    %v3214 = vpack.c.b16 %v3192, %v3191
    %v3215 = vpack.c.b16 %v3194, %v3193
    %v3216 = vpack.c.b16 %v3196, %v3195
    %v3217 = vpack.c.b16 %v3198, %v3197
    %v3218 = vpack.c.b16 %v3200, %v3199
    %v3219 = vpack.c.b16 %v3202, %v3201
    %v3220 = vpack.c.b16 %v3204, %v3203
    %3237 = vmatprep.subr.bf16.mxu0 0
    %3238 = vmatpush1.bf16.msra.mxu0 %v3205
    %3239 = vmatprep.subr.bf16.mxu0 0
    %3240 = vmatpush1.bf16.msra.mxu0 %v3206
    %3241 = vmatprep.subr.bf16.mxu0 0
    %3242 = vmatpush1.bf16.msra.mxu0 %v3207
    %3243 = vmatprep.subr.bf16.mxu0 0
    %3244 = vmatpush1.bf16.msra.mxu0 %v3208
    %3245 = vmatprep.subr.bf16.mxu0 0
    %3246 = vmatpush1.bf16.msra.mxu0 %v3209
    %3247 = vmatprep.subr.bf16.mxu0 0
    %3248 = vmatpush1.bf16.msra.mxu0 %v3210
    %3249 = vmatprep.subr.bf16.mxu0 0
    %3250 = vmatpush1.bf16.msra.mxu0 %v3211
    %3251 = vmatprep.subr.bf16.mxu0 0
    %3252 = vmatpush1.bf16.msra.mxu0 %v3212
    %3253 = vmatprep.subr.bf16.mxu0 0
    %3254 = vmatpush1.bf16.msra.mxu0 %v3213
    %3255 = vmatprep.subr.bf16.mxu0 0
    %3256 = vmatpush1.bf16.msra.mxu0 %v3214
    %3257 = vmatprep.subr.bf16.mxu0 0
    %3258 = vmatpush1.bf16.msra.mxu0 %v3215
    %3259 = vmatprep.subr.bf16.mxu0 0
    %3260 = vmatpush1.bf16.msra.mxu0 %v3216
    %3261 = vmatprep.subr.bf16.mxu0 0
    %3262 = vmatpush1.bf16.msra.mxu0 %v3217
    %3263 = vmatprep.subr.bf16.mxu0 0
    %3264 = vmatpush1.bf16.msra.mxu0 %v3218
    %3265 = vmatprep.subr.bf16.mxu0 0
    %3266 = vmatpush1.bf16.msra.mxu0 %v3219
    %3267 = vmatprep.subr.bf16.mxu0 0
    %3268 = vmatpush1.bf16.msra.mxu0 %v3220
    %3269 = vmatprep.mubr.bf16.mxu0 %v2923
    %3270 = vmatmul.mubr.bf16.gmra.mrb[0].mxu0 %v2922
    %v3271 = vpop.f32.mrb[0].mxu0
    %v3272 = vadd.f32 %v3127, %v3271
    %v3273 = vpop.f32.mrb[0].mxu0
    %v3274 = vpop.f32.mrb[0].mxu0
    %v3275 = vadd.f32 %v3130, %v3274
    %v3276 = vpop.f32.mrb[0].mxu0
    %3277 = vmatprep.mubr.bf16.mxu0 %v2925
    %3278 = vmatmul.mubr.bf16.gmra.mrb[0].mxu0 %v2924
    %v3279 = vpop.f32.mrb[0].mxu0
    %v3280 = vadd.f32 %v3135, %v3279
    %v3281 = vpop.f32.mrb[0].mxu0
    %v3282 = vpop.f32.mrb[0].mxu0
    %v3283 = vadd.f32 %v3138, %v3282
    %v3284 = vpop.f32.mrb[0].mxu0
    %3285 = vdwg.mxu0
    %v3286 = vld [vmem:[%s8] sm:$0xf]
    %v3287 = vld [vmem:[%s8 + $0x4] sm:$0xf]
    %v3288 = vld [vmem:[%s8 + $0x8] sm:$0xf]
    %v3289 = vld [vmem:[%s8 + $0xc] sm:$0xf]
    %v3290 = vld [vmem:[%s8 + $0x10] sm:$0xf]
    %v3291 = vld [vmem:[%s8 + $0x14] sm:$0xf]
    %v3292 = vld [vmem:[%s8 + $0x18] sm:$0xf]
    %v3293 = vld [vmem:[%s8 + $0x1c] sm:$0xf]
    %v3294 = vld [vmem:[%s8 + $0x20] sm:$0xf]
    %v3295 = vld [vmem:[%s8 + $0x24] sm:$0xf]
    %v3296 = vld [vmem:[%s8 + $0x28] sm:$0xf]
    %v3297 = vld [vmem:[%s8 + $0x2c] sm:$0xf]
    %v3298 = vld [vmem:[%s8 + $0x30] sm:$0xf]
    %v3299 = vld [vmem:[%s8 + $0x34] sm:$0xf]
    %v3300 = vld [vmem:[%s8 + $0x38] sm:$0xf]
    %v3301 = vld [vmem:[%s8 + $0x3c] sm:$0xf]
    %v3302 = vld [vmem:[%s8 + $0x40] sm:$0xf]
    %v3303 = vld [vmem:[%s8 + $0x44] sm:$0xf]
    %v3304 = vld [vmem:[%s8 + $0x48] sm:$0xf]
    %v3305 = vld [vmem:[%s8 + $0x4c] sm:$0xf]
    %v3306 = vld [vmem:[%s8 + $0x50] sm:$0xf]
    %v3307 = vld [vmem:[%s8 + $0x54] sm:$0xf]
    %v3308 = vld [vmem:[%s8 + $0x58] sm:$0xf]
    %v3309 = vld [vmem:[%s8 + $0x5c] sm:$0xf]
    %v3310 = vld [vmem:[%s8 + $0x60] sm:$0xf]
    %v3311 = vld [vmem:[%s8 + $0x64] sm:$0xf]
    %v3312 = vld [vmem:[%s8 + $0x68] sm:$0xf]
    %v3313 = vld [vmem:[%s8 + $0x6c] sm:$0xf]
    %v3314 = vld [vmem:[%s8 + $0x70] sm:$0xf]
    %v3315 = vld [vmem:[%s8 + $0x74] sm:$0xf]
    %v3316 = vld [vmem:[%s8 + $0x78] sm:$0xf]
    %v3317 = vld [vmem:[%s8 + $0x7c] sm:$0xf]
    %v3350 = vunpack.c.l.b16 %v3286
    %v3351 = vunpack.c.l.b16 %v3287
    %v3352 = vunpack.c.l.b16 %v3288
    %v3353 = vunpack.c.l.b16 %v3289
    %v3354 = vunpack.c.l.b16 %v3290
    %v3355 = vunpack.c.l.b16 %v3291
    %v3356 = vunpack.c.l.b16 %v3292
    %v3357 = vunpack.c.l.b16 %v3293
    %v3358 = vunpack.c.l.b16 %v3294
    %v3359 = vunpack.c.l.b16 %v3295
    %v3360 = vunpack.c.l.b16 %v3296
    %v3361 = vunpack.c.l.b16 %v3297
    %v3362 = vunpack.c.l.b16 %v3298
    %v3363 = vunpack.c.l.b16 %v3299
    %v3364 = vunpack.c.l.b16 %v3300
    %v3365 = vunpack.c.l.b16 %v3301
    %v3366 = vunpack.c.l.b16 %v3302
    %v3367 = vunpack.c.l.b16 %v3303
    %v3368 = vunpack.c.l.b16 %v3304
    %v3369 = vunpack.c.l.b16 %v3305
    %v3370 = vunpack.c.l.b16 %v3306
    %v3371 = vunpack.c.l.b16 %v3307
    %v3372 = vunpack.c.l.b16 %v3308
    %v3373 = vunpack.c.l.b16 %v3309
    %v3374 = vunpack.c.l.b16 %v3310
    %v3375 = vunpack.c.l.b16 %v3311
    %v3376 = vunpack.c.l.b16 %v3312
    %v3377 = vunpack.c.l.b16 %v3313
    %v3378 = vunpack.c.l.b16 %v3314
    %v3379 = vunpack.c.l.b16 %v3315
    %v3380 = vunpack.c.l.b16 %v3316
    %v3381 = vunpack.c.l.b16 %v3317
    %v3382 = vpack.c.b16 %v3351, %v3350
    %v3383 = vpack.c.b16 %v3353, %v3352
    %v3384 = vpack.c.b16 %v3355, %v3354
    %v3385 = vpack.c.b16 %v3357, %v3356
    %v3386 = vpack.c.b16 %v3359, %v3358
    %v3387 = vpack.c.b16 %v3361, %v3360
    %v3388 = vpack.c.b16 %v3363, %v3362
    %v3389 = vpack.c.b16 %v3365, %v3364
    %v3390 = vpack.c.b16 %v3367, %v3366
    %v3391 = vpack.c.b16 %v3369, %v3368
    %v3392 = vpack.c.b16 %v3371, %v3370
    %v3393 = vpack.c.b16 %v3373, %v3372
    %v3394 = vpack.c.b16 %v3375, %v3374
    %v3395 = vpack.c.b16 %v3377, %v3376
    %v3396 = vpack.c.b16 %v3379, %v3378
    %v3397 = vpack.c.b16 %v3381, %v3380
    %3414 = vmatprep.subr.bf16.mxu0 0
    %3415 = vmatpush1.bf16.msra.mxu0 %v3382
    %3416 = vmatprep.subr.bf16.mxu0 0
    %3417 = vmatpush1.bf16.msra.mxu0 %v3383
    %3418 = vmatprep.subr.bf16.mxu0 0
    %3419 = vmatpush1.bf16.msra.mxu0 %v3384
    %3420 = vmatprep.subr.bf16.mxu0 0
    %3421 = vmatpush1.bf16.msra.mxu0 %v3385
    %3422 = vmatprep.subr.bf16.mxu0 0
    %3423 = vmatpush1.bf16.msra.mxu0 %v3386
    %3424 = vmatprep.subr.bf16.mxu0 0
    %3425 = vmatpush1.bf16.msra.mxu0 %v3387
    %3426 = vmatprep.subr.bf16.mxu0 0
    %3427 = vmatpush1.bf16.msra.mxu0 %v3388
    %3428 = vmatprep.subr.bf16.mxu0 0
    %3429 = vmatpush1.bf16.msra.mxu0 %v3389
    %3430 = vmatprep.subr.bf16.mxu0 0
    %3431 = vmatpush1.bf16.msra.mxu0 %v3390
    %3432 = vmatprep.subr.bf16.mxu0 0
    %3433 = vmatpush1.bf16.msra.mxu0 %v3391
    %3434 = vmatprep.subr.bf16.mxu0 0
    %3435 = vmatpush1.bf16.msra.mxu0 %v3392
    %3436 = vmatprep.subr.bf16.mxu0 0
    %3437 = vmatpush1.bf16.msra.mxu0 %v3393
    %3438 = vmatprep.subr.bf16.mxu0 0
    %3439 = vmatpush1.bf16.msra.mxu0 %v3394
    %3440 = vmatprep.subr.bf16.mxu0 0
    %3441 = vmatpush1.bf16.msra.mxu0 %v3395
    %3442 = vmatprep.subr.bf16.mxu0 0
    %3443 = vmatpush1.bf16.msra.mxu0 %v3396
    %3444 = vmatprep.subr.bf16.mxu0 0
    %3445 = vmatpush1.bf16.msra.mxu0 %v3397
    %3446 = vmatprep.mubr.bf16.mxu0 %v2925
    %3447 = vmatmul.mubr.bf16.gmra.mrb[0].mxu0 %v2924
    %v3448 = vpop.f32.mrb[0].mxu0
    %v3449 = vadd.f32 0.0, %v3448
    %v3450 = vpop.f32.mrb[0].mxu0
    %v3451 = vpop.f32.mrb[0].mxu0
    %v3452 = vadd.f32 0.0, %v3451
    %v3453 = vpop.f32.mrb[0].mxu0
    %3454 = vmatprep.mubr.bf16.mxu0 %v2931
    %3455 = vmatmul.mubr.bf16.gmra.mrb[0].mxu0 %v2930
    %v3456 = vpop.f32.mrb[0].mxu0
    %v3457 = vadd.f32 0.0, %v3456
    %v3458 = vpop.f32.mrb[0].mxu0
    %v3459 = vpop.f32.mrb[0].mxu0
    %v3460 = vadd.f32 0.0, %v3459
    %v3461 = vpop.f32.mrb[0].mxu0
    %3462 = vdwg.mxu0
    %v3463 = vadd.f32 %v3272, %v3449
    %v3464 = vadd.f32 %v3275, %v3452
    %v3465 = vadd.f32 %v3280, %v3457
    %v3466 = vadd.f32 %v3283, %v3460
    %v3467 = vld [vmem:[%s9] sm:$0x1]
    %v3469 = vlaneseq
    %v3470 = vshrl.u32 %v3469, 7
    %v3471 = vsub.s32 0, %v3470
    %v3472 = vrot.slane %v3467, %v3471
    %v3474 = vadd.f32 %v3463, %v3472
    %v3475 = vadd.f32 %v3464, %v3472
    %v3476 = vadd.f32 %v3465, %v3472
    %v3477 = vadd.f32 %v3466, %v3472
    %v3478 = vmax.f32 %v3474, 0.0
    %v3479 = vmax.f32 %v3475, 0.0
    %v3480 = vmax.f32 %v3476, 0.0
    %v3481 = vmax.f32 %v3477, 0.0
    %v3482 = vpack.c.bf16 %v3478, %v3478
    %v3483 = vld [vmem:[%s10] sm:$0xff]
    %v3484 = vld [vmem:[%s10 + $0x8] sm:$0xff]
    %v3485 = vld [vmem:[%s10 + $0x10] sm:$0xff]
    %v3486 = vld [vmem:[%s10 + $0x18] sm:$0xff]
    %v3487 = vpack.c.bf16 %v3479, %v3479
    %s3488 = scalar_lea.vmem %s10, 32
    %v3489 = vld [vmem:[%s3488] sm:$0xff]
    %v3490 = vld [vmem:[%s3488 + $0x8] sm:$0xff]
    %v3491 = vld [vmem:[%s3488 + $0x10] sm:$0xff]
    %v3492 = vld [vmem:[%s3488 + $0x18] sm:$0xff]
    %v3497 = vunpack.c.l.b16 %v3489
    %v3498 = vunpack.c.h.b16 %v3489
    %v3499 = vunpack.c.l.b16 %v3490
    %v3500 = vunpack.c.h.b16 %v3490
    %v3501 = vunpack.c.l.b16 %v3491
    %v3502 = vunpack.c.h.b16 %v3491
    %v3503 = vunpack.c.l.b16 %v3492
    %v3504 = vunpack.c.h.b16 %v3492
    %v3505 = vpack.c.b16 %v3499, %v3497
    %v3506 = vpack.c.b16 %v3500, %v3498
    %v3507 = vpack.c.b16 %v3503, %v3501
    %v3508 = vpack.c.b16 %v3504, %v3502
    %v3514 = vsel %vm2459, %v3487, 0
    %3516 = vmatprep.subr.bf16.mxu0 %v3506
    %3517 = vmatpush1.bf16.msra.mxu0 %v3505
    %3518 = vmatprep.subr.bf16.mxu0 %v3508
    %3519 = vmatpush1.bf16.msra.mxu0 %v3507
    %3520 = vmatprep.subr.bf16.mxu0 0
    %3521 = vmatpush1.bf16.msra.mxu0 0
    %3522 = vmatprep.subr.bf16.mxu0 0
    %3523 = vmatpush1.bf16.msra.mxu0 0
    %3524 = vmatprep.subr.bf16.mxu0 0
    %3525 = vmatpush1.bf16.msra.mxu0 0
    %3526 = vmatprep.subr.bf16.mxu0 0
    %3527 = vmatpush1.bf16.msra.mxu0 0
    %3528 = vmatprep.subr.bf16.mxu0 0
    %3529 = vmatpush1.bf16.msra.mxu0 0
    %3530 = vmatprep.subr.bf16.mxu0 0
    %3531 = vmatpush1.bf16.msra.mxu0 0
    %3532 = vmatprep.subr.bf16.mxu0 0
    %3533 = vmatpush1.bf16.msra.mxu0 0
    %3534 = vmatprep.subr.bf16.mxu0 0
    %3535 = vmatpush1.bf16.msra.mxu0 0
    %3536 = vmatprep.subr.bf16.mxu0 0
    %3537 = vmatpush1.bf16.msra.mxu0 0
    %3538 = vmatprep.subr.bf16.mxu0 0
    %3539 = vmatpush1.bf16.msra.mxu0 0
    %3540 = vmatprep.subr.bf16.mxu0 0
    %3541 = vmatpush1.bf16.msra.mxu0 0
    %3542 = vmatprep.subr.bf16.mxu0 0
    %3543 = vmatpush1.bf16.msra.mxu0 0
    %3544 = vmatprep.subr.bf16.mxu0 0
    %3545 = vmatpush1.bf16.msra.mxu0 0
    %3546 = vmatprep.subr.bf16.mxu0 0
    %3547 = vmatpush1.bf16.msra.mxu0 0
    %3548 = vmatprep.mubr.bf16.mxu0 0
    %3549 = vmatmul.mubr.bf16.gmra.mrb[0].mxu0 %v3514
    %v3550 = vpop.f32.mrb[0].mxu0
    %v3551 = vadd.f32 0.0, %v3550
    %v3552 = vpop.f32.mrb[0].mxu0
    %v3553 = vadd.f32 0.0, %v3552
    %v3554 = vpop.f32.mrb[0].mxu0
    %v3555 = vpop.f32.mrb[0].mxu0
    %3556 = vdwg.mxu0
    %v3561 = vunpack.c.l.b16 %v3483
    %v3562 = vunpack.c.h.b16 %v3483
    %v3563 = vunpack.c.l.b16 %v3484
    %v3564 = vunpack.c.h.b16 %v3484
    %v3565 = vunpack.c.l.b16 %v3485
    %v3566 = vunpack.c.h.b16 %v3485
    %v3567 = vunpack.c.l.b16 %v3486
    %v3568 = vunpack.c.h.b16 %v3486
    %v3569 = vpack.c.b16 %v3563, %v3561
    %v3570 = vpack.c.b16 %v3564, %v3562
    %v3571 = vpack.c.b16 %v3567, %v3565
    %v3572 = vpack.c.b16 %v3568, %v3566
    %v3578 = vsel %vm2459, %v3482, 0
    %3580 = vmatprep.subr.bf16.mxu0 %v3570
    %3581 = vmatpush1.bf16.msra.mxu0 %v3569
    %3582 = vmatprep.subr.bf16.mxu0 %v3572
    %3583 = vmatpush1.bf16.msra.mxu0 %v3571
    %3584 = vmatprep.subr.bf16.mxu0 0
    %3585 = vmatpush1.bf16.msra.mxu0 0
    %3586 = vmatprep.subr.bf16.mxu0 0
    %3587 = vmatpush1.bf16.msra.mxu0 0
    %3588 = vmatprep.subr.bf16.mxu0 0
    %3589 = vmatpush1.bf16.msra.mxu0 0
    %3590 = vmatprep.subr.bf16.mxu0 0
    %3591 = vmatpush1.bf16.msra.mxu0 0
    %3592 = vmatprep.subr.bf16.mxu0 0
    %3593 = vmatpush1.bf16.msra.mxu0 0
    %3594 = vmatprep.subr.bf16.mxu0 0
    %3595 = vmatpush1.bf16.msra.mxu0 0
    %3596 = vmatprep.subr.bf16.mxu0 0
    %3597 = vmatpush1.bf16.msra.mxu0 0
    %3598 = vmatprep.subr.bf16.mxu0 0
    %3599 = vmatpush1.bf16.msra.mxu0 0
    %3600 = vmatprep.subr.bf16.mxu0 0
    %3601 = vmatpush1.bf16.msra.mxu0 0
    %3602 = vmatprep.subr.bf16.mxu0 0
    %3603 = vmatpush1.bf16.msra.mxu0 0
    %3604 = vmatprep.subr.bf16.mxu0 0
    %3605 = vmatpush1.bf16.msra.mxu0 0
    %3606 = vmatprep.subr.bf16.mxu0 0
    %3607 = vmatpush1.bf16.msra.mxu0 0
    %3608 = vmatprep.subr.bf16.mxu0 0
    %3609 = vmatpush1.bf16.msra.mxu0 0
    %3610 = vmatprep.subr.bf16.mxu0 0
    %3611 = vmatpush1.bf16.msra.mxu0 0
    %3612 = vmatprep.mubr.bf16.mxu0 0
    %3613 = vmatmul.mubr.bf16.gmra.mrb[0].mxu0 %v3578
    %v3614 = vpop.f32.mrb[0].mxu0
    %v3615 = vadd.f32 %v3551, %v3614
    %v3616 = vpop.f32.mrb[0].mxu0
    %v3617 = vadd.f32 %v3553, %v3616
    %v3618 = vpop.f32.mrb[0].mxu0
    %v3619 = vpop.f32.mrb[0].mxu0
    %3620 = vdwg.mxu0
    %v3621 = vpack.c.bf16 %v3480, %v3480
    %s3622 = scalar_lea.vmem %s10, 64
    %v3623 = vld [vmem:[%s3622] sm:$0xff]
    %v3624 = vld [vmem:[%s3622 + $0x8] sm:$0xff]
    %v3625 = vld [vmem:[%s3622 + $0x10] sm:$0xff]
    %v3626 = vld [vmem:[%s3622 + $0x18] sm:$0xff]
    %v3631 = vunpack.c.l.b16 %v3623
    %v3632 = vunpack.c.h.b16 %v3623
    %v3633 = vunpack.c.l.b16 %v3624
    %v3634 = vunpack.c.h.b16 %v3624
    %v3635 = vunpack.c.l.b16 %v3625
    %v3636 = vunpack.c.h.b16 %v3625
    %v3637 = vunpack.c.l.b16 %v3626
    %v3638 = vunpack.c.h.b16 %v3626
    %v3639 = vpack.c.b16 %v3633, %v3631
    %v3640 = vpack.c.b16 %v3634, %v3632
    %v3641 = vpack.c.b16 %v3637, %v3635
    %v3642 = vpack.c.b16 %v3638, %v3636
    %v3648 = vsel %vm2459, %v3621, 0
    %3650 = vmatprep.subr.bf16.mxu0 %v3640
    %3651 = vmatpush1.bf16.msra.mxu0 %v3639
    %3652 = vmatprep.subr.bf16.mxu0 %v3642
    %3653 = vmatpush1.bf16.msra.mxu0 %v3641
    %3654 = vmatprep.subr.bf16.mxu0 0
    %3655 = vmatpush1.bf16.msra.mxu0 0
    %3656 = vmatprep.subr.bf16.mxu0 0
    %3657 = vmatpush1.bf16.msra.mxu0 0
    %3658 = vmatprep.subr.bf16.mxu0 0
    %3659 = vmatpush1.bf16.msra.mxu0 0
    %3660 = vmatprep.subr.bf16.mxu0 0
    %3661 = vmatpush1.bf16.msra.mxu0 0
    %3662 = vmatprep.subr.bf16.mxu0 0
    %3663 = vmatpush1.bf16.msra.mxu0 0
    %3664 = vmatprep.subr.bf16.mxu0 0
    %3665 = vmatpush1.bf16.msra.mxu0 0
    %3666 = vmatprep.subr.bf16.mxu0 0
    %3667 = vmatpush1.bf16.msra.mxu0 0
    %3668 = vmatprep.subr.bf16.mxu0 0
    %3669 = vmatpush1.bf16.msra.mxu0 0
    %3670 = vmatprep.subr.bf16.mxu0 0
    %3671 = vmatpush1.bf16.msra.mxu0 0
    %3672 = vmatprep.subr.bf16.mxu0 0
    %3673 = vmatpush1.bf16.msra.mxu0 0
    %3674 = vmatprep.subr.bf16.mxu0 0
    %3675 = vmatpush1.bf16.msra.mxu0 0
    %3676 = vmatprep.subr.bf16.mxu0 0
    %3677 = vmatpush1.bf16.msra.mxu0 0
    %3678 = vmatprep.subr.bf16.mxu0 0
    %3679 = vmatpush1.bf16.msra.mxu0 0
    %3680 = vmatprep.subr.bf16.mxu0 0
    %3681 = vmatpush1.bf16.msra.mxu0 0
    %3682 = vmatprep.mubr.bf16.mxu0 0
    %3683 = vmatmul.mubr.bf16.gmra.mrb[0].mxu0 %v3648
    %v3684 = vpop.f32.mrb[0].mxu0
    %v3685 = vadd.f32 0.0, %v3684
    %v3686 = vpop.f32.mrb[0].mxu0
    %v3687 = vadd.f32 0.0, %v3686
    %v3688 = vpop.f32.mrb[0].mxu0
    %v3689 = vpop.f32.mrb[0].mxu0
    %3690 = vdwg.mxu0
    %v3691 = vadd.f32 %v3615, %v3685
    %v3692 = vadd.f32 %v3617, %v3687
    %v3693 = vpack.c.bf16 %v3481, %v3481
    %s3694 = scalar_lea.vmem %s10, 96
    %v3695 = vld [vmem:[%s3694] sm:$0xff]
    %v3696 = vld [vmem:[%s3694 + $0x8] sm:$0xff]
    %v3697 = vld [vmem:[%s3694 + $0x10] sm:$0xff]
    %v3698 = vld [vmem:[%s3694 + $0x18] sm:$0xff]
    %v3703 = vunpack.c.l.b16 %v3695
    %v3704 = vunpack.c.h.b16 %v3695
    %v3705 = vunpack.c.l.b16 %v3696
    %v3706 = vunpack.c.h.b16 %v3696
    %v3707 = vunpack.c.l.b16 %v3697
    %v3708 = vunpack.c.h.b16 %v3697
    %v3709 = vunpack.c.l.b16 %v3698
    %v3710 = vunpack.c.h.b16 %v3698
    %v3711 = vpack.c.b16 %v3705, %v3703
    %v3712 = vpack.c.b16 %v3706, %v3704
    %v3713 = vpack.c.b16 %v3709, %v3707
    %v3714 = vpack.c.b16 %v3710, %v3708
    %v3720 = vsel %vm2459, %v3693, 0
    %3722 = vmatprep.subr.bf16.mxu0 %v3712
    %3723 = vmatpush1.bf16.msra.mxu0 %v3711
    %3724 = vmatprep.subr.bf16.mxu0 %v3714
    %3725 = vmatpush1.bf16.msra.mxu0 %v3713
    %3726 = vmatprep.subr.bf16.mxu0 0
    %3727 = vmatpush1.bf16.msra.mxu0 0
    %3728 = vmatprep.subr.bf16.mxu0 0
    %3729 = vmatpush1.bf16.msra.mxu0 0
    %3730 = vmatprep.subr.bf16.mxu0 0
    %3731 = vmatpush1.bf16.msra.mxu0 0
    %3732 = vmatprep.subr.bf16.mxu0 0
    %3733 = vmatpush1.bf16.msra.mxu0 0
    %3734 = vmatprep.subr.bf16.mxu0 0
    %3735 = vmatpush1.bf16.msra.mxu0 0
    %3736 = vmatprep.subr.bf16.mxu0 0
    %3737 = vmatpush1.bf16.msra.mxu0 0
    %3738 = vmatprep.subr.bf16.mxu0 0
    %3739 = vmatpush1.bf16.msra.mxu0 0
    %3740 = vmatprep.subr.bf16.mxu0 0
    %3741 = vmatpush1.bf16.msra.mxu0 0
    %3742 = vmatprep.subr.bf16.mxu0 0
    %3743 = vmatpush1.bf16.msra.mxu0 0
    %3744 = vmatprep.subr.bf16.mxu0 0
    %3745 = vmatpush1.bf16.msra.mxu0 0
    %3746 = vmatprep.subr.bf16.mxu0 0
    %3747 = vmatpush1.bf16.msra.mxu0 0
    %3748 = vmatprep.subr.bf16.mxu0 0
    %3749 = vmatpush1.bf16.msra.mxu0 0
    %3750 = vmatprep.subr.bf16.mxu0 0
    %3751 = vmatpush1.bf16.msra.mxu0 0
    %3752 = vmatprep.subr.bf16.mxu0 0
    %3753 = vmatpush1.bf16.msra.mxu0 0
    %3754 = vmatprep.mubr.bf16.mxu0 0
    %3755 = vmatmul.mubr.bf16.gmra.mrb[0].mxu0 %v3720
    %v3756 = vpop.f32.mrb[0].mxu0
    %v3757 = vadd.f32 0.0, %v3756
    %v3758 = vpop.f32.mrb[0].mxu0
    %v3759 = vadd.f32 0.0, %v3758
    %v3760 = vpop.f32.mrb[0].mxu0
    %v3761 = vpop.f32.mrb[0].mxu0
    %3762 = vdwg.mxu0
    %v3763 = vadd.f32 %v3691, %v3757
    %v3764 = vadd.f32 %v3692, %v3759
    %v3765 = vld [vmem:[%s11] sm:$0x3]
    %v3767 = vlaneseq
    %v3768 = vshrl.u32 %v3767, 7
    %v3769 = vsub.s32 0, %v3768
    %v3770 = vrot.slane %v3765, %v3769
    %v3771 = vlaneseq
    %v3772 = vshrl.u32 %v3771, 7
    %v3773 = vsub.s32 1, %v3772
    %v3774 = vrot.slane %v3765, %v3773
    %v3777 = vadd.f32 %v3763, %v3770
    %v3778 = vadd.f32 %v3764, %v3774
    %v3779 = vmax.f32 %v3777, 0.0
    %v3780 = vmax.f32 %v3778, 0.0
    %v3781 = vpack.c.bf16 %v3779, %v3779
    %v3782 = vpack.c.bf16 %v3780, %v3780
    %v3783 = vld [vmem:[%s12] sm:$0xf]
    %v3784 = vld [vmem:[%s12 + $0x4] sm:$0xf]
    %v3785 = vld [vmem:[%s12 + $0x8] sm:$0xf]
    %v3786 = vld [vmem:[%s12 + $0xc] sm:$0xf]
    %v3787 = vld [vmem:[%s12 + $0x10] sm:$0xf]
    %v3788 = vld [vmem:[%s12 + $0x14] sm:$0xf]
    %v3789 = vld [vmem:[%s12 + $0x18] sm:$0xf]
    %v3790 = vld [vmem:[%s12 + $0x1c] sm:$0xf]
    %v3791 = vld [vmem:[%s12 + $0x20] sm:$0xf]
    %v3792 = vld [vmem:[%s12 + $0x24] sm:$0xf]
    %v3793 = vld [vmem:[%s12 + $0x28] sm:$0xf]
    %v3794 = vld [vmem:[%s12 + $0x2c] sm:$0xf]
    %v3795 = vld [vmem:[%s12 + $0x30] sm:$0xf]
    %v3796 = vld [vmem:[%s12 + $0x34] sm:$0xf]
    %v3797 = vld [vmem:[%s12 + $0x38] sm:$0xf]
    %v3798 = vld [vmem:[%s12 + $0x3c] sm:$0xf]
    %v3799 = vld [vmem:[%s12 + $0x40] sm:$0xf]
    %v3800 = vld [vmem:[%s12 + $0x44] sm:$0xf]
    %v3801 = vld [vmem:[%s12 + $0x48] sm:$0xf]
    %v3802 = vld [vmem:[%s12 + $0x4c] sm:$0xf]
    %v3803 = vld [vmem:[%s12 + $0x50] sm:$0xf]
    %v3804 = vld [vmem:[%s12 + $0x54] sm:$0xf]
    %v3805 = vld [vmem:[%s12 + $0x58] sm:$0xf]
    %v3806 = vld [vmem:[%s12 + $0x5c] sm:$0xf]
    %v3807 = vld [vmem:[%s12 + $0x60] sm:$0xf]
    %v3808 = vld [vmem:[%s12 + $0x64] sm:$0xf]
    %v3809 = vld [vmem:[%s12 + $0x68] sm:$0xf]
    %v3810 = vld [vmem:[%s12 + $0x6c] sm:$0xf]
    %v3811 = vld [vmem:[%s12 + $0x70] sm:$0xf]
    %v3812 = vld [vmem:[%s12 + $0x74] sm:$0xf]
    %v3813 = vld [vmem:[%s12 + $0x78] sm:$0xf]
    %v3814 = vld [vmem:[%s12 + $0x7c] sm:$0xf]
    %v3815 = vld [vmem:[%s13] sm:$0x1]
    %v3817 = vlaneseq
    %v3818 = vshrl.u32 %v3817, 7
    %v3819 = vsub.s32 0, %v3818
    %v3820 = vrot.slane %v3815, %v3819
    %v3854 = vunpack.c.l.b16 %v3783
    %v3855 = vunpack.c.l.b16 %v3784
    %v3856 = vunpack.c.l.b16 %v3785
    %v3857 = vunpack.c.l.b16 %v3786
    %v3858 = vunpack.c.l.b16 %v3787
    %v3859 = vunpack.c.l.b16 %v3788
    %v3860 = vunpack.c.l.b16 %v3789
    %v3861 = vunpack.c.l.b16 %v3790
    %v3862 = vunpack.c.l.b16 %v3791
    %v3863 = vunpack.c.l.b16 %v3792
    %v3864 = vunpack.c.l.b16 %v3793
    %v3865 = vunpack.c.l.b16 %v3794
    %v3866 = vunpack.c.l.b16 %v3795
    %v3867 = vunpack.c.l.b16 %v3796
    %v3868 = vunpack.c.l.b16 %v3797
    %v3869 = vunpack.c.l.b16 %v3798
    %v3870 = vunpack.c.l.b16 %v3799
    %v3871 = vunpack.c.l.b16 %v3800
    %v3872 = vunpack.c.l.b16 %v3801
    %v3873 = vunpack.c.l.b16 %v3802
    %v3874 = vunpack.c.l.b16 %v3803
    %v3875 = vunpack.c.l.b16 %v3804
    %v3876 = vunpack.c.l.b16 %v3805
    %v3877 = vunpack.c.l.b16 %v3806
    %v3878 = vunpack.c.l.b16 %v3807
    %v3879 = vunpack.c.l.b16 %v3808
    %v3880 = vunpack.c.l.b16 %v3809
    %v3881 = vunpack.c.l.b16 %v3810
    %v3882 = vunpack.c.l.b16 %v3811
    %v3883 = vunpack.c.l.b16 %v3812
    %v3884 = vunpack.c.l.b16 %v3813
    %v3885 = vunpack.c.l.b16 %v3814
    %v3886 = vpack.c.b16 %v3855, %v3854
    %v3887 = vpack.c.b16 %v3857, %v3856
    %v3888 = vpack.c.b16 %v3859, %v3858
    %v3889 = vpack.c.b16 %v3861, %v3860
    %v3890 = vpack.c.b16 %v3863, %v3862
    %v3891 = vpack.c.b16 %v3865, %v3864
    %v3892 = vpack.c.b16 %v3867, %v3866
    %v3893 = vpack.c.b16 %v3869, %v3868
    %v3894 = vpack.c.b16 %v3871, %v3870
    %v3895 = vpack.c.b16 %v3873, %v3872
    %v3896 = vpack.c.b16 %v3875, %v3874
    %v3897 = vpack.c.b16 %v3877, %v3876
    %v3898 = vpack.c.b16 %v3879, %v3878
    %v3899 = vpack.c.b16 %v3881, %v3880
    %v3900 = vpack.c.b16 %v3883, %v3882
    %v3901 = vpack.c.b16 %v3885, %v3884
    %3918 = vmatprep.subr.bf16.mxu0 0
    %3919 = vmatpush1.bf16.msra.mxu0 %v3886
    %3920 = vmatprep.subr.bf16.mxu0 0
    %3921 = vmatpush1.bf16.msra.mxu0 %v3887
    %3922 = vmatprep.subr.bf16.mxu0 0
    %3923 = vmatpush1.bf16.msra.mxu0 %v3888
    %3924 = vmatprep.subr.bf16.mxu0 0
    %3925 = vmatpush1.bf16.msra.mxu0 %v3889
    %3926 = vmatprep.subr.bf16.mxu0 0
    %3927 = vmatpush1.bf16.msra.mxu0 %v3890
    %3928 = vmatprep.subr.bf16.mxu0 0
    %3929 = vmatpush1.bf16.msra.mxu0 %v3891
    %3930 = vmatprep.subr.bf16.mxu0 0
    %3931 = vmatpush1.bf16.msra.mxu0 %v3892
    %3932 = vmatprep.subr.bf16.mxu0 0
    %3933 = vmatpush1.bf16.msra.mxu0 %v3893
    %3934 = vmatprep.subr.bf16.mxu0 0
    %3935 = vmatpush1.bf16.msra.mxu0 %v3894
    %3936 = vmatprep.subr.bf16.mxu0 0
    %3937 = vmatpush1.bf16.msra.mxu0 %v3895
    %3938 = vmatprep.subr.bf16.mxu0 0
    %3939 = vmatpush1.bf16.msra.mxu0 %v3896
    %3940 = vmatprep.subr.bf16.mxu0 0
    %3941 = vmatpush1.bf16.msra.mxu0 %v3897
    %3942 = vmatprep.subr.bf16.mxu0 0
    %3943 = vmatpush1.bf16.msra.mxu0 %v3898
    %3944 = vmatprep.subr.bf16.mxu0 0
    %3945 = vmatpush1.bf16.msra.mxu0 %v3899
    %3946 = vmatprep.subr.bf16.mxu0 0
    %3947 = vmatpush1.bf16.msra.mxu0 %v3900
    %3948 = vmatprep.subr.bf16.mxu0 0
    %3949 = vmatpush1.bf16.msra.mxu0 %v3901
    %3950 = vmatprep.mubr.bf16.mxu0 %v3782
    %3951 = vmatmul.mubr.bf16.gmra.mrb[0].mxu0 %v3781
    %v3952 = vpop.f32.mrb[0].mxu0
    %v3953 = vadd.f32 %v3820, %v3952
    %v3954 = vpop.f32.mrb[0].mxu0
    %v3955 = vpop.f32.mrb[0].mxu0
    %v3956 = vpop.f32.mrb[0].mxu0
    %3957 = vdwg.mxu0
    %vm3958 = vcmask 80896
    %v3959 = vsel %vm3958, %v3953, -inf
    %3960 = vmax.xlane.f32.xlu0 %v3959
    %v3961 = vpop.xlane.xlu0 %3960
    %v3962 = vsub.f32 %v3953, %v3961
    %v3963 = vmul.f32 %v3962, 1.442695
    %v3964 = vpow.pop %v3963
    %v3965 = vsel %vm3958, %v3964, 0.0
    %3966 = vadd.xlane.f32.xlu0 %v3965
    %v3967 = vpop.xlane.xlu0 %3966
    %v3968 = vrcp.pop %v3967
    %v3969 = vmul.f32 %v3967, %v3968
    %v3970 = vsub.f32 2.0, %v3969
    %v3971 = vmul.f32 %v3968, %v3970
    %v3972 = vmul.f32 %v3964, %v3971
    %3973 = vst.msk [vmem:[#allocation2] sm:$0xff] %vm3958, %v3972
    // Predicated region
    $region58: #{model1_forward.1} parent=1 // pred_check
      _
    $region59: #{model1_forward.1} parent=1 // pred_check_branch
      %3975 = sbr.rel (0) target = $region61
    $region60: #{model1_forward.1} parent=1 // pred_region
      %s3977 = ssub.s32 128, 128
      %3978 = vsyncadd [#allocation3], %s3977
      %s3980 = sshll.u32 [#allocation2], 4
      %s3981 = int_to_ptr.vmem [resolvable:$true] %s3980
      %3983 = dma.vmem_to_hbm [thread:$0]  %s3981, 128, %s14, [#allocation3]
    $region61: #{model1_forward.1} parent=1 // pred_fallthru
      _
    // Predicated region
    $region62: #{model1_forward.1} parent=1 // pred_check
      _
    $region63: #{model1_forward.1} parent=1 // pred_check_branch
      %3985 = sbr.rel (0) target = $region65
    $region64: #{model1_forward.1} parent=1 // pred_region
      %3986 = dma.done [#allocation3], 128
    $region65: #{model1_forward.1} parent=1 // pred_fallthru
      _
    %3987 = vsyncpa [#allocation3], 1

</llo_original>
